<compile_context>
chip_gen: v7x
topology: tpu7x:2x2x1
jax: 0.10.0
libtpu: 0.0.40
codegen_flags: <defaults>
</compile_context>

<pallas_src>
import functools

import numpy as np

import jax
import jax.numpy as jnp
from jax.experimental import pallas as pl
from jax.experimental.pallas import tpu as pltpu

COMPUTE_DTYPE = jnp.bfloat16  # MXU operand dtype; accumulation/epilogues stay f32.


# ---------------------------------------------------------------------------
# Single fused kernel: one GEMM per conv block (+ fused epilogue) + adv head.
# One grid step == NB batch elements.
# ---------------------------------------------------------------------------
def _disc_kernel(img_ref, cond_ref, *refs, n_layers, compute_dtype):
    n_tail = 2 * (n_layers - 1)
    m0i_ref, m0c_ref, aff0_ref = refs[0], refs[1], refs[2]
    layer_refs = refs[3:3 + n_tail]
    adv_w_ref = refs[3 + n_tail]
    adv_b_ref = refs[3 + n_tail + 1]
    out_ref = refs[3 + n_tail + 2]

    cdt = compute_dtype
    f32 = jnp.float32

    def epilogue(acc, aff_ref):
        z = acc + aff_ref[0:1, :]                      # conv bias (tiled per feature)
        z = jnp.where(z >= 0.0, z, 0.2 * z)            # LeakyReLU(0.2)
        # TODO(synk): Dropout2d(0.25) is identity at inference; training-mode channel
        # dropout is not implemented.
        return z * aff_ref[1:2, :] + aff_ref[2:3, :]   # eval BatchNorm (identity if bn=False)

    # --- layer 0: d_in = cat((img, cond), channel) folded into a split dense GEMM.
    acc = jnp.dot(img_ref[0].astype(cdt), m0i_ref[...], preferred_element_type=f32)
    acc = acc + jnp.dot(cond_ref[0].astype(cdt), m0c_ref[...], preferred_element_type=f32)
    x = epilogue(acc, aff0_ref)                        # (NB, OHOW*16) f32

    # --- layers 1..3: one dense locally-connected GEMM each.
    for l in range(1, n_layers):
        m_ref = layer_refs[2 * (l - 1)]
        a_ref = layer_refs[2 * (l - 1) + 1]
        acc = jnp.dot(x.astype(cdt), m_ref[...], preferred_element_type=f32)
        x = epilogue(acc, a_ref)

    # --- adv head: (NB, 128*ds*ds) @ (128*ds*ds, 1) + bias, then sigmoid.
    logit = jnp.dot(x.astype(cdt), adv_w_ref[...], preferred_element_type=f32) + adv_b_ref[...]
    out_ref[0] = 1.0 / (1.0 + jnp.exp(-logit))         # (NB, 1), exact sigmoid


# ---------------------------------------------------------------------------
# Trace-time precomputation: dense locally-connected matrices, folded Embedding+l1,
# per-feature epilogue vectors, NCHW-flatten-aware adv column.
# ---------------------------------------------------------------------------
def _build_lc_matrix(w_oihw, H, W, in_channel_last):
    """Dense M (H*W*Cin, OH*OW*Cout) for Conv2d(k=3, s=2, p=1).

    Output flatten:   (oh*OW + ow)*Cout + co            (channel-last)
    Input flatten:    (h*W + w)*Cin + ci  if in_channel_last
                      ci*(H*W) + h*W + w  otherwise      (channel-first, layer 0)
    """
    Cout, Cin, KH, KW = w_oihw.shape
    OH = (H + 2 - 3) // 2 + 1
    OW = (W + 2 - 3) // 2 + 1
    w = np.asarray(w_oihw, np.float32)
    M = np.zeros((H * W * Cin, OH * OW * Cout), np.float32)
    for oh in range(OH):
        for ow in range(OW):
            obase = (oh * OW + ow) * Cout
            for kh in range(KH):
                h = 2 * oh + kh - 1
                if h < 0 or h >= H:
                    continue
                for kw in range(KW):
                    ww = 2 * ow + kw - 1
                    if ww < 0 or ww >= W:
                        continue
                    for ci in range(Cin):
                        if in_channel_last:
                            iidx = (h * W + ww) * Cin + ci
                        else:
                            iidx = ci * (H * W) + (h * W + ww)
                        M[iidx, obase:obase + Cout] = w[:, ci, kh, kw]
    return M


def precompute_operands(params, img_size, channels, compute_dtype=COMPUTE_DTYPE):
    ops = {}
    HW = img_size * img_size

    # Fold Embedding + Linear: cond_table[k, :] = l1_w @ emb_table[k] + l1_b.
    emb = jnp.asarray(params["emb_table"], jnp.float32)            # (n_cls, n_cls)
    l1w = jnp.asarray(params["l1_weight"], jnp.float32)            # (HW, n_cls)
    l1b = jnp.asarray(params["l1_bias"], jnp.float32)              # (HW,)
    ops["cond_table"] = emb @ l1w.T + l1b[None, :]                 # (n_cls, HW) f32

    layers = []
    h = img_size
    cin = channels + 1
    for li, blk in enumerate(params["blocks"]):
        w_oihw = np.asarray(blk["weight"], np.float32)             # (Cout, Cin, 3, 3)
        cout = w_oihw.shape[0]
        oh = (h + 2 - 3) // 2 + 1                                  # Conv2d(k=3,s=2,p=1) out
        M = _build_lc_matrix(w_oihw, h, h, in_channel_last=(li > 0))

        bias_vec = np.tile(np.asarray(blk["bias"], np.float32), oh * oh)
        if blk["bn"] is not None:
            bn = blk["bn"]                                         # eval-mode BN -> affine
            scale = np.asarray(bn["gamma"], np.float32) / np.sqrt(
                np.asarray(bn["rvar"], np.float32) + bn["eps"])
            shift = np.asarray(bn["beta"], np.float32) - np.asarray(bn["rmean"], np.float32) * scale
        else:
            scale = np.ones((cout,), np.float32)
            shift = np.zeros((cout,), np.float32)
        scale_vec = np.tile(scale, oh * oh)
        shift_vec = np.tile(shift, oh * oh)
        aff = jnp.asarray(np.stack([bias_vec, scale_vec, shift_vec], axis=0), jnp.float32)

        if li == 0:
            # Channel-first input flatten -> rows [0, C*HW) are image, rest condition.
            layers.append({
                "m_img": jnp.asarray(M[:channels * h * h, :], compute_dtype),
                "m_cond": jnp.asarray(M[channels * h * h:, :], compute_dtype),
                "aff": aff,
            })
        else:
            layers.append({"m": jnp.asarray(M, compute_dtype), "aff": aff})
        h, cin = oh, cout
    ops["layers"] = layers

    dsds = h * h
    n_feat = cin  # 128
    # PyTorch flattens NCHW (index c*dsds + q); our last activation is (q*128 + c).
    adv_w = np.asarray(params["adv_weight"], np.float32).reshape(n_feat, dsds)   # [c, q]
    adv_col = adv_w.T.reshape(dsds * n_feat, 1)                                  # [q*128 + c]
    ops["adv_w"] = jnp.asarray(adv_col, compute_dtype)
    ops["adv_b"] = jnp.asarray(params["adv_bias"], jnp.float32).reshape(1, 1)
    return ops


# ---------------------------------------------------------------------------
# Forward pass (single pallas_call).
# ---------------------------------------------------------------------------
def _shared_spec(arr):
    nd = arr.ndim
    return pl.BlockSpec(tuple(arr.shape), lambda b, nd=nd: (0,) * nd)


def _choose_block(B):
    # Fill MXU sublanes (up to 8 rows) while keeping >=2 grid steps when possible so
    # both v7x TensorCores get work.
    if B >= 16:
        return 8
    if B >= 2:
        return max(1, B // 2)
    return 1


def discriminator_forward(ops, img_nchw, condition, img_size, channels,
                          compute_dtype=COMPUTE_DTYPE, block_b=None):
    B = img_nchw.shape[0]
    HW = img_size * img_size
    CHW = channels * HW

    # Tiny plain-JAX glue: data-dependent (Embedding+l1) row gather + NCHW flatten.
    cond_rows = ops["cond_table"][condition]                       # (B, HW) f32
    img_flat = img_nchw.reshape(B, CHW).astype(jnp.float32)        # (B, C*HW)

    if block_b is None:
        block_b = _choose_block(B)
    G = -(-B // block_b)
    Bp = G * block_b
    if Bp != B:
        pad = Bp - B
        img_flat = jnp.pad(img_flat, ((0, pad), (0, 0)))
        cond_rows = jnp.pad(cond_rows, ((0, pad), (0, 0)))

    img3 = img_flat.reshape(G, block_b, CHW)
    cond3 = cond_rows.reshape(G, block_b, HW)

    n_layers = len(ops["layers"])
    kernel = functools.partial(_disc_kernel, n_layers=n_layers, compute_dtype=compute_dtype)

    l0 = ops["layers"][0]
    inputs = [img3, cond3, l0["m_img"], l0["m_cond"], l0["aff"]]
    in_specs = [
        pl.BlockSpec((1, block_b, CHW), lambda b: (b, 0, 0)),
        pl.BlockSpec((1, block_b, HW), lambda b: (b, 0, 0)),
        _shared_spec(l0["m_img"]),
        _shared_spec(l0["m_cond"]),
        _shared_spec(l0["aff"]),
    ]
    for layer in ops["layers"][1:]:
        inputs.extend([layer["m"], layer["aff"]])
        in_specs.extend([_shared_spec(layer["m"]), _shared_spec(layer["aff"])])
    inputs.extend([ops["adv_w"], ops["adv_b"]])
    in_specs.extend([_shared_spec(ops["adv_w"]), _shared_spec(ops["adv_b"])])

    out = pl.pallas_call(
        kernel,
        out_shape=jax.ShapeDtypeStruct((G, block_b, 1), jnp.float32),
        grid=(G,),
        in_specs=in_specs,
        out_specs=pl.BlockSpec((1, block_b, 1), lambda b: (b, 0, 0)),
        compiler_params=pltpu.CompilerParams(dimension_semantics=("parallel",)),
    )(*inputs)
    return out.reshape(Bp, 1)[:B]


# ---------------------------------------------------------------------------
# Pure-JAX (f32) reference of the PyTorch module forward, for tolerance checking.
# ---------------------------------------------------------------------------
def reference_forward(params, img, condition, img_size, channels):
    B = img.shape[0]
    emb = params["emb_table"][condition]                               # (B, n_cls)
    cond = emb @ params["l1_weight"].T + params["l1_bias"]             # (B, HW)
    cond = cond.reshape(B, 1, img_size, img_size)
    x = jnp.concatenate([img, cond], axis=1)
    for blk in params["blocks"]:
        x = jax.lax.conv_general_dilated(
            x, blk["weight"], window_strides=(2, 2), padding=((1, 1), (1, 1)),
            dimension_numbers=("NCHW", "OIHW", "NCHW"))
        x = x + blk["bias"][None, :, None, None]
        x = jnp.where(x >= 0, x, 0.2 * x)
        if blk["bn"] is not None:
            bn = blk["bn"]
            scale = bn["gamma"] / jnp.sqrt(bn["rvar"] + bn["eps"])
            shift = bn["beta"] - bn["rmean"] * scale
            x = x * scale[None, :, None, None] + shift[None, :, None, None]
    x = x.reshape(B, -1)
    logit = x @ params["adv_weight"].T + params["adv_bias"]
    return jax.nn.sigmoid(logit)


# ---------------------------------------------------------------------------
# Deterministic synthetic parameters (PyTorch layouts; shapes from __init__).
# ---------------------------------------------------------------------------
def init_params(key, n_classes, channels, img_size):
    ks = jax.random.split(key, 16)

    def nrm(k, shape, s=0.1):
        return (s * jax.random.normal(k, shape)).astype(jnp.float32)

    HW = img_size * img_size
    p = {}
    p["emb_table"] = nrm(ks[0], (n_classes, n_classes), 1.0)       # Embedding(n_cls, n_cls)
    p["l1_weight"] = nrm(ks[1], (HW, n_classes))                   # Linear(n_cls, img_size**2)
    p["l1_bias"] = nrm(ks[2], (HW,))

    chans = [channels + 1, 16, 32, 64, 128]
    has_bn = [False, True, True, True]
    blocks = []
    for li, (cin, cout, bn) in enumerate(zip(chans[:-1], chans[1:], has_bn)):
        kw = jax.random.split(ks[3 + li], 6)
        blk = {"weight": nrm(kw[0], (cout, cin, 3, 3)),            # OIHW
               "bias": nrm(kw[1], (cout,)),
               "bn": None}
        if bn:
            blk["bn"] = {
                "gamma": 1.0 + nrm(kw[2], (cout,)),
                "beta": nrm(kw[3], (cout,)),
                "rmean": nrm(kw[4], (cout,)),
                "rvar": 1.0 + 0.1 * jnp.abs(jax.random.normal(kw[5], (cout,))).astype(jnp.float32),
                "eps": 0.8,   # nn.BatchNorm2d(out_filters, 0.8): 2nd positional arg is eps
            }
        blocks.append(blk)
    p["blocks"] = blocks

    ds = img_size // 2 ** 4
    p["adv_weight"] = nrm(ks[8], (1, 128 * ds * ds))
    p["adv_bias"] = nrm(ks[9], (1,))
    return p


# ---------------------------------------------------------------------------
if __name__ == "__main__":
    N_CLASSES, CHANNELS, IMG_SIZE, BATCH = 10, 1, 16, 2

    key = jax.random.PRNGKey(0)
    kp, ki, kc = jax.random.split(key, 3)

    params = init_params(kp, N_CLASSES, CHANNELS, IMG_SIZE)
    ops = precompute_operands(params, IMG_SIZE, CHANNELS)

    img = jax.random.normal(ki, (BATCH, CHANNELS, IMG_SIZE, IMG_SIZE), jnp.float32)
    condition = jax.random.randint(kc, (BATCH,), 0, N_CLASSES)

    fwd = jax.jit(functools.partial(discriminator_forward,
                                    img_size=IMG_SIZE, channels=CHANNELS))
    out = fwd(ops, img, condition)
    out = jax.block_until_ready(out)

    assert out.shape == (BATCH, 1)
    assert bool(jnp.all((out >= 0.0) & (out <= 1.0)))

    # Tolerance check vs f32 reference (bf16 MXU operands -> loose tolerance).
    ref = jax.block_until_ready(reference_forward(params, img, condition, IMG_SIZE, CHANNELS))
    max_err = float(jnp.max(jnp.abs(out - ref)))
    assert max_err < 5e-2, f"max abs error vs reference too large: {max_err}"

    print("KERNEL_OK")
</pallas_src>

<mosaic_0001>
module attributes {stable_mosaic.version = 11 : i64} {
  func.func @_disc_kernel(%arg0: i32, %arg1: memref<1x1x256xf32, #tpu.memory_space<vmem>>, %arg2: memref<1x1x256xf32, #tpu.memory_space<vmem>>, %arg3: memref<256x1024xbf16, #tpu.memory_space<vmem>>, %arg4: memref<256x1024xbf16, #tpu.memory_space<vmem>>, %arg5: memref<3x1024xf32, #tpu.memory_space<vmem>>, %arg6: memref<1024x512xbf16, #tpu.memory_space<vmem>>, %arg7: memref<3x512xf32, #tpu.memory_space<vmem>>, %arg8: memref<512x256xbf16, #tpu.memory_space<vmem>>, %arg9: memref<3x256xf32, #tpu.memory_space<vmem>>, %arg10: memref<256x128xbf16, #tpu.memory_space<vmem>>, %arg11: memref<3x128xf32, #tpu.memory_space<vmem>>, %arg12: memref<128x1xbf16, #tpu.memory_space<vmem>>, %arg13: memref<1x1xf32, #tpu.memory_space<vmem>>, %arg14: memref<1x1x1xf32, #tpu.memory_space<vmem>>) attributes {dimension_semantics = [#tpu.dimension_semantics<parallel>], iteration_bounds = array<i64: 2>, scalar_prefetch = 0 : i64, scratch_operands = 0 : i64, tpu.core_type = #tpu.core_type<tc>, window_params = [{transform_indices = @transform_0, window_bounds = array<i64: 1, 1, 256>}, {transform_indices = @transform_1, window_bounds = array<i64: 1, 1, 256>}, {pipeline_mode = #tpu.pipeline_mode<synchronous>, transform_indices = @transform_2, window_bounds = array<i64: 256, 1024>}, {pipeline_mode = #tpu.pipeline_mode<synchronous>, transform_indices = @transform_3, window_bounds = array<i64: 256, 1024>}, {pipeline_mode = #tpu.pipeline_mode<synchronous>, transform_indices = @transform_4, window_bounds = array<i64: 3, 1024>}, {pipeline_mode = #tpu.pipeline_mode<synchronous>, transform_indices = @transform_5, window_bounds = array<i64: 1024, 512>}, {pipeline_mode = #tpu.pipeline_mode<synchronous>, transform_indices = @transform_6, window_bounds = array<i64: 3, 512>}, {pipeline_mode = #tpu.pipeline_mode<synchronous>, transform_indices = @transform_7, window_bounds = array<i64: 512, 256>}, {pipeline_mode = #tpu.pipeline_mode<synchronous>, transform_indices = @transform_8, window_bounds = array<i64: 3, 256>}, {pipeline_mode = #tpu.pipeline_mode<synchronous>, transform_indices = @transform_9, window_bounds = array<i64: 256, 128>}, {pipeline_mode = #tpu.pipeline_mode<synchronous>, transform_indices = @transform_10, window_bounds = array<i64: 3, 128>}, {pipeline_mode = #tpu.pipeline_mode<synchronous>, transform_indices = @transform_11, window_bounds = array<i64: 128, 1>}, {pipeline_mode = #tpu.pipeline_mode<synchronous>, transform_indices = @transform_12, window_bounds = array<i64: 1, 1>}, {transform_indices = @transform_13, window_bounds = array<i64: 1, 1, 1>}]} {
    %c0 = arith.constant 0 : index
    %c0_0 = arith.constant 0 : index
    %c0_1 = arith.constant 0 : index
    %0 = vector.load %arg1[%c0, %c0_0, %c0_1] : memref<1x1x256xf32, #tpu.memory_space<vmem>>, vector<1x1x256xf32>
    %1 = vector.shape_cast %0 : vector<1x1x256xf32> to vector<1x256xf32>
    %2 = arith.truncf %1 : vector<1x256xf32> to vector<1x256xbf16>
    %c0_2 = arith.constant 0 : index
    %c0_3 = arith.constant 0 : index
    %3 = vector.load %arg3[%c0_2, %c0_3] : memref<256x1024xbf16, #tpu.memory_space<vmem>>, vector<256x1024xbf16>
    %cst = arith.constant dense<0.000000e+00> : vector<1x1024xf32>
    %4 = tpu.matmul %2, %3, %cst {dimension_numbers = #tpu.dot_dimension_numbers<[1], [0], [0], [1], [0, 0, 1, 1], [], []>} : vector<1x256xbf16>, vector<256x1024xbf16>, vector<1x1024xf32> -> vector<1x1024xf32>
    %c0_4 = arith.constant 0 : index
    %c0_5 = arith.constant 0 : index
    %c0_6 = arith.constant 0 : index
    %5 = vector.load %arg2[%c0_4, %c0_5, %c0_6] : memref<1x1x256xf32, #tpu.memory_space<vmem>>, vector<1x1x256xf32>
    %6 = vector.shape_cast %5 : vector<1x1x256xf32> to vector<1x256xf32>
    %7 = arith.truncf %6 : vector<1x256xf32> to vector<1x256xbf16>
    %c0_7 = arith.constant 0 : index
    %c0_8 = arith.constant 0 : index
    %8 = vector.load %arg4[%c0_7, %c0_8] : memref<256x1024xbf16, #tpu.memory_space<vmem>>, vector<256x1024xbf16>
    %cst_9 = arith.constant dense<0.000000e+00> : vector<1x1024xf32>
    %9 = tpu.matmul %7, %8, %cst_9 {dimension_numbers = #tpu.dot_dimension_numbers<[1], [0], [0], [1], [0, 0, 1, 1], [], []>} : vector<1x256xbf16>, vector<256x1024xbf16>, vector<1x1024xf32> -> vector<1x1024xf32>
    %10 = arith.addf %4, %9 : vector<1x1024xf32>
    %c0_10 = arith.constant 0 : index
    %c0_11 = arith.constant 0 : index
    %11 = vector.load %arg5[%c0_10, %c0_11] : memref<3x1024xf32, #tpu.memory_space<vmem>>, vector<1x1024xf32>
    %12 = arith.addf %10, %11 : vector<1x1024xf32>
    %cst_12 = arith.constant 0.000000e+00 : f32
    %13 = vector.broadcast %cst_12 : f32 to vector<1x1024xf32>
    %14 = arith.cmpf oge, %12, %13 : vector<1x1024xf32>
    %cst_13 = arith.constant 2.000000e-01 : f32
    %15 = vector.broadcast %cst_13 : f32 to vector<1x1024xf32>
    %16 = arith.mulf %15, %12 : vector<1x1024xf32>
    %17 = arith.select %14, %12, %16 : vector<1x1024xi1>, vector<1x1024xf32>
    %c1 = arith.constant 1 : index
    %c0_14 = arith.constant 0 : index
    %18 = vector.load %arg5[%c1, %c0_14] : memref<3x1024xf32, #tpu.memory_space<vmem>>, vector<1x1024xf32>
    %19 = arith.mulf %17, %18 : vector<1x1024xf32>
    %c2 = arith.constant 2 : index
    %c0_15 = arith.constant 0 : index
    %20 = vector.load %arg5[%c2, %c0_15] : memref<3x1024xf32, #tpu.memory_space<vmem>>, vector<1x1024xf32>
    %21 = arith.addf %19, %20 : vector<1x1024xf32>
    %22 = arith.truncf %21 : vector<1x1024xf32> to vector<1x1024xbf16>
    %c0_16 = arith.constant 0 : index
    %c0_17 = arith.constant 0 : index
    %23 = vector.load %arg6[%c0_16, %c0_17] : memref<1024x512xbf16, #tpu.memory_space<vmem>>, vector<1024x512xbf16>
    %cst_18 = arith.constant dense<0.000000e+00> : vector<1x512xf32>
    %24 = tpu.matmul %22, %23, %cst_18 {dimension_numbers = #tpu.dot_dimension_numbers<[1], [0], [0], [1], [0, 0, 1, 1], [], []>} : vector<1x1024xbf16>, vector<1024x512xbf16>, vector<1x512xf32> -> vector<1x512xf32>
    %c0_19 = arith.constant 0 : index
    %c0_20 = arith.constant 0 : index
    %25 = vector.load %arg7[%c0_19, %c0_20] : memref<3x512xf32, #tpu.memory_space<vmem>>, vector<1x512xf32>
    %26 = arith.addf %24, %25 : vector<1x512xf32>
    %cst_21 = arith.constant 0.000000e+00 : f32
    %27 = vector.broadcast %cst_21 : f32 to vector<1x512xf32>
    %28 = arith.cmpf oge, %26, %27 : vector<1x512xf32>
    %cst_22 = arith.constant 2.000000e-01 : f32
    %29 = vector.broadcast %cst_22 : f32 to vector<1x512xf32>
    %30 = arith.mulf %29, %26 : vector<1x512xf32>
    %31 = arith.select %28, %26, %30 : vector<1x512xi1>, vector<1x512xf32>
    %c1_23 = arith.constant 1 : index
    %c0_24 = arith.constant 0 : index
    %32 = vector.load %arg7[%c1_23, %c0_24] : memref<3x512xf32, #tpu.memory_space<vmem>>, vector<1x512xf32>
    %33 = arith.mulf %31, %32 : vector<1x512xf32>
    %c2_25 = arith.constant 2 : index
    %c0_26 = arith.constant 0 : index
    %34 = vector.load %arg7[%c2_25, %c0_26] : memref<3x512xf32, #tpu.memory_space<vmem>>, vector<1x512xf32>
    %35 = arith.addf %33, %34 : vector<1x512xf32>
    %36 = arith.truncf %35 : vector<1x512xf32> to vector<1x512xbf16>
    %c0_27 = arith.constant 0 : index
    %c0_28 = arith.constant 0 : index
    %37 = vector.load %arg8[%c0_27, %c0_28] : memref<512x256xbf16, #tpu.memory_space<vmem>>, vector<512x256xbf16>
    %cst_29 = arith.constant dense<0.000000e+00> : vector<1x256xf32>
    %38 = tpu.matmul %36, %37, %cst_29 {dimension_numbers = #tpu.dot_dimension_numbers<[1], [0], [0], [1], [0, 0, 1, 1], [], []>} : vector<1x512xbf16>, vector<512x256xbf16>, vector<1x256xf32> -> vector<1x256xf32>
    %c0_30 = arith.constant 0 : index
    %c0_31 = arith.constant 0 : index
    %39 = vector.load %arg9[%c0_30, %c0_31] : memref<3x256xf32, #tpu.memory_space<vmem>>, vector<1x256xf32>
    %40 = arith.addf %38, %39 : vector<1x256xf32>
    %cst_32 = arith.constant 0.000000e+00 : f32
    %41 = vector.broadcast %cst_32 : f32 to vector<1x256xf32>
    %42 = arith.cmpf oge, %40, %41 : vector<1x256xf32>
    %cst_33 = arith.constant 2.000000e-01 : f32
    %43 = vector.broadcast %cst_33 : f32 to vector<1x256xf32>
    %44 = arith.mulf %43, %40 : vector<1x256xf32>
    %45 = arith.select %42, %40, %44 : vector<1x256xi1>, vector<1x256xf32>
    %c1_34 = arith.constant 1 : index
    %c0_35 = arith.constant 0 : index
    %46 = vector.load %arg9[%c1_34, %c0_35] : memref<3x256xf32, #tpu.memory_space<vmem>>, vector<1x256xf32>
    %47 = arith.mulf %45, %46 : vector<1x256xf32>
    %c2_36 = arith.constant 2 : index
    %c0_37 = arith.constant 0 : index
    %48 = vector.load %arg9[%c2_36, %c0_37] : memref<3x256xf32, #tpu.memory_space<vmem>>, vector<1x256xf32>
    %49 = arith.addf %47, %48 : vector<1x256xf32>
    %50 = arith.truncf %49 : vector<1x256xf32> to vector<1x256xbf16>
    %c0_38 = arith.constant 0 : index
    %c0_39 = arith.constant 0 : index
    %51 = vector.load %arg10[%c0_38, %c0_39] : memref<256x128xbf16, #tpu.memory_space<vmem>>, vector<256x128xbf16>
    %cst_40 = arith.constant dense<0.000000e+00> : vector<1x128xf32>
    %52 = tpu.matmul %50, %51, %cst_40 {dimension_numbers = #tpu.dot_dimension_numbers<[1], [0], [0], [1], [0, 0, 1, 1], [], []>} : vector<1x256xbf16>, vector<256x128xbf16>, vector<1x128xf32> -> vector<1x128xf32>
    %c0_41 = arith.constant 0 : index
    %c0_42 = arith.constant 0 : index
    %53 = vector.load %arg11[%c0_41, %c0_42] : memref<3x128xf32, #tpu.memory_space<vmem>>, vector<1x128xf32>
    %54 = arith.addf %52, %53 : vector<1x128xf32>
    %cst_43 = arith.constant 0.000000e+00 : f32
    %55 = vector.broadcast %cst_43 : f32 to vector<1x128xf32>
    %56 = arith.cmpf oge, %54, %55 : vector<1x128xf32>
    %cst_44 = arith.constant 2.000000e-01 : f32
    %57 = vector.broadcast %cst_44 : f32 to vector<1x128xf32>
    %58 = arith.mulf %57, %54 : vector<1x128xf32>
    %59 = arith.select %56, %54, %58 : vector<1x128xi1>, vector<1x128xf32>
    %c1_45 = arith.constant 1 : index
    %c0_46 = arith.constant 0 : index
    %60 = vector.load %arg11[%c1_45, %c0_46] : memref<3x128xf32, #tpu.memory_space<vmem>>, vector<1x128xf32>
    %61 = arith.mulf %59, %60 : vector<1x128xf32>
    %c2_47 = arith.constant 2 : index
    %c0_48 = arith.constant 0 : index
    %62 = vector.load %arg11[%c2_47, %c0_48] : memref<3x128xf32, #tpu.memory_space<vmem>>, vector<1x128xf32>
    %63 = arith.addf %61, %62 : vector<1x128xf32>
    %64 = arith.truncf %63 : vector<1x128xf32> to vector<1x128xbf16>
    %c0_49 = arith.constant 0 : index
    %c0_50 = arith.constant 0 : index
    %65 = vector.load %arg12[%c0_49, %c0_50] : memref<128x1xbf16, #tpu.memory_space<vmem>>, vector<128x1xbf16>
    %cst_51 = arith.constant dense<0.000000e+00> : vector<1x1xf32>
    %66 = tpu.matmul %64, %65, %cst_51 {dimension_numbers = #tpu.dot_dimension_numbers<[1], [0], [0], [1], [0, 0, 1, 1], [], []>} : vector<1x128xbf16>, vector<128x1xbf16>, vector<1x1xf32> -> vector<1x1xf32>
    %c0_52 = arith.constant 0 : index
    %c0_53 = arith.constant 0 : index
    %67 = vector.load %arg13[%c0_52, %c0_53] : memref<1x1xf32, #tpu.memory_space<vmem>>, vector<1x1xf32>
    %68 = arith.addf %66, %67 : vector<1x1xf32>
    %cst_54 = arith.constant 0.000000e+00 : f32
    %69 = vector.broadcast %cst_54 : f32 to vector<1x1xf32>
    %70 = arith.subf %69, %68 : vector<1x1xf32>
    %71 = math.exp %70 : vector<1x1xf32>
    %cst_55 = arith.constant 1.000000e+00 : f32
    %72 = vector.broadcast %cst_55 : f32 to vector<1x1xf32>
    %73 = arith.addf %72, %71 : vector<1x1xf32>
    %cst_56 = arith.constant 1.000000e+00 : f32
    %74 = vector.broadcast %cst_56 : f32 to vector<1x1xf32>
    %75 = arith.divf %74, %73 : vector<1x1xf32>
    %c0_57 = arith.constant 0 : index
    %c0_58 = arith.constant 0 : index
    %c0_59 = arith.constant 0 : index
    %76 = vector.load %arg14[%c0_57, %c0_58, %c0_59] : memref<1x1x1xf32, #tpu.memory_space<vmem>>, vector<1x1x1xf32>
    %77 = vector.shape_cast %76 : vector<1x1x1xf32> to vector<1x1xf32>
    %78 = vector.shape_cast %75 : vector<1x1xf32> to vector<1x1x1xf32>
    tpu.vector_store %arg14[%c0_57, %c0_58, %c0_59], %78 {strides = array<i32>} : memref<1x1x1xf32, #tpu.memory_space<vmem>>, vector<1x1x1xf32>,
    return
  }
  func.func @transform_0(%arg0: i32) -> (i32, i32, i32) {
    %c0_i32 = arith.constant 0 : i32
    %c0_i32_0 = arith.constant 0 : i32
    %c0_i32_1 = arith.constant 0 : i32
    return %arg0, %c0_i32, %c0_i32_0 : i32, i32, i32
  }
  func.func @transform_1(%arg0: i32) -> (i32, i32, i32) {
    %c0_i32 = arith.constant 0 : i32
    %c0_i32_0 = arith.constant 0 : i32
    %c0_i32_1 = arith.constant 0 : i32
    return %arg0, %c0_i32, %c0_i32_0 : i32, i32, i32
  }
  func.func @transform_2(%arg0: i32) -> (i32, i32) {
    %c0_i32 = arith.constant 0 : i32
    %c0_i32_0 = arith.constant 0 : i32
    %c0_i32_1 = arith.constant 0 : i32
    return %c0_i32, %c0_i32_0 : i32, i32
  }
  func.func @transform_3(%arg0: i32) -> (i32, i32) {
    %c0_i32 = arith.constant 0 : i32
    %c0_i32_0 = arith.constant 0 : i32
    %c0_i32_1 = arith.constant 0 : i32
    return %c0_i32, %c0_i32_0 : i32, i32
  }
  func.func @transform_4(%arg0: i32) -> (i32, i32) {
    %c0_i32 = arith.constant 0 : i32
    %c0_i32_0 = arith.constant 0 : i32
    %c0_i32_1 = arith.constant 0 : i32
    return %c0_i32, %c0_i32_0 : i32, i32
  }
  func.func @transform_5(%arg0: i32) -> (i32, i32) {
    %c0_i32 = arith.constant 0 : i32
    %c0_i32_0 = arith.constant 0 : i32
    %c0_i32_1 = arith.constant 0 : i32
    return %c0_i32, %c0_i32_0 : i32, i32
  }
  func.func @transform_6(%arg0: i32) -> (i32, i32) {
    %c0_i32 = arith.constant 0 : i32
    %c0_i32_0 = arith.constant 0 : i32
    %c0_i32_1 = arith.constant 0 : i32
    return %c0_i32, %c0_i32_0 : i32, i32
  }
  func.func @transform_7(%arg0: i32) -> (i32, i32) {
    %c0_i32 = arith.constant 0 : i32
    %c0_i32_0 = arith.constant 0 : i32
    %c0_i32_1 = arith.constant 0 : i32
    return %c0_i32, %c0_i32_0 : i32, i32
  }
  func.func @transform_8(%arg0: i32) -> (i32, i32) {
    %c0_i32 = arith.constant 0 : i32
    %c0_i32_0 = arith.constant 0 : i32
    %c0_i32_1 = arith.constant 0 : i32
    return %c0_i32, %c0_i32_0 : i32, i32
  }
  func.func @transform_9(%arg0: i32) -> (i32, i32) {
    %c0_i32 = arith.constant 0 : i32
    %c0_i32_0 = arith.constant 0 : i32
    %c0_i32_1 = arith.constant 0 : i32
    return %c0_i32, %c0_i32_0 : i32, i32
  }
  func.func @transform_10(%arg0: i32) -> (i32, i32) {
    %c0_i32 = arith.constant 0 : i32
    %c0_i32_0 = arith.constant 0 : i32
    %c0_i32_1 = arith.constant 0 : i32
    return %c0_i32, %c0_i32_0 : i32, i32
  }
  func.func @transform_11(%arg0: i32) -> (i32, i32) {
    %c0_i32 = arith.constant 0 : i32
    %c0_i32_0 = arith.constant 0 : i32
    %c0_i32_1 = arith.constant 0 : i32
    return %c0_i32, %c0_i32_0 : i32, i32
  }
  func.func @transform_12(%arg0: i32) -> (i32, i32) {
    %c0_i32 = arith.constant 0 : i32
    %c0_i32_0 = arith.constant 0 : i32
    %c0_i32_1 = arith.constant 0 : i32
    return %c0_i32, %c0_i32_0 : i32, i32
  }
  func.func @transform_13(%arg0: i32) -> (i32, i32, i32) {
    %c0_i32 = arith.constant 0 : i32
    %c0_i32_0 = arith.constant 0 : i32
    %c0_i32_1 = arith.constant 0 : i32
    return %arg0, %c0_i32, %c0_i32_0 : i32, i32, i32
  }
}

</mosaic_0001>

<llo_original>
// kernel: discriminator_forward.1
$region0: #{discriminator_forward.1}
  #allocation0 [shape = 'u32[]', space=smem, size = 0x4, offset = 0x4, fixed_abs, tag = 'smem constant byte address 0x4 - core index']
  #allocation1 [shape = 'u32[144,128]{1,0:T(1,128)}', space=vmem, size = 0x12000, scoped, tag = 'internal scratch']
  #allocation2 [shape = 'f32[1,1]{1,0:T(1,128)S(1)}', space=vmem, size = 0x200, scoped, tag = 'scoped memory for discriminator_forward.1']
  %s0 = inlined_call_operand.vmem [shape: f32[2,1,256], index: 0, kind: input, shape index: {}]
  %s1 = inlined_call_operand.vmem [shape: f32[2,1,256], index: 1, kind: input, shape index: {}]
  %s2 = inlined_call_operand.hbm [shape: bf16[256,1024], index: 2, kind: input, shape index: {}]
  %s3 = inlined_call_operand.hbm [shape: bf16[256,1024], index: 3, kind: input, shape index: {}]
  %s4 = inlined_call_operand.vmem [shape: f32[3,1024], index: 4, kind: input, shape index: {}]
  %s5 = inlined_call_operand.hbm [shape: bf16[1024,512], index: 5, kind: input, shape index: {}]
  %s6 = inlined_call_operand.hbm [shape: f32[3,512], index: 6, kind: input, shape index: {}]
  %s7 = inlined_call_operand.hbm [shape: bf16[512,256], index: 7, kind: input, shape index: {}]
  %s8 = inlined_call_operand.vmem [shape: f32[3,256], index: 8, kind: input, shape index: {}]
  %s9 = inlined_call_operand.vmem [shape: bf16[256,128], index: 9, kind: input, shape index: {}]
  %s10 = inlined_call_operand.vmem [shape: f32[3,128], index: 10, kind: input, shape index: {}]
  %s11 = inlined_call_operand.vmem [shape: bf16[128,1], index: 11, kind: input, shape index: {}]
  %s12 = inlined_call_operand.<no memory space> [shape: f32[1,1], index: 12, kind: input, shape index: {}]
  %s13 = inlined_call_operand.vmem [shape: f32[2,1,1], index: 13, kind: output, shape index: {}]
  %s14 = sld [smem:[#allocation0]]
  $region105: #{discriminator_forward.1} parent=0
    _
  %s16 = ssub.s32 1, %s14
  %s17 = scalar_select 0, %s16, %s14
  %v18 = vstv %s12
  %19 = vst [vmem:[#allocation2] sm:$0x1] %v18
  $region1: #{discriminator_forward.1} parent=0
    #allocation3 [shape = 'u8[524288]{0}', space=vmem, size = 0x80000, scoped, tag = 'input window, operand 2, single buffered']
    #allocation4 [shape = 's32[2]{0}', space=sflag, size = 0x8, scoped, tag = 'scoped memory for discriminator_forward.1']
    #allocation5 [shape = 'u8[524288]{0}', space=vmem, size = 0x80000, scoped, tag = 'input window, operand 3, single buffered']
    #allocation6 [shape = 's32[1]{0}', space=sflag, size = 0x4, scoped, tag = 'scoped memory for discriminator_forward.1']
    #allocation7 [shape = 'u8[1048576]{0}', space=vmem, size = 0x100000, scoped, tag = 'input window, operand 5, single buffered']
    #allocation8 [shape = 'u8[8192]{0}', space=vmem, size = 0x2000, scoped, tag = 'input window, operand 6, single buffered']
    #allocation9 [shape = 's32[1]{0}', space=sflag, size = 0x4, scoped, tag = 'scoped memory for discriminator_forward.1']
    #allocation10 [shape = 'u8[262144]{0}', space=vmem, size = 0x40000, scoped, tag = 'input window, operand 7, single buffered']
    %20 = vsyncpa [#allocation4], 0
    %21 = vsyncpa [#allocation6], 0
    %22 = vsyncpa [#allocation9], 0
    loop: start=0, step=1, limit=4
    $region2: #{discriminator_forward.1} parent=1 // loop_pre_header
      _
    $region3: #{discriminator_forward.1} parent=1 // loop_header
      %s24 = sphi 0, %s28
      %p25 = scmp.ge.s32.totalorder %s24, 4
      %s34 = sphi 0, %s36
      %s37 = sphi 0, %s34
      %s38 = sphi 0, %s37
      %s54 = sphi 0, %s38
      %s60 = sphi 0, %s62
      %s63 = sphi 0, %s60
      %s64 = sphi 0, %s63
      %s80 = sphi 0, %s64
      %s84 = sphi 0, %s84
      %s86 = sphi 0, %s84
      %s87 = sphi 0, %s86
      %s101 = sphi 0, %s87
      %s105 = sphi 0, %s105
      %s107 = sphi 0, %s105
      %s108 = sphi 0, %s107
      %s122 = sphi 0, %s108
      %s126 = sphi 0, %s126
      %s128 = sphi 0, %s126
      %s129 = sphi 0, %s128
      %s143 = sphi 0, %s129
      %s147 = sphi 0, %s147
      %s149 = sphi 0, %s147
      %s150 = sphi 0, %s149
      %s164 = sphi 0, %s150
      %s168 = sphi 0, %s168
      %s170 = sphi 0, %s168
      %s171 = sphi 0, %s170
      %s185 = sphi 0, %s171
      %s189 = sphi 0, %s189
      %s191 = sphi 0, %s189
      %s192 = sphi 0, %s191
      %s206 = sphi 0, %s192
      %s210 = sphi 0, %s210
      %s212 = sphi 0, %s210
      %s213 = sphi 0, %s212
      %s227 = sphi 0, %s213
      %s231 = sphi 0, %s231
      %s233 = sphi 0, %s231
      %s234 = sphi 0, %s233
      %s248 = sphi 0, %s234
      %s252 = sphi 0, %s252
      %s254 = sphi 0, %s252
      %s255 = sphi 0, %s254
      %s269 = sphi 0, %s255
      %s273 = sphi 0, %s273
      %s275 = sphi 0, %s273
      %s276 = sphi 0, %s275
      %s290 = sphi 0, %s276
      %s294 = sphi 0, %s294
      %s296 = sphi 0, %s294
      %s297 = sphi 0, %s296
      %s311 = sphi 0, %s297
      %s317 = sphi 0, %s319
      %s320 = sphi 0, %s317
      %s321 = sphi 0, %s320
      %s337 = sphi 0, %s321
    $region4: #{discriminator_forward.1} parent=1 // loop_header_branch
      %27 = sbr.rel (%p25) target = $region8
    $region5: #{discriminator_forward.1} parent=1 // loop_body
      %s29 = ssub.s32 %s24, 1
      %s30 = ssub.s32 %s24, 2
      %s31 = sadd.s32 %s24, 1
      %s32 = ssub.s32 %s24, %s31
      %p33 = scmp.eq.s32.totalorder %s32, 0
      %s35 = sadd.s32 %s34, 1
      %s36 = scalar_select %p33, %s34, %s35
      %p39 = pneg %p33
      %p40 = scmp.eq.s32.totalorder %s24, 1
      %p41 = por %p39, %p40
      %p42 = scmp.ne.s32.totalorder %s34, %s37
      %p43 = scmp.eq.s32.totalorder %s24, 0
      %p44 = por %p42, %p43
      %p45 = scmp.ne.s32.totalorder %s34, %s37
      %p46 = scmp.eq.s32.totalorder %s29, 1
      %p47 = por %p45, %p46
      %p48 = scmp.ne.s32.totalorder %s37, %s38
      %p49 = scmp.eq.s32.totalorder %s29, 0
      %p50 = por %p48, %p49
      %p51 = scmp.ne.s32.totalorder %s37, %s38
      %p52 = scmp.eq.s32.totalorder %s30, 1
      %p53 = por %p51, %p52
      %p55 = scmp.ne.s32.totalorder %s38, %s54
      %p56 = scmp.eq.s32.totalorder %s30, 0
      %p57 = por %p55, %p56
      %s58 = ssub.s32 %s24, %s31
      %p59 = scmp.eq.s32.totalorder %s58, 0
      %s61 = sadd.s32 %s60, 1
      %s62 = scalar_select %p59, %s60, %s61
      %p65 = pneg %p59
      %p66 = scmp.eq.s32.totalorder %s24, 1
      %p67 = por %p65, %p66
      %p68 = scmp.ne.s32.totalorder %s60, %s63
      %p69 = scmp.eq.s32.totalorder %s24, 0
      %p70 = por %p68, %p69
      %p71 = scmp.ne.s32.totalorder %s60, %s63
      %p72 = scmp.eq.s32.totalorder %s29, 1
      %p73 = por %p71, %p72
      %p74 = scmp.ne.s32.totalorder %s63, %s64
      %p75 = scmp.eq.s32.totalorder %s29, 0
      %p76 = por %p74, %p75
      %p77 = scmp.ne.s32.totalorder %s63, %s64
      %p78 = scmp.eq.s32.totalorder %s30, 1
      %p79 = por %p77, %p78
      %p81 = scmp.ne.s32.totalorder %s64, %s80
      %p82 = scmp.eq.s32.totalorder %s30, 0
      %p83 = por %p81, %p82
      %s85 = sadd.s32 %s84, 1
      %p88 = scmp.eq.s32.totalorder %s24, 1
      %p89 = scmp.ne.s32.totalorder %s84, %s86
      %p90 = scmp.eq.s32.totalorder %s24, 0
      %p91 = por %p89, %p90
      %p92 = scmp.ne.s32.totalorder %s84, %s86
      %p93 = scmp.eq.s32.totalorder %s29, 1
      %p94 = por %p92, %p93
      %p95 = scmp.ne.s32.totalorder %s86, %s87
      %p96 = scmp.eq.s32.totalorder %s29, 0
      %p97 = por %p95, %p96
      %p98 = scmp.ne.s32.totalorder %s86, %s87
      %p99 = scmp.eq.s32.totalorder %s30, 1
      %p100 = por %p98, %p99
      %p102 = scmp.ne.s32.totalorder %s87, %s101
      %p103 = scmp.eq.s32.totalorder %s30, 0
      %p104 = por %p102, %p103
      %s106 = sadd.s32 %s105, 1
      %p109 = scmp.eq.s32.totalorder %s24, 1
      %p110 = scmp.ne.s32.totalorder %s105, %s107
      %p111 = scmp.eq.s32.totalorder %s24, 0
      %p112 = por %p110, %p111
      %p113 = scmp.ne.s32.totalorder %s105, %s107
      %p114 = scmp.eq.s32.totalorder %s29, 1
      %p115 = por %p113, %p114
      %p116 = scmp.ne.s32.totalorder %s107, %s108
      %p117 = scmp.eq.s32.totalorder %s29, 0
      %p118 = por %p116, %p117
      %p119 = scmp.ne.s32.totalorder %s107, %s108
      %p120 = scmp.eq.s32.totalorder %s30, 1
      %p121 = por %p119, %p120
      %p123 = scmp.ne.s32.totalorder %s108, %s122
      %p124 = scmp.eq.s32.totalorder %s30, 0
      %p125 = por %p123, %p124
      %s127 = sadd.s32 %s126, 1
      %p130 = scmp.eq.s32.totalorder %s24, 1
      %p131 = scmp.ne.s32.totalorder %s126, %s128
      %p132 = scmp.eq.s32.totalorder %s24, 0
      %p133 = por %p131, %p132
      %p134 = scmp.ne.s32.totalorder %s126, %s128
      %p135 = scmp.eq.s32.totalorder %s29, 1
      %p136 = por %p134, %p135
      %p137 = scmp.ne.s32.totalorder %s128, %s129
      %p138 = scmp.eq.s32.totalorder %s29, 0
      %p139 = por %p137, %p138
      %p140 = scmp.ne.s32.totalorder %s128, %s129
      %p141 = scmp.eq.s32.totalorder %s30, 1
      %p142 = por %p140, %p141
      %p144 = scmp.ne.s32.totalorder %s129, %s143
      %p145 = scmp.eq.s32.totalorder %s30, 0
      %p146 = por %p144, %p145
      %s148 = sadd.s32 %s147, 1
      %p151 = scmp.eq.s32.totalorder %s24, 1
      %p152 = scmp.ne.s32.totalorder %s147, %s149
      %p153 = scmp.eq.s32.totalorder %s24, 0
      %p154 = por %p152, %p153
      %p155 = scmp.ne.s32.totalorder %s147, %s149
      %p156 = scmp.eq.s32.totalorder %s29, 1
      %p157 = por %p155, %p156
      %p158 = scmp.ne.s32.totalorder %s149, %s150
      %p159 = scmp.eq.s32.totalorder %s29, 0
      %p160 = por %p158, %p159
      %p161 = scmp.ne.s32.totalorder %s149, %s150
      %p162 = scmp.eq.s32.totalorder %s30, 1
      %p163 = por %p161, %p162
      %p165 = scmp.ne.s32.totalorder %s150, %s164
      %p166 = scmp.eq.s32.totalorder %s30, 0
      %p167 = por %p165, %p166
      %s169 = sadd.s32 %s168, 1
      %p172 = scmp.eq.s32.totalorder %s24, 1
      %p173 = scmp.ne.s32.totalorder %s168, %s170
      %p174 = scmp.eq.s32.totalorder %s24, 0
      %p175 = por %p173, %p174
      %p176 = scmp.ne.s32.totalorder %s168, %s170
      %p177 = scmp.eq.s32.totalorder %s29, 1
      %p178 = por %p176, %p177
      %p179 = scmp.ne.s32.totalorder %s170, %s171
      %p180 = scmp.eq.s32.totalorder %s29, 0
      %p181 = por %p179, %p180
      %p182 = scmp.ne.s32.totalorder %s170, %s171
      %p183 = scmp.eq.s32.totalorder %s30, 1
      %p184 = por %p182, %p183
      %p186 = scmp.ne.s32.totalorder %s171, %s185
      %p187 = scmp.eq.s32.totalorder %s30, 0
      %p188 = por %p186, %p187
      %s190 = sadd.s32 %s189, 1
      %p193 = scmp.eq.s32.totalorder %s24, 1
      %p194 = scmp.ne.s32.totalorder %s189, %s191
      %p195 = scmp.eq.s32.totalorder %s24, 0
      %p196 = por %p194, %p195
      %p197 = scmp.ne.s32.totalorder %s189, %s191
      %p198 = scmp.eq.s32.totalorder %s29, 1
      %p199 = por %p197, %p198
      %p200 = scmp.ne.s32.totalorder %s191, %s192
      %p201 = scmp.eq.s32.totalorder %s29, 0
      %p202 = por %p200, %p201
      %p203 = scmp.ne.s32.totalorder %s191, %s192
      %p204 = scmp.eq.s32.totalorder %s30, 1
      %p205 = por %p203, %p204
      %p207 = scmp.ne.s32.totalorder %s192, %s206
      %p208 = scmp.eq.s32.totalorder %s30, 0
      %p209 = por %p207, %p208
      %s211 = sadd.s32 %s210, 1
      %p214 = scmp.eq.s32.totalorder %s24, 1
      %p215 = scmp.ne.s32.totalorder %s210, %s212
      %p216 = scmp.eq.s32.totalorder %s24, 0
      %p217 = por %p215, %p216
      %p218 = scmp.ne.s32.totalorder %s210, %s212
      %p219 = scmp.eq.s32.totalorder %s29, 1
      %p220 = por %p218, %p219
      %p221 = scmp.ne.s32.totalorder %s212, %s213
      %p222 = scmp.eq.s32.totalorder %s29, 0
      %p223 = por %p221, %p222
      %p224 = scmp.ne.s32.totalorder %s212, %s213
      %p225 = scmp.eq.s32.totalorder %s30, 1
      %p226 = por %p224, %p225
      %p228 = scmp.ne.s32.totalorder %s213, %s227
      %p229 = scmp.eq.s32.totalorder %s30, 0
      %p230 = por %p228, %p229
      %s232 = sadd.s32 %s231, 1
      %p235 = scmp.eq.s32.totalorder %s24, 1
      %p236 = scmp.ne.s32.totalorder %s231, %s233
      %p237 = scmp.eq.s32.totalorder %s24, 0
      %p238 = por %p236, %p237
      %p239 = scmp.ne.s32.totalorder %s231, %s233
      %p240 = scmp.eq.s32.totalorder %s29, 1
      %p241 = por %p239, %p240
      %p242 = scmp.ne.s32.totalorder %s233, %s234
      %p243 = scmp.eq.s32.totalorder %s29, 0
      %p244 = por %p242, %p243
      %p245 = scmp.ne.s32.totalorder %s233, %s234
      %p246 = scmp.eq.s32.totalorder %s30, 1
      %p247 = por %p245, %p246
      %p249 = scmp.ne.s32.totalorder %s234, %s248
      %p250 = scmp.eq.s32.totalorder %s30, 0
      %p251 = por %p249, %p250
      %s253 = sadd.s32 %s252, 1
      %p256 = scmp.eq.s32.totalorder %s24, 1
      %p257 = scmp.ne.s32.totalorder %s252, %s254
      %p258 = scmp.eq.s32.totalorder %s24, 0
      %p259 = por %p257, %p258
      %p260 = scmp.ne.s32.totalorder %s252, %s254
      %p261 = scmp.eq.s32.totalorder %s29, 1
      %p262 = por %p260, %p261
      %p263 = scmp.ne.s32.totalorder %s254, %s255
      %p264 = scmp.eq.s32.totalorder %s29, 0
      %p265 = por %p263, %p264
      %p266 = scmp.ne.s32.totalorder %s254, %s255
      %p267 = scmp.eq.s32.totalorder %s30, 1
      %p268 = por %p266, %p267
      %p270 = scmp.ne.s32.totalorder %s255, %s269
      %p271 = scmp.eq.s32.totalorder %s30, 0
      %p272 = por %p270, %p271
      %s274 = sadd.s32 %s273, 1
      %p277 = scmp.eq.s32.totalorder %s24, 1
      %p278 = scmp.ne.s32.totalorder %s273, %s275
      %p279 = scmp.eq.s32.totalorder %s24, 0
      %p280 = por %p278, %p279
      %p281 = scmp.ne.s32.totalorder %s273, %s275
      %p282 = scmp.eq.s32.totalorder %s29, 1
      %p283 = por %p281, %p282
      %p284 = scmp.ne.s32.totalorder %s275, %s276
      %p285 = scmp.eq.s32.totalorder %s29, 0
      %p286 = por %p284, %p285
      %p287 = scmp.ne.s32.totalorder %s275, %s276
      %p288 = scmp.eq.s32.totalorder %s30, 1
      %p289 = por %p287, %p288
      %p291 = scmp.ne.s32.totalorder %s276, %s290
      %p292 = scmp.eq.s32.totalorder %s30, 0
      %p293 = por %p291, %p292
      %s295 = sadd.s32 %s294, 1
      %p298 = scmp.eq.s32.totalorder %s24, 1
      %p299 = scmp.ne.s32.totalorder %s294, %s296
      %p300 = scmp.eq.s32.totalorder %s24, 0
      %p301 = por %p299, %p300
      %p302 = scmp.ne.s32.totalorder %s294, %s296
      %p303 = scmp.eq.s32.totalorder %s29, 1
      %p304 = por %p302, %p303
      %p305 = scmp.ne.s32.totalorder %s296, %s297
      %p306 = scmp.eq.s32.totalorder %s29, 0
      %p307 = por %p305, %p306
      %p308 = scmp.ne.s32.totalorder %s296, %s297
      %p309 = scmp.eq.s32.totalorder %s30, 1
      %p310 = por %p308, %p309
      %p312 = scmp.ne.s32.totalorder %s297, %s311
      %p313 = scmp.eq.s32.totalorder %s30, 0
      %p314 = por %p312, %p313
      %s315 = ssub.s32 %s24, %s31
      %p316 = scmp.eq.s32.totalorder %s315, 0
      %s318 = sadd.s32 %s317, 1
      %s319 = scalar_select %p316, %s317, %s318
      %p322 = pneg %p316
      %p323 = scmp.eq.s32.totalorder %s24, 1
      %p324 = por %p322, %p323
      %p325 = scmp.ne.s32.totalorder %s317, %s320
      %p326 = scmp.eq.s32.totalorder %s24, 0
      %p327 = por %p325, %p326
      %p328 = scmp.ne.s32.totalorder %s317, %s320
      %p329 = scmp.eq.s32.totalorder %s29, 1
      %p330 = por %p328, %p329
      %p331 = scmp.ne.s32.totalorder %s320, %s321
      %p332 = scmp.eq.s32.totalorder %s29, 0
      %p333 = por %p331, %p332
      %p334 = scmp.ne.s32.totalorder %s320, %s321
      %p335 = scmp.eq.s32.totalorder %s30, 1
      %p336 = por %p334, %p335
      %p338 = scmp.ne.s32.totalorder %s321, %s337
      %p339 = scmp.eq.s32.totalorder %s30, 0
      %p340 = por %p338, %p339
      %p341 = scmp.le.s32.totalorder 1, %s24
      %p342 = scmp.lt.s32.totalorder %s24, 3
      %p343 = pnand %p341, %p342
      %p344 = pneg %p343
      // Predicated region
      $region9: #{discriminator_forward.1} parent=5 // pred_check
        _
      $region10: #{discriminator_forward.1} parent=5 // pred_check_branch
        %346 = sbr.rel (%p343) target = $region12
      $region11: #{discriminator_forward.1} parent=5 // pred_region
        %s347 = ssub.s32 %s24, 1
        // Predicated region
        $region13: #{discriminator_forward.1} parent=11 // pred_check
          %p348 = pneg %p97
        $region14: #{discriminator_forward.1} parent=11 // pred_check_branch
          %350 = sbr.rel (%p348) target = $region16
        $region15: #{discriminator_forward.1} parent=11 // pred_region
          %s352 = ssub.s32 16384, 16384
          %353 = vsyncadd [#allocation4], %s352
          %s354 = sshll.u32 [#allocation3], 4
          %s355 = int_to_ptr.vmem [resolvable:$true] %s354
          %360 = dma.hbm_to_vmem [thread:$0]  %s2, 16384, %s355, [#allocation4], 512, 512, 32
        $region16: #{discriminator_forward.1} parent=11 // pred_fallthru
          _
        // Predicated region
        $region17: #{discriminator_forward.1} parent=11 // pred_check
          %p361 = pneg %p118
        $region18: #{discriminator_forward.1} parent=11 // pred_check_branch
          %363 = sbr.rel (%p361) target = $region20
        $region19: #{discriminator_forward.1} parent=11 // pred_region
          %s365 = ssub.s32 16384, 16384
          %366 = vsyncadd [#allocation6], %s365
          %s367 = sshll.u32 [#allocation5], 4
          %s368 = int_to_ptr.vmem [resolvable:$true] %s367
          %373 = dma.hbm_to_vmem [thread:$0]  %s3, 16384, %s368, [#allocation6], 512, 512, 32
        $region20: #{discriminator_forward.1} parent=11 // pred_fallthru
          _
        // Predicated region
        $region21: #{discriminator_forward.1} parent=11 // pred_check
          %p374 = pneg %p139
        $region22: #{discriminator_forward.1} parent=11 // pred_check_branch
          %376 = sbr.rel (%p374) target = $region24
        $region23: #{discriminator_forward.1} parent=11 // pred_region
          _
        $region24: #{discriminator_forward.1} parent=11 // pred_fallthru
          _
        // Predicated region
        $region25: #{discriminator_forward.1} parent=11 // pred_check
          %p377 = pneg %p160
        $region26: #{discriminator_forward.1} parent=11 // pred_check_branch
          %379 = sbr.rel (%p377) target = $region28
        $region27: #{discriminator_forward.1} parent=11 // pred_region
          %s381 = ssub.s32 32768, 32768
          %382 = vsyncadd [#allocation6], %s381
          %s383 = sshll.u32 [#allocation7], 4
          %s384 = int_to_ptr.vmem [resolvable:$true] %s383
          %389 = dma.hbm_to_vmem [thread:$0]  %s5, 32768, %s384, [#allocation6], 256, 256, 16
        $region28: #{discriminator_forward.1} parent=11 // pred_fallthru
          _
        // Predicated region
        $region29: #{discriminator_forward.1} parent=11 // pred_check
          %p390 = pneg %p181
        $region30: #{discriminator_forward.1} parent=11 // pred_check_branch
          %392 = sbr.rel (%p390) target = $region32
        $region31: #{discriminator_forward.1} parent=11 // pred_region
          %s394 = ssub.s32 256, 256
          %395 = vsyncadd [#allocation9], %s394
          %s397 = sshll.u32 [#allocation8], 4
          %s398 = int_to_ptr.vmem [resolvable:$true] %s397
          %400 = dma.hbm_to_vmem [thread:$0]  %s6, 256, %s398, [#allocation9]
        $region32: #{discriminator_forward.1} parent=11 // pred_fallthru
          _
        // Predicated region
        $region33: #{discriminator_forward.1} parent=11 // pred_check
          %p401 = pneg %p202
        $region34: #{discriminator_forward.1} parent=11 // pred_check_branch
          %403 = sbr.rel (%p401) target = $region36
        $region35: #{discriminator_forward.1} parent=11 // pred_region
          %s405 = ssub.s32 8192, 8192
          %406 = vsyncadd [#allocation9], %s405
          %s407 = sshll.u32 [#allocation10], 4
          %s408 = int_to_ptr.vmem [resolvable:$true] %s407
          %413 = dma.hbm_to_vmem [thread:$0]  %s7, 8192, %s408, [#allocation9], 128, 128, 8
        $region36: #{discriminator_forward.1} parent=11 // pred_fallthru
          _
        // Predicated region
        $region37: #{discriminator_forward.1} parent=11 // pred_check
          %p414 = pneg %p223
        $region38: #{discriminator_forward.1} parent=11 // pred_check_branch
          %416 = sbr.rel (%p414) target = $region40
        $region39: #{discriminator_forward.1} parent=11 // pred_region
          _
        $region40: #{discriminator_forward.1} parent=11 // pred_fallthru
          _
        // Predicated region
        $region41: #{discriminator_forward.1} parent=11 // pred_check
          %p417 = pneg %p244
        $region42: #{discriminator_forward.1} parent=11 // pred_check_branch
          %419 = sbr.rel (%p417) target = $region44
        $region43: #{discriminator_forward.1} parent=11 // pred_region
          _
        $region44: #{discriminator_forward.1} parent=11 // pred_fallthru
          _
        // Predicated region
        $region45: #{discriminator_forward.1} parent=11 // pred_check
          %p420 = pneg %p265
        $region46: #{discriminator_forward.1} parent=11 // pred_check_branch
          %422 = sbr.rel (%p420) target = $region48
        $region47: #{discriminator_forward.1} parent=11 // pred_region
          _
        $region48: #{discriminator_forward.1} parent=11 // pred_fallthru
          _
        // Predicated region
        $region49: #{discriminator_forward.1} parent=11 // pred_check
          %p423 = pneg %p286
        $region50: #{discriminator_forward.1} parent=11 // pred_check_branch
          %425 = sbr.rel (%p423) target = $region52
        $region51: #{discriminator_forward.1} parent=11 // pred_region
          _
        $region52: #{discriminator_forward.1} parent=11 // pred_fallthru
          _
        // Predicated region
        $region53: #{discriminator_forward.1} parent=11 // pred_check
          %p426 = pneg %p307
        $region54: #{discriminator_forward.1} parent=11 // pred_check_branch
          %428 = sbr.rel (%p426) target = $region56
        $region55: #{discriminator_forward.1} parent=11 // pred_region
          _
        $region56: #{discriminator_forward.1} parent=11 // pred_fallthru
          _
      $region12: #{discriminator_forward.1} parent=5 // pred_fallthru
        _
      %p429 = scmp.lt.s32.totalorder %s24, 2
      // Predicated region
      $region57: #{discriminator_forward.1} parent=5 // pred_check
        %p430 = pneg %p429
      $region58: #{discriminator_forward.1} parent=5 // pred_check_branch
        %432 = sbr.rel (%p430) target = $region60
      $region59: #{discriminator_forward.1} parent=5 // pred_region
        // Predicated region
        $region61: #{discriminator_forward.1} parent=59 // pred_check
          %p433 = pneg %p44
        $region62: #{discriminator_forward.1} parent=59 // pred_check_branch
          %435 = sbr.rel (%p433) target = $region64
        $region63: #{discriminator_forward.1} parent=59 // pred_region
          %p436 = scmp.lt.s32.totalorder %s24, 1
          %s437 = scalar_select %p436, %s24, 1
          %s438 = smul.addr %s437, 2
          %s439 = scalar_lea.vmem %s0, %s438
        $region64: #{discriminator_forward.1} parent=59 // pred_fallthru
          _
        // Predicated region
        $region65: #{discriminator_forward.1} parent=59 // pred_check
          %p440 = pneg %p70
        $region66: #{discriminator_forward.1} parent=59 // pred_check_branch
          %442 = sbr.rel (%p440) target = $region68
        $region67: #{discriminator_forward.1} parent=59 // pred_region
          %p443 = scmp.lt.s32.totalorder %s24, 1
          %s444 = scalar_select %p443, %s24, 1
          %s445 = smul.addr %s444, 2
          %s446 = scalar_lea.vmem %s1, %s445
        $region68: #{discriminator_forward.1} parent=59 // pred_fallthru
          _
      $region60: #{discriminator_forward.1} parent=5 // pred_fallthru
        _
      %p447 = scmp.le.s32.totalorder 1, %s24
      %p448 = scmp.lt.s32.totalorder %s24, 3
      %p449 = pnand %p447, %p448
      %p450 = pneg %p449
      // Predicated region
      $region69: #{discriminator_forward.1} parent=5 // pred_check
        _
      $region70: #{discriminator_forward.1} parent=5 // pred_check_branch
        %452 = sbr.rel (%p449) target = $region72
      $region71: #{discriminator_forward.1} parent=5 // pred_region
        %s453 = ssub.s32 %s24, 1
        // Predicated region
        $region73: #{discriminator_forward.1} parent=71 // pred_check
          %p454 = pneg %p97
        $region74: #{discriminator_forward.1} parent=71 // pred_check_branch
          %456 = sbr.rel (%p454) target = $region76
        $region75: #{discriminator_forward.1} parent=71 // pred_region
          %457 = dma.done [#allocation4], 16384
        $region76: #{discriminator_forward.1} parent=71 // pred_fallthru
          _
        // Predicated region
        $region77: #{discriminator_forward.1} parent=71 // pred_check
          %p458 = pneg %p118
        $region78: #{discriminator_forward.1} parent=71 // pred_check_branch
          %460 = sbr.rel (%p458) target = $region80
        $region79: #{discriminator_forward.1} parent=71 // pred_region
          %461 = dma.done [#allocation6], 16384
        $region80: #{discriminator_forward.1} parent=71 // pred_fallthru
          _
        // Predicated region
        $region81: #{discriminator_forward.1} parent=71 // pred_check
          %p462 = pneg %p160
        $region82: #{discriminator_forward.1} parent=71 // pred_check_branch
          %464 = sbr.rel (%p462) target = $region84
        $region83: #{discriminator_forward.1} parent=71 // pred_region
          %465 = dma.done [#allocation6], 32768
        $region84: #{discriminator_forward.1} parent=71 // pred_fallthru
          _
        // Predicated region
        $region85: #{discriminator_forward.1} parent=71 // pred_check
          %p466 = pneg %p181
        $region86: #{discriminator_forward.1} parent=71 // pred_check_branch
          %468 = sbr.rel (%p466) target = $region88
        $region87: #{discriminator_forward.1} parent=71 // pred_region
          %469 = dma.done [#allocation9], 256
        $region88: #{discriminator_forward.1} parent=71 // pred_fallthru
          _
        // Predicated region
        $region89: #{discriminator_forward.1} parent=71 // pred_check
          %p470 = pneg %p202
        $region90: #{discriminator_forward.1} parent=71 // pred_check_branch
          %472 = sbr.rel (%p470) target = $region92
        $region91: #{discriminator_forward.1} parent=71 // pred_region
          %473 = dma.done [#allocation9], 8192
        $region92: #{discriminator_forward.1} parent=71 // pred_fallthru
          _
        %p474 = scmp.lt.s32.totalorder %s29, 1
        %s475 = scalar_select %p474, %s29, 1
        %s476 = smul.addr %s475, 2
        %s477 = scalar_lea.vmem %s0, %s476
        %p478 = pneg %p50
        %p479 = pneg %p47
        %p480 = scmp.lt.s32.totalorder %s29, 1
        %s481 = scalar_select %p480, %s29, 1
        %s482 = smul.addr %s481, 2
        %s483 = scalar_lea.vmem %s1, %s482
        %p484 = pneg %p76
        %p485 = pneg %p73
        %p486 = pneg %p97
        %p487 = pneg %p94
        %p488 = pneg %p118
        %p489 = pneg %p115
        %p490 = pneg %p139
        %p491 = pneg %p136
        %p492 = pneg %p160
        %p493 = pneg %p157
        %p494 = pneg %p181
        %p495 = pneg %p178
        %p496 = pneg %p202
        %p497 = pneg %p199
        %p498 = pneg %p223
        %p499 = pneg %p220
        %p500 = pneg %p244
        %p501 = pneg %p241
        %p502 = pneg %p265
        %p503 = pneg %p262
        %p504 = pneg %p286
        %p505 = pneg %p283
        %p506 = pneg %p307
        %p507 = pneg %p304
        %p508 = pneg %p333
        %p509 = pneg %p330
        %p510 = scmp.lt.s32.totalorder %s29, 1
        %s511 = scalar_select %p510, %s29, 1
        %s512 = scalar_lea.vmem %s13, %s511
        %p513 = scmp.lt.s32.totalorder %s29, 1
        %s514 = scalar_select %p513, %s29, 1
        %s515 = smul.addr %s514, 2
        %s516 = scalar_lea.vmem %s0, %s515
        %p517 = scmp.lt.s32.totalorder %s29, 1
        %s518 = scalar_select %p517, %s29, 1
        %s519 = smul.addr %s518, 2
        %s520 = scalar_lea.vmem %s1, %s519
        %p521 = scmp.lt.s32.totalorder %s29, 1
        %s522 = scalar_select %p521, %s29, 1
        %s523 = scalar_lea.vmem %s13, %s522
        %v525 = vld [vmem:[%s516] sm:$0x3]
        %v527 = vlaneseq
        %v528 = vshrl.u32 %v527, 7
        %v529 = vsub.s32 0, %v528
        %v530 = vrot.slane %v525, %v529
        %v531 = vlaneseq
        %v532 = vshrl.u32 %v531, 7
        %v533 = vsub.s32 1, %v532
        %v534 = vrot.slane %v525, %v533
        %v537 = vpack.c.bf16 %v530, %v530
        %v538 = vpack.c.bf16 %v534, %v534
        %v539 = vld [vmem:[#allocation3] sm:$0xff]
        %v540 = vld [vmem:[#allocation3 + $0x8] sm:$0xff]
        %v541 = vld [vmem:[#allocation3 + $0x10] sm:$0xff]
        %v542 = vld [vmem:[#allocation3 + $0x18] sm:$0xff]
        %v543 = vld [vmem:[#allocation3 + $0x20] sm:$0xff]
        %v544 = vld [vmem:[#allocation3 + $0x28] sm:$0xff]
        %v545 = vld [vmem:[#allocation3 + $0x30] sm:$0xff]
        %v546 = vld [vmem:[#allocation3 + $0x38] sm:$0xff]
        %v547 = vld [vmem:[#allocation3 + $0x40] sm:$0xff]
        %v548 = vld [vmem:[#allocation3 + $0x48] sm:$0xff]
        %v549 = vld [vmem:[#allocation3 + $0x50] sm:$0xff]
        %v550 = vld [vmem:[#allocation3 + $0x58] sm:$0xff]
        %v551 = vld [vmem:[#allocation3 + $0x60] sm:$0xff]
        %v552 = vld [vmem:[#allocation3 + $0x68] sm:$0xff]
        %v553 = vld [vmem:[#allocation3 + $0x70] sm:$0xff]
        %v554 = vld [vmem:[#allocation3 + $0x78] sm:$0xff]
        %v555 = vld [vmem:[#allocation3 + $0x80] sm:$0xff]
        %v556 = vld [vmem:[#allocation3 + $0x88] sm:$0xff]
        %v557 = vld [vmem:[#allocation3 + $0x90] sm:$0xff]
        %v558 = vld [vmem:[#allocation3 + $0x98] sm:$0xff]
        %v559 = vld [vmem:[#allocation3 + $0xa0] sm:$0xff]
        %v560 = vld [vmem:[#allocation3 + $0xa8] sm:$0xff]
        %v561 = vld [vmem:[#allocation3 + $0xb0] sm:$0xff]
        %v562 = vld [vmem:[#allocation3 + $0xb8] sm:$0xff]
        %v563 = vld [vmem:[#allocation3 + $0xc0] sm:$0xff]
        %v564 = vld [vmem:[#allocation3 + $0xc8] sm:$0xff]
        %v565 = vld [vmem:[#allocation3 + $0xd0] sm:$0xff]
        %v566 = vld [vmem:[#allocation3 + $0xd8] sm:$0xff]
        %v567 = vld [vmem:[#allocation3 + $0xe0] sm:$0xff]
        %v568 = vld [vmem:[#allocation3 + $0xe8] sm:$0xff]
        %v569 = vld [vmem:[#allocation3 + $0xf0] sm:$0xff]
        %v570 = vld [vmem:[#allocation3 + $0xf8] sm:$0xff]
        %v571 = vld [vmem:[#allocation3 + $0x100] sm:$0xff]
        %v572 = vld [vmem:[#allocation3 + $0x108] sm:$0xff]
        %v573 = vld [vmem:[#allocation3 + $0x110] sm:$0xff]
        %v574 = vld [vmem:[#allocation3 + $0x118] sm:$0xff]
        %v575 = vld [vmem:[#allocation3 + $0x120] sm:$0xff]
        %v576 = vld [vmem:[#allocation3 + $0x128] sm:$0xff]
        %v577 = vld [vmem:[#allocation3 + $0x130] sm:$0xff]
        %v578 = vld [vmem:[#allocation3 + $0x138] sm:$0xff]
        %v579 = vld [vmem:[#allocation3 + $0x140] sm:$0xff]
        %v580 = vld [vmem:[#allocation3 + $0x148] sm:$0xff]
        %v581 = vld [vmem:[#allocation3 + $0x150] sm:$0xff]
        %v582 = vld [vmem:[#allocation3 + $0x158] sm:$0xff]
        %v583 = vld [vmem:[#allocation3 + $0x160] sm:$0xff]
        %v584 = vld [vmem:[#allocation3 + $0x168] sm:$0xff]
        %v585 = vld [vmem:[#allocation3 + $0x170] sm:$0xff]
        %v586 = vld [vmem:[#allocation3 + $0x178] sm:$0xff]
        %v587 = vld [vmem:[#allocation3 + $0x180] sm:$0xff]
        %v588 = vld [vmem:[#allocation3 + $0x188] sm:$0xff]
        %v589 = vld [vmem:[#allocation3 + $0x190] sm:$0xff]
        %v590 = vld [vmem:[#allocation3 + $0x198] sm:$0xff]
        %v591 = vld [vmem:[#allocation3 + $0x1a0] sm:$0xff]
        %v592 = vld [vmem:[#allocation3 + $0x1a8] sm:$0xff]
        %v593 = vld [vmem:[#allocation3 + $0x1b0] sm:$0xff]
        %v594 = vld [vmem:[#allocation3 + $0x1b8] sm:$0xff]
        %v595 = vld [vmem:[#allocation3 + $0x1c0] sm:$0xff]
        %v596 = vld [vmem:[#allocation3 + $0x1c8] sm:$0xff]
        %v597 = vld [vmem:[#allocation3 + $0x1d0] sm:$0xff]
        %v598 = vld [vmem:[#allocation3 + $0x1d8] sm:$0xff]
        %v599 = vld [vmem:[#allocation3 + $0x1e0] sm:$0xff]
        %v600 = vld [vmem:[#allocation3 + $0x1e8] sm:$0xff]
        %v601 = vld [vmem:[#allocation3 + $0x1f0] sm:$0xff]
        %v602 = vld [vmem:[#allocation3 + $0x1f8] sm:$0xff]
        %v603 = vld [vmem:[#allocation3 + $0x200] sm:$0xff]
        %v604 = vld [vmem:[#allocation3 + $0x208] sm:$0xff]
        %v605 = vld [vmem:[#allocation3 + $0x210] sm:$0xff]
        %v606 = vld [vmem:[#allocation3 + $0x218] sm:$0xff]
        %v607 = vld [vmem:[#allocation3 + $0x220] sm:$0xff]
        %v608 = vld [vmem:[#allocation3 + $0x228] sm:$0xff]
        %v609 = vld [vmem:[#allocation3 + $0x230] sm:$0xff]
        %v610 = vld [vmem:[#allocation3 + $0x238] sm:$0xff]
        %v611 = vld [vmem:[#allocation3 + $0x240] sm:$0xff]
        %v612 = vld [vmem:[#allocation3 + $0x248] sm:$0xff]
        %v613 = vld [vmem:[#allocation3 + $0x250] sm:$0xff]
        %v614 = vld [vmem:[#allocation3 + $0x258] sm:$0xff]
        %v615 = vld [vmem:[#allocation3 + $0x260] sm:$0xff]
        %v616 = vld [vmem:[#allocation3 + $0x268] sm:$0xff]
        %v617 = vld [vmem:[#allocation3 + $0x270] sm:$0xff]
        %v618 = vld [vmem:[#allocation3 + $0x278] sm:$0xff]
        %v619 = vld [vmem:[#allocation3 + $0x280] sm:$0xff]
        %v620 = vld [vmem:[#allocation3 + $0x288] sm:$0xff]
        %v621 = vld [vmem:[#allocation3 + $0x290] sm:$0xff]
        %v622 = vld [vmem:[#allocation3 + $0x298] sm:$0xff]
        %v623 = vld [vmem:[#allocation3 + $0x2a0] sm:$0xff]
        %v624 = vld [vmem:[#allocation3 + $0x2a8] sm:$0xff]
        %v625 = vld [vmem:[#allocation3 + $0x2b0] sm:$0xff]
        %v626 = vld [vmem:[#allocation3 + $0x2b8] sm:$0xff]
        %v627 = vld [vmem:[#allocation3 + $0x2c0] sm:$0xff]
        %v628 = vld [vmem:[#allocation3 + $0x2c8] sm:$0xff]
        %v629 = vld [vmem:[#allocation3 + $0x2d0] sm:$0xff]
        %v630 = vld [vmem:[#allocation3 + $0x2d8] sm:$0xff]
        %v631 = vld [vmem:[#allocation3 + $0x2e0] sm:$0xff]
        %v632 = vld [vmem:[#allocation3 + $0x2e8] sm:$0xff]
        %v633 = vld [vmem:[#allocation3 + $0x2f0] sm:$0xff]
        %v634 = vld [vmem:[#allocation3 + $0x2f8] sm:$0xff]
        %v635 = vld [vmem:[#allocation3 + $0x300] sm:$0xff]
        %v636 = vld [vmem:[#allocation3 + $0x308] sm:$0xff]
        %v637 = vld [vmem:[#allocation3 + $0x310] sm:$0xff]
        %v638 = vld [vmem:[#allocation3 + $0x318] sm:$0xff]
        %v639 = vld [vmem:[#allocation3 + $0x320] sm:$0xff]
        %v640 = vld [vmem:[#allocation3 + $0x328] sm:$0xff]
        %v641 = vld [vmem:[#allocation3 + $0x330] sm:$0xff]
        %v642 = vld [vmem:[#allocation3 + $0x338] sm:$0xff]
        %v643 = vld [vmem:[#allocation3 + $0x340] sm:$0xff]
        %v644 = vld [vmem:[#allocation3 + $0x348] sm:$0xff]
        %v645 = vld [vmem:[#allocation3 + $0x350] sm:$0xff]
        %v646 = vld [vmem:[#allocation3 + $0x358] sm:$0xff]
        %v647 = vld [vmem:[#allocation3 + $0x360] sm:$0xff]
        %v648 = vld [vmem:[#allocation3 + $0x368] sm:$0xff]
        %v649 = vld [vmem:[#allocation3 + $0x370] sm:$0xff]
        %v650 = vld [vmem:[#allocation3 + $0x378] sm:$0xff]
        %v651 = vld [vmem:[#allocation3 + $0x380] sm:$0xff]
        %v652 = vld [vmem:[#allocation3 + $0x388] sm:$0xff]
        %v653 = vld [vmem:[#allocation3 + $0x390] sm:$0xff]
        %v654 = vld [vmem:[#allocation3 + $0x398] sm:$0xff]
        %v655 = vld [vmem:[#allocation3 + $0x3a0] sm:$0xff]
        %v656 = vld [vmem:[#allocation3 + $0x3a8] sm:$0xff]
        %v657 = vld [vmem:[#allocation3 + $0x3b0] sm:$0xff]
        %v658 = vld [vmem:[#allocation3 + $0x3b8] sm:$0xff]
        %v659 = vld [vmem:[#allocation3 + $0x3c0] sm:$0xff]
        %v660 = vld [vmem:[#allocation3 + $0x3c8] sm:$0xff]
        %v661 = vld [vmem:[#allocation3 + $0x3d0] sm:$0xff]
        %v662 = vld [vmem:[#allocation3 + $0x3d8] sm:$0xff]
        %v663 = vld [vmem:[#allocation3 + $0x3e0] sm:$0xff]
        %v664 = vld [vmem:[#allocation3 + $0x3e8] sm:$0xff]
        %v665 = vld [vmem:[#allocation3 + $0x3f0] sm:$0xff]
        %v666 = vld [vmem:[#allocation3 + $0x3f8] sm:$0xff]
        %v667 = vld [vmem:[%s520] sm:$0x3]
        %v669 = vlaneseq
        %v670 = vshrl.u32 %v669, 7
        %v671 = vsub.s32 0, %v670
        %v672 = vrot.slane %v667, %v671
        %v673 = vlaneseq
        %v674 = vshrl.u32 %v673, 7
        %v675 = vsub.s32 1, %v674
        %v676 = vrot.slane %v667, %v675
        %v679 = vpack.c.bf16 %v672, %v672
        %v680 = vpack.c.bf16 %v676, %v676
        %v681 = vld [vmem:[#allocation5] sm:$0xff]
        %v682 = vld [vmem:[#allocation5 + $0x8] sm:$0xff]
        %v683 = vld [vmem:[#allocation5 + $0x10] sm:$0xff]
        %v684 = vld [vmem:[#allocation5 + $0x18] sm:$0xff]
        %v685 = vld [vmem:[#allocation5 + $0x20] sm:$0xff]
        %v686 = vld [vmem:[#allocation5 + $0x28] sm:$0xff]
        %v687 = vld [vmem:[#allocation5 + $0x30] sm:$0xff]
        %v688 = vld [vmem:[#allocation5 + $0x38] sm:$0xff]
        %v689 = vld [vmem:[#allocation5 + $0x40] sm:$0xff]
        %v690 = vld [vmem:[#allocation5 + $0x48] sm:$0xff]
        %v691 = vld [vmem:[#allocation5 + $0x50] sm:$0xff]
        %v692 = vld [vmem:[#allocation5 + $0x58] sm:$0xff]
        %v693 = vld [vmem:[#allocation5 + $0x60] sm:$0xff]
        %v694 = vld [vmem:[#allocation5 + $0x68] sm:$0xff]
        %v695 = vld [vmem:[#allocation5 + $0x70] sm:$0xff]
        %v696 = vld [vmem:[#allocation5 + $0x78] sm:$0xff]
        %v697 = vld [vmem:[#allocation5 + $0x80] sm:$0xff]
        %v698 = vld [vmem:[#allocation5 + $0x88] sm:$0xff]
        %v699 = vld [vmem:[#allocation5 + $0x90] sm:$0xff]
        %v700 = vld [vmem:[#allocation5 + $0x98] sm:$0xff]
        %v701 = vld [vmem:[#allocation5 + $0xa0] sm:$0xff]
        %v702 = vld [vmem:[#allocation5 + $0xa8] sm:$0xff]
        %v703 = vld [vmem:[#allocation5 + $0xb0] sm:$0xff]
        %v704 = vld [vmem:[#allocation5 + $0xb8] sm:$0xff]
        %v705 = vld [vmem:[#allocation5 + $0xc0] sm:$0xff]
        %v706 = vld [vmem:[#allocation5 + $0xc8] sm:$0xff]
        %v707 = vld [vmem:[#allocation5 + $0xd0] sm:$0xff]
        %v708 = vld [vmem:[#allocation5 + $0xd8] sm:$0xff]
        %v709 = vld [vmem:[#allocation5 + $0xe0] sm:$0xff]
        %v710 = vld [vmem:[#allocation5 + $0xe8] sm:$0xff]
        %v711 = vld [vmem:[#allocation5 + $0xf0] sm:$0xff]
        %v712 = vld [vmem:[#allocation5 + $0xf8] sm:$0xff]
        %v713 = vld [vmem:[#allocation5 + $0x100] sm:$0xff]
        %v714 = vld [vmem:[#allocation5 + $0x108] sm:$0xff]
        %v715 = vld [vmem:[#allocation5 + $0x110] sm:$0xff]
        %v716 = vld [vmem:[#allocation5 + $0x118] sm:$0xff]
        %v717 = vld [vmem:[#allocation5 + $0x120] sm:$0xff]
        %v718 = vld [vmem:[#allocation5 + $0x128] sm:$0xff]
        %v719 = vld [vmem:[#allocation5 + $0x130] sm:$0xff]
        %v720 = vld [vmem:[#allocation5 + $0x138] sm:$0xff]
        %v721 = vld [vmem:[#allocation5 + $0x140] sm:$0xff]
        %v722 = vld [vmem:[#allocation5 + $0x148] sm:$0xff]
        %v723 = vld [vmem:[#allocation5 + $0x150] sm:$0xff]
        %v724 = vld [vmem:[#allocation5 + $0x158] sm:$0xff]
        %v725 = vld [vmem:[#allocation5 + $0x160] sm:$0xff]
        %v726 = vld [vmem:[#allocation5 + $0x168] sm:$0xff]
        %v727 = vld [vmem:[#allocation5 + $0x170] sm:$0xff]
        %v728 = vld [vmem:[#allocation5 + $0x178] sm:$0xff]
        %v729 = vld [vmem:[#allocation5 + $0x180] sm:$0xff]
        %v730 = vld [vmem:[#allocation5 + $0x188] sm:$0xff]
        %v731 = vld [vmem:[#allocation5 + $0x190] sm:$0xff]
        %v732 = vld [vmem:[#allocation5 + $0x198] sm:$0xff]
        %v733 = vld [vmem:[#allocation5 + $0x1a0] sm:$0xff]
        %v734 = vld [vmem:[#allocation5 + $0x1a8] sm:$0xff]
        %v735 = vld [vmem:[#allocation5 + $0x1b0] sm:$0xff]
        %v736 = vld [vmem:[#allocation5 + $0x1b8] sm:$0xff]
        %v737 = vld [vmem:[#allocation5 + $0x1c0] sm:$0xff]
        %v738 = vld [vmem:[#allocation5 + $0x1c8] sm:$0xff]
        %v739 = vld [vmem:[#allocation5 + $0x1d0] sm:$0xff]
        %v740 = vld [vmem:[#allocation5 + $0x1d8] sm:$0xff]
        %v741 = vld [vmem:[#allocation5 + $0x1e0] sm:$0xff]
        %v742 = vld [vmem:[#allocation5 + $0x1e8] sm:$0xff]
        %v743 = vld [vmem:[#allocation5 + $0x1f0] sm:$0xff]
        %v744 = vld [vmem:[#allocation5 + $0x1f8] sm:$0xff]
        %v745 = vld [vmem:[#allocation5 + $0x200] sm:$0xff]
        %v746 = vld [vmem:[#allocation5 + $0x208] sm:$0xff]
        %v747 = vld [vmem:[#allocation5 + $0x210] sm:$0xff]
        %v748 = vld [vmem:[#allocation5 + $0x218] sm:$0xff]
        %v749 = vld [vmem:[#allocation5 + $0x220] sm:$0xff]
        %v750 = vld [vmem:[#allocation5 + $0x228] sm:$0xff]
        %v751 = vld [vmem:[#allocation5 + $0x230] sm:$0xff]
        %v752 = vld [vmem:[#allocation5 + $0x238] sm:$0xff]
        %v753 = vld [vmem:[#allocation5 + $0x240] sm:$0xff]
        %v754 = vld [vmem:[#allocation5 + $0x248] sm:$0xff]
        %v755 = vld [vmem:[#allocation5 + $0x250] sm:$0xff]
        %v756 = vld [vmem:[#allocation5 + $0x258] sm:$0xff]
        %v757 = vld [vmem:[#allocation5 + $0x260] sm:$0xff]
        %v758 = vld [vmem:[#allocation5 + $0x268] sm:$0xff]
        %v759 = vld [vmem:[#allocation5 + $0x270] sm:$0xff]
        %v760 = vld [vmem:[#allocation5 + $0x278] sm:$0xff]
        %v761 = vld [vmem:[#allocation5 + $0x280] sm:$0xff]
        %v762 = vld [vmem:[#allocation5 + $0x288] sm:$0xff]
        %v763 = vld [vmem:[#allocation5 + $0x290] sm:$0xff]
        %v764 = vld [vmem:[#allocation5 + $0x298] sm:$0xff]
        %v765 = vld [vmem:[#allocation5 + $0x2a0] sm:$0xff]
        %v766 = vld [vmem:[#allocation5 + $0x2a8] sm:$0xff]
        %v767 = vld [vmem:[#allocation5 + $0x2b0] sm:$0xff]
        %v768 = vld [vmem:[#allocation5 + $0x2b8] sm:$0xff]
        %v769 = vld [vmem:[#allocation5 + $0x2c0] sm:$0xff]
        %v770 = vld [vmem:[#allocation5 + $0x2c8] sm:$0xff]
        %v771 = vld [vmem:[#allocation5 + $0x2d0] sm:$0xff]
        %v772 = vld [vmem:[#allocation5 + $0x2d8] sm:$0xff]
        %v773 = vld [vmem:[#allocation5 + $0x2e0] sm:$0xff]
        %v774 = vld [vmem:[#allocation5 + $0x2e8] sm:$0xff]
        %v775 = vld [vmem:[#allocation5 + $0x2f0] sm:$0xff]
        %v776 = vld [vmem:[#allocation5 + $0x2f8] sm:$0xff]
        %v777 = vld [vmem:[#allocation5 + $0x300] sm:$0xff]
        %v778 = vld [vmem:[#allocation5 + $0x308] sm:$0xff]
        %v779 = vld [vmem:[#allocation5 + $0x310] sm:$0xff]
        %v780 = vld [vmem:[#allocation5 + $0x318] sm:$0xff]
        %v781 = vld [vmem:[#allocation5 + $0x320] sm:$0xff]
        %v782 = vld [vmem:[#allocation5 + $0x328] sm:$0xff]
        %v783 = vld [vmem:[#allocation5 + $0x330] sm:$0xff]
        %v784 = vld [vmem:[#allocation5 + $0x338] sm:$0xff]
        %v785 = vld [vmem:[#allocation5 + $0x340] sm:$0xff]
        %v786 = vld [vmem:[#allocation5 + $0x348] sm:$0xff]
        %v787 = vld [vmem:[#allocation5 + $0x350] sm:$0xff]
        %v788 = vld [vmem:[#allocation5 + $0x358] sm:$0xff]
        %v789 = vld [vmem:[#allocation5 + $0x360] sm:$0xff]
        %v790 = vld [vmem:[#allocation5 + $0x368] sm:$0xff]
        %v791 = vld [vmem:[#allocation5 + $0x370] sm:$0xff]
        %v792 = vld [vmem:[#allocation5 + $0x378] sm:$0xff]
        %v793 = vld [vmem:[#allocation5 + $0x380] sm:$0xff]
        %v794 = vld [vmem:[#allocation5 + $0x388] sm:$0xff]
        %v795 = vld [vmem:[#allocation5 + $0x390] sm:$0xff]
        %v796 = vld [vmem:[#allocation5 + $0x398] sm:$0xff]
        %v797 = vld [vmem:[#allocation5 + $0x3a0] sm:$0xff]
        %v798 = vld [vmem:[#allocation5 + $0x3a8] sm:$0xff]
        %v799 = vld [vmem:[#allocation5 + $0x3b0] sm:$0xff]
        %v800 = vld [vmem:[#allocation5 + $0x3b8] sm:$0xff]
        %v801 = vld [vmem:[#allocation5 + $0x3c0] sm:$0xff]
        %v802 = vld [vmem:[#allocation5 + $0x3c8] sm:$0xff]
        %v803 = vld [vmem:[#allocation5 + $0x3d0] sm:$0xff]
        %v804 = vld [vmem:[#allocation5 + $0x3d8] sm:$0xff]
        %v805 = vld [vmem:[#allocation5 + $0x3e0] sm:$0xff]
        %v806 = vld [vmem:[#allocation5 + $0x3e8] sm:$0xff]
        %v807 = vld [vmem:[#allocation5 + $0x3f0] sm:$0xff]
        %v808 = vld [vmem:[#allocation5 + $0x3f8] sm:$0xff]
        %v937 = vunpack.c.l.b16 %v681
        %v938 = vunpack.c.h.b16 %v681
        %v939 = vunpack.c.l.b16 %v682
        %v940 = vunpack.c.h.b16 %v682
        %v941 = vunpack.c.l.b16 %v683
        %v942 = vunpack.c.h.b16 %v683
        %v943 = vunpack.c.l.b16 %v684
        %v944 = vunpack.c.h.b16 %v684
        %v945 = vunpack.c.l.b16 %v685
        %v946 = vunpack.c.h.b16 %v685
        %v947 = vunpack.c.l.b16 %v686
        %v948 = vunpack.c.h.b16 %v686
        %v949 = vunpack.c.l.b16 %v687
        %v950 = vunpack.c.h.b16 %v687
        %v951 = vunpack.c.l.b16 %v688
        %v952 = vunpack.c.h.b16 %v688
        %v953 = vunpack.c.l.b16 %v689
        %v954 = vunpack.c.h.b16 %v689
        %v955 = vunpack.c.l.b16 %v690
        %v956 = vunpack.c.h.b16 %v690
        %v957 = vunpack.c.l.b16 %v691
        %v958 = vunpack.c.h.b16 %v691
        %v959 = vunpack.c.l.b16 %v692
        %v960 = vunpack.c.h.b16 %v692
        %v961 = vunpack.c.l.b16 %v693
        %v962 = vunpack.c.h.b16 %v693
        %v963 = vunpack.c.l.b16 %v694
        %v964 = vunpack.c.h.b16 %v694
        %v965 = vunpack.c.l.b16 %v695
        %v966 = vunpack.c.h.b16 %v695
        %v967 = vunpack.c.l.b16 %v696
        %v968 = vunpack.c.h.b16 %v696
        %v969 = vunpack.c.l.b16 %v697
        %v970 = vunpack.c.h.b16 %v697
        %v971 = vunpack.c.l.b16 %v698
        %v972 = vunpack.c.h.b16 %v698
        %v973 = vunpack.c.l.b16 %v699
        %v974 = vunpack.c.h.b16 %v699
        %v975 = vunpack.c.l.b16 %v700
        %v976 = vunpack.c.h.b16 %v700
        %v977 = vunpack.c.l.b16 %v701
        %v978 = vunpack.c.h.b16 %v701
        %v979 = vunpack.c.l.b16 %v702
        %v980 = vunpack.c.h.b16 %v702
        %v981 = vunpack.c.l.b16 %v703
        %v982 = vunpack.c.h.b16 %v703
        %v983 = vunpack.c.l.b16 %v704
        %v984 = vunpack.c.h.b16 %v704
        %v985 = vunpack.c.l.b16 %v705
        %v986 = vunpack.c.h.b16 %v705
        %v987 = vunpack.c.l.b16 %v706
        %v988 = vunpack.c.h.b16 %v706
        %v989 = vunpack.c.l.b16 %v707
        %v990 = vunpack.c.h.b16 %v707
        %v991 = vunpack.c.l.b16 %v708
        %v992 = vunpack.c.h.b16 %v708
        %v993 = vunpack.c.l.b16 %v709
        %v994 = vunpack.c.h.b16 %v709
        %v995 = vunpack.c.l.b16 %v710
        %v996 = vunpack.c.h.b16 %v710
        %v997 = vunpack.c.l.b16 %v711
        %v998 = vunpack.c.h.b16 %v711
        %v999 = vunpack.c.l.b16 %v712
        %v1000 = vunpack.c.h.b16 %v712
        %v1001 = vunpack.c.l.b16 %v713
        %v1002 = vunpack.c.h.b16 %v713
        %v1003 = vunpack.c.l.b16 %v714
        %v1004 = vunpack.c.h.b16 %v714
        %v1005 = vunpack.c.l.b16 %v715
        %v1006 = vunpack.c.h.b16 %v715
        %v1007 = vunpack.c.l.b16 %v716
        %v1008 = vunpack.c.h.b16 %v716
        %v1009 = vunpack.c.l.b16 %v717
        %v1010 = vunpack.c.h.b16 %v717
        %v1011 = vunpack.c.l.b16 %v718
        %v1012 = vunpack.c.h.b16 %v718
        %v1013 = vunpack.c.l.b16 %v719
        %v1014 = vunpack.c.h.b16 %v719
        %v1015 = vunpack.c.l.b16 %v720
        %v1016 = vunpack.c.h.b16 %v720
        %v1017 = vunpack.c.l.b16 %v721
        %v1018 = vunpack.c.h.b16 %v721
        %v1019 = vunpack.c.l.b16 %v722
        %v1020 = vunpack.c.h.b16 %v722
        %v1021 = vunpack.c.l.b16 %v723
        %v1022 = vunpack.c.h.b16 %v723
        %v1023 = vunpack.c.l.b16 %v724
        %v1024 = vunpack.c.h.b16 %v724
        %v1025 = vunpack.c.l.b16 %v725
        %v1026 = vunpack.c.h.b16 %v725
        %v1027 = vunpack.c.l.b16 %v726
        %v1028 = vunpack.c.h.b16 %v726
        %v1029 = vunpack.c.l.b16 %v727
        %v1030 = vunpack.c.h.b16 %v727
        %v1031 = vunpack.c.l.b16 %v728
        %v1032 = vunpack.c.h.b16 %v728
        %v1033 = vunpack.c.l.b16 %v729
        %v1034 = vunpack.c.h.b16 %v729
        %v1035 = vunpack.c.l.b16 %v730
        %v1036 = vunpack.c.h.b16 %v730
        %v1037 = vunpack.c.l.b16 %v731
        %v1038 = vunpack.c.h.b16 %v731
        %v1039 = vunpack.c.l.b16 %v732
        %v1040 = vunpack.c.h.b16 %v732
        %v1041 = vunpack.c.l.b16 %v733
        %v1042 = vunpack.c.h.b16 %v733
        %v1043 = vunpack.c.l.b16 %v734
        %v1044 = vunpack.c.h.b16 %v734
        %v1045 = vunpack.c.l.b16 %v735
        %v1046 = vunpack.c.h.b16 %v735
        %v1047 = vunpack.c.l.b16 %v736
        %v1048 = vunpack.c.h.b16 %v736
        %v1049 = vunpack.c.l.b16 %v737
        %v1050 = vunpack.c.h.b16 %v737
        %v1051 = vunpack.c.l.b16 %v738
        %v1052 = vunpack.c.h.b16 %v738
        %v1053 = vunpack.c.l.b16 %v739
        %v1054 = vunpack.c.h.b16 %v739
        %v1055 = vunpack.c.l.b16 %v740
        %v1056 = vunpack.c.h.b16 %v740
        %v1057 = vunpack.c.l.b16 %v741
        %v1058 = vunpack.c.h.b16 %v741
        %v1059 = vunpack.c.l.b16 %v742
        %v1060 = vunpack.c.h.b16 %v742
        %v1061 = vunpack.c.l.b16 %v743
        %v1062 = vunpack.c.h.b16 %v743
        %v1063 = vunpack.c.l.b16 %v744
        %v1064 = vunpack.c.h.b16 %v744
        %v1065 = vunpack.c.l.b16 %v745
        %v1066 = vunpack.c.h.b16 %v745
        %v1067 = vunpack.c.l.b16 %v746
        %v1068 = vunpack.c.h.b16 %v746
        %v1069 = vunpack.c.l.b16 %v747
        %v1070 = vunpack.c.h.b16 %v747
        %v1071 = vunpack.c.l.b16 %v748
        %v1072 = vunpack.c.h.b16 %v748
        %v1073 = vunpack.c.l.b16 %v749
        %v1074 = vunpack.c.h.b16 %v749
        %v1075 = vunpack.c.l.b16 %v750
        %v1076 = vunpack.c.h.b16 %v750
        %v1077 = vunpack.c.l.b16 %v751
        %v1078 = vunpack.c.h.b16 %v751
        %v1079 = vunpack.c.l.b16 %v752
        %v1080 = vunpack.c.h.b16 %v752
        %v1081 = vunpack.c.l.b16 %v753
        %v1082 = vunpack.c.h.b16 %v753
        %v1083 = vunpack.c.l.b16 %v754
        %v1084 = vunpack.c.h.b16 %v754
        %v1085 = vunpack.c.l.b16 %v755
        %v1086 = vunpack.c.h.b16 %v755
        %v1087 = vunpack.c.l.b16 %v756
        %v1088 = vunpack.c.h.b16 %v756
        %v1089 = vunpack.c.l.b16 %v757
        %v1090 = vunpack.c.h.b16 %v757
        %v1091 = vunpack.c.l.b16 %v758
        %v1092 = vunpack.c.h.b16 %v758
        %v1093 = vunpack.c.l.b16 %v759
        %v1094 = vunpack.c.h.b16 %v759
        %v1095 = vunpack.c.l.b16 %v760
        %v1096 = vunpack.c.h.b16 %v760
        %v1097 = vunpack.c.l.b16 %v761
        %v1098 = vunpack.c.h.b16 %v761
        %v1099 = vunpack.c.l.b16 %v762
        %v1100 = vunpack.c.h.b16 %v762
        %v1101 = vunpack.c.l.b16 %v763
        %v1102 = vunpack.c.h.b16 %v763
        %v1103 = vunpack.c.l.b16 %v764
        %v1104 = vunpack.c.h.b16 %v764
        %v1105 = vunpack.c.l.b16 %v765
        %v1106 = vunpack.c.h.b16 %v765
        %v1107 = vunpack.c.l.b16 %v766
        %v1108 = vunpack.c.h.b16 %v766
        %v1109 = vunpack.c.l.b16 %v767
        %v1110 = vunpack.c.h.b16 %v767
        %v1111 = vunpack.c.l.b16 %v768
        %v1112 = vunpack.c.h.b16 %v768
        %v1113 = vunpack.c.l.b16 %v769
        %v1114 = vunpack.c.h.b16 %v769
        %v1115 = vunpack.c.l.b16 %v770
        %v1116 = vunpack.c.h.b16 %v770
        %v1117 = vunpack.c.l.b16 %v771
        %v1118 = vunpack.c.h.b16 %v771
        %v1119 = vunpack.c.l.b16 %v772
        %v1120 = vunpack.c.h.b16 %v772
        %v1121 = vunpack.c.l.b16 %v773
        %v1122 = vunpack.c.h.b16 %v773
        %v1123 = vunpack.c.l.b16 %v774
        %v1124 = vunpack.c.h.b16 %v774
        %v1125 = vunpack.c.l.b16 %v775
        %v1126 = vunpack.c.h.b16 %v775
        %v1127 = vunpack.c.l.b16 %v776
        %v1128 = vunpack.c.h.b16 %v776
        %v1129 = vunpack.c.l.b16 %v777
        %v1130 = vunpack.c.h.b16 %v777
        %v1131 = vunpack.c.l.b16 %v778
        %v1132 = vunpack.c.h.b16 %v778
        %v1133 = vunpack.c.l.b16 %v779
        %v1134 = vunpack.c.h.b16 %v779
        %v1135 = vunpack.c.l.b16 %v780
        %v1136 = vunpack.c.h.b16 %v780
        %v1137 = vunpack.c.l.b16 %v781
        %v1138 = vunpack.c.h.b16 %v781
        %v1139 = vunpack.c.l.b16 %v782
        %v1140 = vunpack.c.h.b16 %v782
        %v1141 = vunpack.c.l.b16 %v783
        %v1142 = vunpack.c.h.b16 %v783
        %v1143 = vunpack.c.l.b16 %v784
        %v1144 = vunpack.c.h.b16 %v784
        %v1145 = vunpack.c.l.b16 %v785
        %v1146 = vunpack.c.h.b16 %v785
        %v1147 = vunpack.c.l.b16 %v786
        %v1148 = vunpack.c.h.b16 %v786
        %v1149 = vunpack.c.l.b16 %v787
        %v1150 = vunpack.c.h.b16 %v787
        %v1151 = vunpack.c.l.b16 %v788
        %v1152 = vunpack.c.h.b16 %v788
        %v1153 = vunpack.c.l.b16 %v789
        %v1154 = vunpack.c.h.b16 %v789
        %v1155 = vunpack.c.l.b16 %v790
        %v1156 = vunpack.c.h.b16 %v790
        %v1157 = vunpack.c.l.b16 %v791
        %v1158 = vunpack.c.h.b16 %v791
        %v1159 = vunpack.c.l.b16 %v792
        %v1160 = vunpack.c.h.b16 %v792
        %v1161 = vunpack.c.l.b16 %v793
        %v1162 = vunpack.c.h.b16 %v793
        %v1163 = vunpack.c.l.b16 %v794
        %v1164 = vunpack.c.h.b16 %v794
        %v1165 = vunpack.c.l.b16 %v795
        %v1166 = vunpack.c.h.b16 %v795
        %v1167 = vunpack.c.l.b16 %v796
        %v1168 = vunpack.c.h.b16 %v796
        %v1169 = vunpack.c.l.b16 %v797
        %v1170 = vunpack.c.h.b16 %v797
        %v1171 = vunpack.c.l.b16 %v798
        %v1172 = vunpack.c.h.b16 %v798
        %v1173 = vunpack.c.l.b16 %v799
        %v1174 = vunpack.c.h.b16 %v799
        %v1175 = vunpack.c.l.b16 %v800
        %v1176 = vunpack.c.h.b16 %v800
        %v1177 = vunpack.c.l.b16 %v801
        %v1178 = vunpack.c.h.b16 %v801
        %v1179 = vunpack.c.l.b16 %v802
        %v1180 = vunpack.c.h.b16 %v802
        %v1181 = vunpack.c.l.b16 %v803
        %v1182 = vunpack.c.h.b16 %v803
        %v1183 = vunpack.c.l.b16 %v804
        %v1184 = vunpack.c.h.b16 %v804
        %v1185 = vunpack.c.l.b16 %v805
        %v1186 = vunpack.c.h.b16 %v805
        %v1187 = vunpack.c.l.b16 %v806
        %v1188 = vunpack.c.h.b16 %v806
        %v1189 = vunpack.c.l.b16 %v807
        %v1190 = vunpack.c.h.b16 %v807
        %v1191 = vunpack.c.l.b16 %v808
        %v1192 = vunpack.c.h.b16 %v808
        %v1193 = vpack.c.b16 %v945, %v937
        %v1194 = vpack.c.b16 %v946, %v938
        %v1195 = vpack.c.b16 %v947, %v939
        %v1196 = vpack.c.b16 %v948, %v940
        %v1197 = vpack.c.b16 %v949, %v941
        %v1198 = vpack.c.b16 %v950, %v942
        %v1199 = vpack.c.b16 %v951, %v943
        %v1200 = vpack.c.b16 %v952, %v944
        %v1201 = vpack.c.b16 %v961, %v953
        %v1202 = vpack.c.b16 %v962, %v954
        %v1203 = vpack.c.b16 %v963, %v955
        %v1204 = vpack.c.b16 %v964, %v956
        %v1205 = vpack.c.b16 %v965, %v957
        %v1206 = vpack.c.b16 %v966, %v958
        %v1207 = vpack.c.b16 %v967, %v959
        %v1208 = vpack.c.b16 %v968, %v960
        %v1209 = vpack.c.b16 %v977, %v969
        %v1210 = vpack.c.b16 %v978, %v970
        %v1211 = vpack.c.b16 %v979, %v971
        %v1212 = vpack.c.b16 %v980, %v972
        %v1213 = vpack.c.b16 %v981, %v973
        %v1214 = vpack.c.b16 %v982, %v974
        %v1215 = vpack.c.b16 %v983, %v975
        %v1216 = vpack.c.b16 %v984, %v976
        %v1217 = vpack.c.b16 %v993, %v985
        %v1218 = vpack.c.b16 %v994, %v986
        %v1219 = vpack.c.b16 %v995, %v987
        %v1220 = vpack.c.b16 %v996, %v988
        %v1221 = vpack.c.b16 %v997, %v989
        %v1222 = vpack.c.b16 %v998, %v990
        %v1223 = vpack.c.b16 %v999, %v991
        %v1224 = vpack.c.b16 %v1000, %v992
        %v1225 = vpack.c.b16 %v1009, %v1001
        %v1226 = vpack.c.b16 %v1010, %v1002
        %v1227 = vpack.c.b16 %v1011, %v1003
        %v1228 = vpack.c.b16 %v1012, %v1004
        %v1229 = vpack.c.b16 %v1013, %v1005
        %v1230 = vpack.c.b16 %v1014, %v1006
        %v1231 = vpack.c.b16 %v1015, %v1007
        %v1232 = vpack.c.b16 %v1016, %v1008
        %v1233 = vpack.c.b16 %v1025, %v1017
        %v1234 = vpack.c.b16 %v1026, %v1018
        %v1235 = vpack.c.b16 %v1027, %v1019
        %v1236 = vpack.c.b16 %v1028, %v1020
        %v1237 = vpack.c.b16 %v1029, %v1021
        %v1238 = vpack.c.b16 %v1030, %v1022
        %v1239 = vpack.c.b16 %v1031, %v1023
        %v1240 = vpack.c.b16 %v1032, %v1024
        %v1241 = vpack.c.b16 %v1041, %v1033
        %v1242 = vpack.c.b16 %v1042, %v1034
        %v1243 = vpack.c.b16 %v1043, %v1035
        %v1244 = vpack.c.b16 %v1044, %v1036
        %v1245 = vpack.c.b16 %v1045, %v1037
        %v1246 = vpack.c.b16 %v1046, %v1038
        %v1247 = vpack.c.b16 %v1047, %v1039
        %v1248 = vpack.c.b16 %v1048, %v1040
        %v1249 = vpack.c.b16 %v1057, %v1049
        %v1250 = vpack.c.b16 %v1058, %v1050
        %v1251 = vpack.c.b16 %v1059, %v1051
        %v1252 = vpack.c.b16 %v1060, %v1052
        %v1253 = vpack.c.b16 %v1061, %v1053
        %v1254 = vpack.c.b16 %v1062, %v1054
        %v1255 = vpack.c.b16 %v1063, %v1055
        %v1256 = vpack.c.b16 %v1064, %v1056
        %v1257 = vpack.c.b16 %v1073, %v1065
        %v1258 = vpack.c.b16 %v1074, %v1066
        %v1259 = vpack.c.b16 %v1075, %v1067
        %v1260 = vpack.c.b16 %v1076, %v1068
        %v1261 = vpack.c.b16 %v1077, %v1069
        %v1262 = vpack.c.b16 %v1078, %v1070
        %v1263 = vpack.c.b16 %v1079, %v1071
        %v1264 = vpack.c.b16 %v1080, %v1072
        %v1265 = vpack.c.b16 %v1089, %v1081
        %v1266 = vpack.c.b16 %v1090, %v1082
        %v1267 = vpack.c.b16 %v1091, %v1083
        %v1268 = vpack.c.b16 %v1092, %v1084
        %v1269 = vpack.c.b16 %v1093, %v1085
        %v1270 = vpack.c.b16 %v1094, %v1086
        %v1271 = vpack.c.b16 %v1095, %v1087
        %v1272 = vpack.c.b16 %v1096, %v1088
        %v1273 = vpack.c.b16 %v1105, %v1097
        %v1274 = vpack.c.b16 %v1106, %v1098
        %v1275 = vpack.c.b16 %v1107, %v1099
        %v1276 = vpack.c.b16 %v1108, %v1100
        %v1277 = vpack.c.b16 %v1109, %v1101
        %v1278 = vpack.c.b16 %v1110, %v1102
        %v1279 = vpack.c.b16 %v1111, %v1103
        %v1280 = vpack.c.b16 %v1112, %v1104
        %v1281 = vpack.c.b16 %v1121, %v1113
        %v1282 = vpack.c.b16 %v1122, %v1114
        %v1283 = vpack.c.b16 %v1123, %v1115
        %v1284 = vpack.c.b16 %v1124, %v1116
        %v1285 = vpack.c.b16 %v1125, %v1117
        %v1286 = vpack.c.b16 %v1126, %v1118
        %v1287 = vpack.c.b16 %v1127, %v1119
        %v1288 = vpack.c.b16 %v1128, %v1120
        %v1289 = vpack.c.b16 %v1137, %v1129
        %v1290 = vpack.c.b16 %v1138, %v1130
        %v1291 = vpack.c.b16 %v1139, %v1131
        %v1292 = vpack.c.b16 %v1140, %v1132
        %v1293 = vpack.c.b16 %v1141, %v1133
        %v1294 = vpack.c.b16 %v1142, %v1134
        %v1295 = vpack.c.b16 %v1143, %v1135
        %v1296 = vpack.c.b16 %v1144, %v1136
        %v1297 = vpack.c.b16 %v1153, %v1145
        %v1298 = vpack.c.b16 %v1154, %v1146
        %v1299 = vpack.c.b16 %v1155, %v1147
        %v1300 = vpack.c.b16 %v1156, %v1148
        %v1301 = vpack.c.b16 %v1157, %v1149
        %v1302 = vpack.c.b16 %v1158, %v1150
        %v1303 = vpack.c.b16 %v1159, %v1151
        %v1304 = vpack.c.b16 %v1160, %v1152
        %v1305 = vpack.c.b16 %v1169, %v1161
        %v1306 = vpack.c.b16 %v1170, %v1162
        %v1307 = vpack.c.b16 %v1171, %v1163
        %v1308 = vpack.c.b16 %v1172, %v1164
        %v1309 = vpack.c.b16 %v1173, %v1165
        %v1310 = vpack.c.b16 %v1174, %v1166
        %v1311 = vpack.c.b16 %v1175, %v1167
        %v1312 = vpack.c.b16 %v1176, %v1168
        %v1313 = vpack.c.b16 %v1185, %v1177
        %v1314 = vpack.c.b16 %v1186, %v1178
        %v1315 = vpack.c.b16 %v1187, %v1179
        %v1316 = vpack.c.b16 %v1188, %v1180
        %v1317 = vpack.c.b16 %v1189, %v1181
        %v1318 = vpack.c.b16 %v1190, %v1182
        %v1319 = vpack.c.b16 %v1191, %v1183
        %v1320 = vpack.c.b16 %v1192, %v1184
        %1449 = vmatprep.subr.bf16.mxu0 %v1194
        %1450 = vmatpush1.bf16.msra.mxu0 %v1193
        %1451 = vmatprep.subr.bf16.mxu0 %v1202
        %1452 = vmatpush1.bf16.msra.mxu0 %v1201
        %1453 = vmatprep.subr.bf16.mxu0 %v1210
        %1454 = vmatpush1.bf16.msra.mxu0 %v1209
        %1455 = vmatprep.subr.bf16.mxu0 %v1218
        %1456 = vmatpush1.bf16.msra.mxu0 %v1217
        %1457 = vmatprep.subr.bf16.mxu0 %v1226
        %1458 = vmatpush1.bf16.msra.mxu0 %v1225
        %1459 = vmatprep.subr.bf16.mxu0 %v1234
        %1460 = vmatpush1.bf16.msra.mxu0 %v1233
        %1461 = vmatprep.subr.bf16.mxu0 %v1242
        %1462 = vmatpush1.bf16.msra.mxu0 %v1241
        %1463 = vmatprep.subr.bf16.mxu0 %v1250
        %1464 = vmatpush1.bf16.msra.mxu0 %v1249
        %1465 = vmatprep.subr.bf16.mxu0 %v1258
        %1466 = vmatpush1.bf16.msra.mxu0 %v1257
        %1467 = vmatprep.subr.bf16.mxu0 %v1266
        %1468 = vmatpush1.bf16.msra.mxu0 %v1265
        %1469 = vmatprep.subr.bf16.mxu0 %v1274
        %1470 = vmatpush1.bf16.msra.mxu0 %v1273
        %1471 = vmatprep.subr.bf16.mxu0 %v1282
        %1472 = vmatpush1.bf16.msra.mxu0 %v1281
        %1473 = vmatprep.subr.bf16.mxu0 %v1290
        %1474 = vmatpush1.bf16.msra.mxu0 %v1289
        %1475 = vmatprep.subr.bf16.mxu0 %v1298
        %1476 = vmatpush1.bf16.msra.mxu0 %v1297
        %1477 = vmatprep.subr.bf16.mxu0 %v1306
        %1478 = vmatpush1.bf16.msra.mxu0 %v1305
        %1479 = vmatprep.subr.bf16.mxu0 %v1314
        %1480 = vmatpush1.bf16.msra.mxu0 %v1313
        %1481 = vmatprep.mubr.bf16.mxu0 %v680
        %1482 = vmatmul.mubr.bf16.gmra.mrb[0].mxu0 %v679
        %v1483 = vpop.f32.mrb[0].mxu0
        %v1484 = vadd.f32 0.0, %v1483
        %v1485 = vpop.f32.mrb[0].mxu0
        %v1486 = vadd.f32 0.0, %v1485
        %v1487 = vpop.f32.mrb[0].mxu0
        %v1488 = vpop.f32.mrb[0].mxu0
        %1489 = vdwg.mxu0
        %1490 = vmatprep.subr.bf16.mxu0 %v1196
        %1491 = vmatpush1.bf16.msra.mxu0 %v1195
        %1492 = vmatprep.subr.bf16.mxu0 %v1204
        %1493 = vmatpush1.bf16.msra.mxu0 %v1203
        %1494 = vmatprep.subr.bf16.mxu0 %v1212
        %1495 = vmatpush1.bf16.msra.mxu0 %v1211
        %1496 = vmatprep.subr.bf16.mxu0 %v1220
        %1497 = vmatpush1.bf16.msra.mxu0 %v1219
        %1498 = vmatprep.subr.bf16.mxu0 %v1228
        %1499 = vmatpush1.bf16.msra.mxu0 %v1227
        %1500 = vmatprep.subr.bf16.mxu0 %v1236
        %1501 = vmatpush1.bf16.msra.mxu0 %v1235
        %1502 = vmatprep.subr.bf16.mxu0 %v1244
        %1503 = vmatpush1.bf16.msra.mxu0 %v1243
        %1504 = vmatprep.subr.bf16.mxu0 %v1252
        %1505 = vmatpush1.bf16.msra.mxu0 %v1251
        %1506 = vmatprep.subr.bf16.mxu0 %v1260
        %1507 = vmatpush1.bf16.msra.mxu0 %v1259
        %1508 = vmatprep.subr.bf16.mxu0 %v1268
        %1509 = vmatpush1.bf16.msra.mxu0 %v1267
        %1510 = vmatprep.subr.bf16.mxu0 %v1276
        %1511 = vmatpush1.bf16.msra.mxu0 %v1275
        %1512 = vmatprep.subr.bf16.mxu0 %v1284
        %1513 = vmatpush1.bf16.msra.mxu0 %v1283
        %1514 = vmatprep.subr.bf16.mxu0 %v1292
        %1515 = vmatpush1.bf16.msra.mxu0 %v1291
        %1516 = vmatprep.subr.bf16.mxu0 %v1300
        %1517 = vmatpush1.bf16.msra.mxu0 %v1299
        %1518 = vmatprep.subr.bf16.mxu0 %v1308
        %1519 = vmatpush1.bf16.msra.mxu0 %v1307
        %1520 = vmatprep.subr.bf16.mxu0 %v1316
        %1521 = vmatpush1.bf16.msra.mxu0 %v1315
        %1522 = vmatprep.mubr.bf16.mxu0 %v680
        %1523 = vmatmul.mubr.bf16.gmra.mrb[0].mxu0 %v679
        %v1524 = vpop.f32.mrb[0].mxu0
        %v1525 = vadd.f32 0.0, %v1524
        %v1526 = vpop.f32.mrb[0].mxu0
        %v1527 = vadd.f32 0.0, %v1526
        %v1528 = vpop.f32.mrb[0].mxu0
        %v1529 = vpop.f32.mrb[0].mxu0
        %1530 = vdwg.mxu0
        %1531 = vmatprep.subr.bf16.mxu0 %v1198
        %1532 = vmatpush1.bf16.msra.mxu0 %v1197
        %1533 = vmatprep.subr.bf16.mxu0 %v1206
        %1534 = vmatpush1.bf16.msra.mxu0 %v1205
        %1535 = vmatprep.subr.bf16.mxu0 %v1214
        %1536 = vmatpush1.bf16.msra.mxu0 %v1213
        %1537 = vmatprep.subr.bf16.mxu0 %v1222
        %1538 = vmatpush1.bf16.msra.mxu0 %v1221
        %1539 = vmatprep.subr.bf16.mxu0 %v1230
        %1540 = vmatpush1.bf16.msra.mxu0 %v1229
        %1541 = vmatprep.subr.bf16.mxu0 %v1238
        %1542 = vmatpush1.bf16.msra.mxu0 %v1237
        %1543 = vmatprep.subr.bf16.mxu0 %v1246
        %1544 = vmatpush1.bf16.msra.mxu0 %v1245
        %1545 = vmatprep.subr.bf16.mxu0 %v1254
        %1546 = vmatpush1.bf16.msra.mxu0 %v1253
        %1547 = vmatprep.subr.bf16.mxu0 %v1262
        %1548 = vmatpush1.bf16.msra.mxu0 %v1261
        %1549 = vmatprep.subr.bf16.mxu0 %v1270
        %1550 = vmatpush1.bf16.msra.mxu0 %v1269
        %1551 = vmatprep.subr.bf16.mxu0 %v1278
        %1552 = vmatpush1.bf16.msra.mxu0 %v1277
        %1553 = vmatprep.subr.bf16.mxu0 %v1286
        %1554 = vmatpush1.bf16.msra.mxu0 %v1285
        %1555 = vmatprep.subr.bf16.mxu0 %v1294
        %1556 = vmatpush1.bf16.msra.mxu0 %v1293
        %1557 = vmatprep.subr.bf16.mxu0 %v1302
        %1558 = vmatpush1.bf16.msra.mxu0 %v1301
        %1559 = vmatprep.subr.bf16.mxu0 %v1310
        %1560 = vmatpush1.bf16.msra.mxu0 %v1309
        %1561 = vmatprep.subr.bf16.mxu0 %v1318
        %1562 = vmatpush1.bf16.msra.mxu0 %v1317
        %1563 = vmatprep.mubr.bf16.mxu0 %v680
        %1564 = vmatmul.mubr.bf16.gmra.mrb[0].mxu0 %v679
        %v1565 = vpop.f32.mrb[0].mxu0
        %v1566 = vadd.f32 0.0, %v1565
        %v1567 = vpop.f32.mrb[0].mxu0
        %v1568 = vadd.f32 0.0, %v1567
        %v1569 = vpop.f32.mrb[0].mxu0
        %v1570 = vpop.f32.mrb[0].mxu0
        %1571 = vdwg.mxu0
        %1572 = vmatprep.subr.bf16.mxu0 %v1200
        %1573 = vmatpush1.bf16.msra.mxu0 %v1199
        %1574 = vmatprep.subr.bf16.mxu0 %v1208
        %1575 = vmatpush1.bf16.msra.mxu0 %v1207
        %1576 = vmatprep.subr.bf16.mxu0 %v1216
        %1577 = vmatpush1.bf16.msra.mxu0 %v1215
        %1578 = vmatprep.subr.bf16.mxu0 %v1224
        %1579 = vmatpush1.bf16.msra.mxu0 %v1223
        %1580 = vmatprep.subr.bf16.mxu0 %v1232
        %1581 = vmatpush1.bf16.msra.mxu0 %v1231
        %1582 = vmatprep.subr.bf16.mxu0 %v1240
        %1583 = vmatpush1.bf16.msra.mxu0 %v1239
        %1584 = vmatprep.subr.bf16.mxu0 %v1248
        %1585 = vmatpush1.bf16.msra.mxu0 %v1247
        %1586 = vmatprep.subr.bf16.mxu0 %v1256
        %1587 = vmatpush1.bf16.msra.mxu0 %v1255
        %1588 = vmatprep.subr.bf16.mxu0 %v1264
        %1589 = vmatpush1.bf16.msra.mxu0 %v1263
        %1590 = vmatprep.subr.bf16.mxu0 %v1272
        %1591 = vmatpush1.bf16.msra.mxu0 %v1271
        %1592 = vmatprep.subr.bf16.mxu0 %v1280
        %1593 = vmatpush1.bf16.msra.mxu0 %v1279
        %1594 = vmatprep.subr.bf16.mxu0 %v1288
        %1595 = vmatpush1.bf16.msra.mxu0 %v1287
        %1596 = vmatprep.subr.bf16.mxu0 %v1296
        %1597 = vmatpush1.bf16.msra.mxu0 %v1295
        %1598 = vmatprep.subr.bf16.mxu0 %v1304
        %1599 = vmatpush1.bf16.msra.mxu0 %v1303
        %1600 = vmatprep.subr.bf16.mxu0 %v1312
        %1601 = vmatpush1.bf16.msra.mxu0 %v1311
        %1602 = vmatprep.subr.bf16.mxu0 %v1320
        %1603 = vmatpush1.bf16.msra.mxu0 %v1319
        %1604 = vmatprep.mubr.bf16.mxu0 %v680
        %1605 = vmatmul.mubr.bf16.gmra.mrb[0].mxu0 %v679
        %v1606 = vpop.f32.mrb[0].mxu0
        %v1607 = vadd.f32 0.0, %v1606
        %v1608 = vpop.f32.mrb[0].mxu0
        %v1609 = vadd.f32 0.0, %v1608
        %v1610 = vpop.f32.mrb[0].mxu0
        %v1611 = vpop.f32.mrb[0].mxu0
        %1612 = vdwg.mxu0
        %v1741 = vunpack.c.l.b16 %v539
        %v1742 = vunpack.c.h.b16 %v539
        %v1743 = vunpack.c.l.b16 %v540
        %v1744 = vunpack.c.h.b16 %v540
        %v1745 = vunpack.c.l.b16 %v541
        %v1746 = vunpack.c.h.b16 %v541
        %v1747 = vunpack.c.l.b16 %v542
        %v1748 = vunpack.c.h.b16 %v542
        %v1749 = vunpack.c.l.b16 %v543
        %v1750 = vunpack.c.h.b16 %v543
        %v1751 = vunpack.c.l.b16 %v544
        %v1752 = vunpack.c.h.b16 %v544
        %v1753 = vunpack.c.l.b16 %v545
        %v1754 = vunpack.c.h.b16 %v545
        %v1755 = vunpack.c.l.b16 %v546
        %v1756 = vunpack.c.h.b16 %v546
        %v1757 = vunpack.c.l.b16 %v547
        %v1758 = vunpack.c.h.b16 %v547
        %v1759 = vunpack.c.l.b16 %v548
        %v1760 = vunpack.c.h.b16 %v548
        %v1761 = vunpack.c.l.b16 %v549
        %v1762 = vunpack.c.h.b16 %v549
        %v1763 = vunpack.c.l.b16 %v550
        %v1764 = vunpack.c.h.b16 %v550
        %v1765 = vunpack.c.l.b16 %v551
        %v1766 = vunpack.c.h.b16 %v551
        %v1767 = vunpack.c.l.b16 %v552
        %v1768 = vunpack.c.h.b16 %v552
        %v1769 = vunpack.c.l.b16 %v553
        %v1770 = vunpack.c.h.b16 %v553
        %v1771 = vunpack.c.l.b16 %v554
        %v1772 = vunpack.c.h.b16 %v554
        %v1773 = vunpack.c.l.b16 %v555
        %v1774 = vunpack.c.h.b16 %v555
        %v1775 = vunpack.c.l.b16 %v556
        %v1776 = vunpack.c.h.b16 %v556
        %v1777 = vunpack.c.l.b16 %v557
        %v1778 = vunpack.c.h.b16 %v557
        %v1779 = vunpack.c.l.b16 %v558
        %v1780 = vunpack.c.h.b16 %v558
        %v1781 = vunpack.c.l.b16 %v559
        %v1782 = vunpack.c.h.b16 %v559
        %v1783 = vunpack.c.l.b16 %v560
        %v1784 = vunpack.c.h.b16 %v560
        %v1785 = vunpack.c.l.b16 %v561
        %v1786 = vunpack.c.h.b16 %v561
        %v1787 = vunpack.c.l.b16 %v562
        %v1788 = vunpack.c.h.b16 %v562
        %v1789 = vunpack.c.l.b16 %v563
        %v1790 = vunpack.c.h.b16 %v563
        %v1791 = vunpack.c.l.b16 %v564
        %v1792 = vunpack.c.h.b16 %v564
        %v1793 = vunpack.c.l.b16 %v565
        %v1794 = vunpack.c.h.b16 %v565
        %v1795 = vunpack.c.l.b16 %v566
        %v1796 = vunpack.c.h.b16 %v566
        %v1797 = vunpack.c.l.b16 %v567
        %v1798 = vunpack.c.h.b16 %v567
        %v1799 = vunpack.c.l.b16 %v568
        %v1800 = vunpack.c.h.b16 %v568
        %v1801 = vunpack.c.l.b16 %v569
        %v1802 = vunpack.c.h.b16 %v569
        %v1803 = vunpack.c.l.b16 %v570
        %v1804 = vunpack.c.h.b16 %v570
        %v1805 = vunpack.c.l.b16 %v571
        %v1806 = vunpack.c.h.b16 %v571
        %v1807 = vunpack.c.l.b16 %v572
        %v1808 = vunpack.c.h.b16 %v572
        %v1809 = vunpack.c.l.b16 %v573
        %v1810 = vunpack.c.h.b16 %v573
        %v1811 = vunpack.c.l.b16 %v574
        %v1812 = vunpack.c.h.b16 %v574
        %v1813 = vunpack.c.l.b16 %v575
        %v1814 = vunpack.c.h.b16 %v575
        %v1815 = vunpack.c.l.b16 %v576
        %v1816 = vunpack.c.h.b16 %v576
        %v1817 = vunpack.c.l.b16 %v577
        %v1818 = vunpack.c.h.b16 %v577
        %v1819 = vunpack.c.l.b16 %v578
        %v1820 = vunpack.c.h.b16 %v578
        %v1821 = vunpack.c.l.b16 %v579
        %v1822 = vunpack.c.h.b16 %v579
        %v1823 = vunpack.c.l.b16 %v580
        %v1824 = vunpack.c.h.b16 %v580
        %v1825 = vunpack.c.l.b16 %v581
        %v1826 = vunpack.c.h.b16 %v581
        %v1827 = vunpack.c.l.b16 %v582
        %v1828 = vunpack.c.h.b16 %v582
        %v1829 = vunpack.c.l.b16 %v583
        %v1830 = vunpack.c.h.b16 %v583
        %v1831 = vunpack.c.l.b16 %v584
        %v1832 = vunpack.c.h.b16 %v584
        %v1833 = vunpack.c.l.b16 %v585
        %v1834 = vunpack.c.h.b16 %v585
        %v1835 = vunpack.c.l.b16 %v586
        %v1836 = vunpack.c.h.b16 %v586
        %v1837 = vunpack.c.l.b16 %v587
        %v1838 = vunpack.c.h.b16 %v587
        %v1839 = vunpack.c.l.b16 %v588
        %v1840 = vunpack.c.h.b16 %v588
        %v1841 = vunpack.c.l.b16 %v589
        %v1842 = vunpack.c.h.b16 %v589
        %v1843 = vunpack.c.l.b16 %v590
        %v1844 = vunpack.c.h.b16 %v590
        %v1845 = vunpack.c.l.b16 %v591
        %v1846 = vunpack.c.h.b16 %v591
        %v1847 = vunpack.c.l.b16 %v592
        %v1848 = vunpack.c.h.b16 %v592
        %v1849 = vunpack.c.l.b16 %v593
        %v1850 = vunpack.c.h.b16 %v593
        %v1851 = vunpack.c.l.b16 %v594
        %v1852 = vunpack.c.h.b16 %v594
        %v1853 = vunpack.c.l.b16 %v595
        %v1854 = vunpack.c.h.b16 %v595
        %v1855 = vunpack.c.l.b16 %v596
        %v1856 = vunpack.c.h.b16 %v596
        %v1857 = vunpack.c.l.b16 %v597
        %v1858 = vunpack.c.h.b16 %v597
        %v1859 = vunpack.c.l.b16 %v598
        %v1860 = vunpack.c.h.b16 %v598
        %v1861 = vunpack.c.l.b16 %v599
        %v1862 = vunpack.c.h.b16 %v599
        %v1863 = vunpack.c.l.b16 %v600
        %v1864 = vunpack.c.h.b16 %v600
        %v1865 = vunpack.c.l.b16 %v601
        %v1866 = vunpack.c.h.b16 %v601
        %v1867 = vunpack.c.l.b16 %v602
        %v1868 = vunpack.c.h.b16 %v602
        %v1869 = vunpack.c.l.b16 %v603
        %v1870 = vunpack.c.h.b16 %v603
        %v1871 = vunpack.c.l.b16 %v604
        %v1872 = vunpack.c.h.b16 %v604
        %v1873 = vunpack.c.l.b16 %v605
        %v1874 = vunpack.c.h.b16 %v605
        %v1875 = vunpack.c.l.b16 %v606
        %v1876 = vunpack.c.h.b16 %v606
        %v1877 = vunpack.c.l.b16 %v607
        %v1878 = vunpack.c.h.b16 %v607
        %v1879 = vunpack.c.l.b16 %v608
        %v1880 = vunpack.c.h.b16 %v608
        %v1881 = vunpack.c.l.b16 %v609
        %v1882 = vunpack.c.h.b16 %v609
        %v1883 = vunpack.c.l.b16 %v610
        %v1884 = vunpack.c.h.b16 %v610
        %v1885 = vunpack.c.l.b16 %v611
        %v1886 = vunpack.c.h.b16 %v611
        %v1887 = vunpack.c.l.b16 %v612
        %v1888 = vunpack.c.h.b16 %v612
        %v1889 = vunpack.c.l.b16 %v613
        %v1890 = vunpack.c.h.b16 %v613
        %v1891 = vunpack.c.l.b16 %v614
        %v1892 = vunpack.c.h.b16 %v614
        %v1893 = vunpack.c.l.b16 %v615
        %v1894 = vunpack.c.h.b16 %v615
        %v1895 = vunpack.c.l.b16 %v616
        %v1896 = vunpack.c.h.b16 %v616
        %v1897 = vunpack.c.l.b16 %v617
        %v1898 = vunpack.c.h.b16 %v617
        %v1899 = vunpack.c.l.b16 %v618
        %v1900 = vunpack.c.h.b16 %v618
        %v1901 = vunpack.c.l.b16 %v619
        %v1902 = vunpack.c.h.b16 %v619
        %v1903 = vunpack.c.l.b16 %v620
        %v1904 = vunpack.c.h.b16 %v620
        %v1905 = vunpack.c.l.b16 %v621
        %v1906 = vunpack.c.h.b16 %v621
        %v1907 = vunpack.c.l.b16 %v622
        %v1908 = vunpack.c.h.b16 %v622
        %v1909 = vunpack.c.l.b16 %v623
        %v1910 = vunpack.c.h.b16 %v623
        %v1911 = vunpack.c.l.b16 %v624
        %v1912 = vunpack.c.h.b16 %v624
        %v1913 = vunpack.c.l.b16 %v625
        %v1914 = vunpack.c.h.b16 %v625
        %v1915 = vunpack.c.l.b16 %v626
        %v1916 = vunpack.c.h.b16 %v626
        %v1917 = vunpack.c.l.b16 %v627
        %v1918 = vunpack.c.h.b16 %v627
        %v1919 = vunpack.c.l.b16 %v628
        %v1920 = vunpack.c.h.b16 %v628
        %v1921 = vunpack.c.l.b16 %v629
        %v1922 = vunpack.c.h.b16 %v629
        %v1923 = vunpack.c.l.b16 %v630
        %v1924 = vunpack.c.h.b16 %v630
        %v1925 = vunpack.c.l.b16 %v631
        %v1926 = vunpack.c.h.b16 %v631
        %v1927 = vunpack.c.l.b16 %v632
        %v1928 = vunpack.c.h.b16 %v632
        %v1929 = vunpack.c.l.b16 %v633
        %v1930 = vunpack.c.h.b16 %v633
        %v1931 = vunpack.c.l.b16 %v634
        %v1932 = vunpack.c.h.b16 %v634
        %v1933 = vunpack.c.l.b16 %v635
        %v1934 = vunpack.c.h.b16 %v635
        %v1935 = vunpack.c.l.b16 %v636
        %v1936 = vunpack.c.h.b16 %v636
        %v1937 = vunpack.c.l.b16 %v637
        %v1938 = vunpack.c.h.b16 %v637
        %v1939 = vunpack.c.l.b16 %v638
        %v1940 = vunpack.c.h.b16 %v638
        %v1941 = vunpack.c.l.b16 %v639
        %v1942 = vunpack.c.h.b16 %v639
        %v1943 = vunpack.c.l.b16 %v640
        %v1944 = vunpack.c.h.b16 %v640
        %v1945 = vunpack.c.l.b16 %v641
        %v1946 = vunpack.c.h.b16 %v641
        %v1947 = vunpack.c.l.b16 %v642
        %v1948 = vunpack.c.h.b16 %v642
        %v1949 = vunpack.c.l.b16 %v643
        %v1950 = vunpack.c.h.b16 %v643
        %v1951 = vunpack.c.l.b16 %v644
        %v1952 = vunpack.c.h.b16 %v644
        %v1953 = vunpack.c.l.b16 %v645
        %v1954 = vunpack.c.h.b16 %v645
        %v1955 = vunpack.c.l.b16 %v646
        %v1956 = vunpack.c.h.b16 %v646
        %v1957 = vunpack.c.l.b16 %v647
        %v1958 = vunpack.c.h.b16 %v647
        %v1959 = vunpack.c.l.b16 %v648
        %v1960 = vunpack.c.h.b16 %v648
        %v1961 = vunpack.c.l.b16 %v649
        %v1962 = vunpack.c.h.b16 %v649
        %v1963 = vunpack.c.l.b16 %v650
        %v1964 = vunpack.c.h.b16 %v650
        %v1965 = vunpack.c.l.b16 %v651
        %v1966 = vunpack.c.h.b16 %v651
        %v1967 = vunpack.c.l.b16 %v652
        %v1968 = vunpack.c.h.b16 %v652
        %v1969 = vunpack.c.l.b16 %v653
        %v1970 = vunpack.c.h.b16 %v653
        %v1971 = vunpack.c.l.b16 %v654
        %v1972 = vunpack.c.h.b16 %v654
        %v1973 = vunpack.c.l.b16 %v655
        %v1974 = vunpack.c.h.b16 %v655
        %v1975 = vunpack.c.l.b16 %v656
        %v1976 = vunpack.c.h.b16 %v656
        %v1977 = vunpack.c.l.b16 %v657
        %v1978 = vunpack.c.h.b16 %v657
        %v1979 = vunpack.c.l.b16 %v658
        %v1980 = vunpack.c.h.b16 %v658
        %v1981 = vunpack.c.l.b16 %v659
        %v1982 = vunpack.c.h.b16 %v659
        %v1983 = vunpack.c.l.b16 %v660
        %v1984 = vunpack.c.h.b16 %v660
        %v1985 = vunpack.c.l.b16 %v661
        %v1986 = vunpack.c.h.b16 %v661
        %v1987 = vunpack.c.l.b16 %v662
        %v1988 = vunpack.c.h.b16 %v662
        %v1989 = vunpack.c.l.b16 %v663
        %v1990 = vunpack.c.h.b16 %v663
        %v1991 = vunpack.c.l.b16 %v664
        %v1992 = vunpack.c.h.b16 %v664
        %v1993 = vunpack.c.l.b16 %v665
        %v1994 = vunpack.c.h.b16 %v665
        %v1995 = vunpack.c.l.b16 %v666
        %v1996 = vunpack.c.h.b16 %v666
        %v1997 = vpack.c.b16 %v1749, %v1741
        %v1998 = vpack.c.b16 %v1750, %v1742
        %v1999 = vpack.c.b16 %v1751, %v1743
        %v2000 = vpack.c.b16 %v1752, %v1744
        %v2001 = vpack.c.b16 %v1753, %v1745
        %v2002 = vpack.c.b16 %v1754, %v1746
        %v2003 = vpack.c.b16 %v1755, %v1747
        %v2004 = vpack.c.b16 %v1756, %v1748
        %v2005 = vpack.c.b16 %v1765, %v1757
        %v2006 = vpack.c.b16 %v1766, %v1758
        %v2007 = vpack.c.b16 %v1767, %v1759
        %v2008 = vpack.c.b16 %v1768, %v1760
        %v2009 = vpack.c.b16 %v1769, %v1761
        %v2010 = vpack.c.b16 %v1770, %v1762
        %v2011 = vpack.c.b16 %v1771, %v1763
        %v2012 = vpack.c.b16 %v1772, %v1764
        %v2013 = vpack.c.b16 %v1781, %v1773
        %v2014 = vpack.c.b16 %v1782, %v1774
        %v2015 = vpack.c.b16 %v1783, %v1775
        %v2016 = vpack.c.b16 %v1784, %v1776
        %v2017 = vpack.c.b16 %v1785, %v1777
        %v2018 = vpack.c.b16 %v1786, %v1778
        %v2019 = vpack.c.b16 %v1787, %v1779
        %v2020 = vpack.c.b16 %v1788, %v1780
        %v2021 = vpack.c.b16 %v1797, %v1789
        %v2022 = vpack.c.b16 %v1798, %v1790
        %v2023 = vpack.c.b16 %v1799, %v1791
        %v2024 = vpack.c.b16 %v1800, %v1792
        %v2025 = vpack.c.b16 %v1801, %v1793
        %v2026 = vpack.c.b16 %v1802, %v1794
        %v2027 = vpack.c.b16 %v1803, %v1795
        %v2028 = vpack.c.b16 %v1804, %v1796
        %v2029 = vpack.c.b16 %v1813, %v1805
        %v2030 = vpack.c.b16 %v1814, %v1806
        %v2031 = vpack.c.b16 %v1815, %v1807
        %v2032 = vpack.c.b16 %v1816, %v1808
        %v2033 = vpack.c.b16 %v1817, %v1809
        %v2034 = vpack.c.b16 %v1818, %v1810
        %v2035 = vpack.c.b16 %v1819, %v1811
        %v2036 = vpack.c.b16 %v1820, %v1812
        %v2037 = vpack.c.b16 %v1829, %v1821
        %v2038 = vpack.c.b16 %v1830, %v1822
        %v2039 = vpack.c.b16 %v1831, %v1823
        %v2040 = vpack.c.b16 %v1832, %v1824
        %v2041 = vpack.c.b16 %v1833, %v1825
        %v2042 = vpack.c.b16 %v1834, %v1826
        %v2043 = vpack.c.b16 %v1835, %v1827
        %v2044 = vpack.c.b16 %v1836, %v1828
        %v2045 = vpack.c.b16 %v1845, %v1837
        %v2046 = vpack.c.b16 %v1846, %v1838
        %v2047 = vpack.c.b16 %v1847, %v1839
        %v2048 = vpack.c.b16 %v1848, %v1840
        %v2049 = vpack.c.b16 %v1849, %v1841
        %v2050 = vpack.c.b16 %v1850, %v1842
        %v2051 = vpack.c.b16 %v1851, %v1843
        %v2052 = vpack.c.b16 %v1852, %v1844
        %v2053 = vpack.c.b16 %v1861, %v1853
        %v2054 = vpack.c.b16 %v1862, %v1854
        %v2055 = vpack.c.b16 %v1863, %v1855
        %v2056 = vpack.c.b16 %v1864, %v1856
        %v2057 = vpack.c.b16 %v1865, %v1857
        %v2058 = vpack.c.b16 %v1866, %v1858
        %v2059 = vpack.c.b16 %v1867, %v1859
        %v2060 = vpack.c.b16 %v1868, %v1860
        %v2061 = vpack.c.b16 %v1877, %v1869
        %v2062 = vpack.c.b16 %v1878, %v1870
        %v2063 = vpack.c.b16 %v1879, %v1871
        %v2064 = vpack.c.b16 %v1880, %v1872
        %v2065 = vpack.c.b16 %v1881, %v1873
        %v2066 = vpack.c.b16 %v1882, %v1874
        %v2067 = vpack.c.b16 %v1883, %v1875
        %v2068 = vpack.c.b16 %v1884, %v1876
        %v2069 = vpack.c.b16 %v1893, %v1885
        %v2070 = vpack.c.b16 %v1894, %v1886
        %v2071 = vpack.c.b16 %v1895, %v1887
        %v2072 = vpack.c.b16 %v1896, %v1888
        %v2073 = vpack.c.b16 %v1897, %v1889
        %v2074 = vpack.c.b16 %v1898, %v1890
        %v2075 = vpack.c.b16 %v1899, %v1891
        %v2076 = vpack.c.b16 %v1900, %v1892
        %v2077 = vpack.c.b16 %v1909, %v1901
        %v2078 = vpack.c.b16 %v1910, %v1902
        %v2079 = vpack.c.b16 %v1911, %v1903
        %v2080 = vpack.c.b16 %v1912, %v1904
        %v2081 = vpack.c.b16 %v1913, %v1905
        %v2082 = vpack.c.b16 %v1914, %v1906
        %v2083 = vpack.c.b16 %v1915, %v1907
        %v2084 = vpack.c.b16 %v1916, %v1908
        %v2085 = vpack.c.b16 %v1925, %v1917
        %v2086 = vpack.c.b16 %v1926, %v1918
        %v2087 = vpack.c.b16 %v1927, %v1919
        %v2088 = vpack.c.b16 %v1928, %v1920
        %v2089 = vpack.c.b16 %v1929, %v1921
        %v2090 = vpack.c.b16 %v1930, %v1922
        %v2091 = vpack.c.b16 %v1931, %v1923
        %v2092 = vpack.c.b16 %v1932, %v1924
        %v2093 = vpack.c.b16 %v1941, %v1933
        %v2094 = vpack.c.b16 %v1942, %v1934
        %v2095 = vpack.c.b16 %v1943, %v1935
        %v2096 = vpack.c.b16 %v1944, %v1936
        %v2097 = vpack.c.b16 %v1945, %v1937
        %v2098 = vpack.c.b16 %v1946, %v1938
        %v2099 = vpack.c.b16 %v1947, %v1939
        %v2100 = vpack.c.b16 %v1948, %v1940
        %v2101 = vpack.c.b16 %v1957, %v1949
        %v2102 = vpack.c.b16 %v1958, %v1950
        %v2103 = vpack.c.b16 %v1959, %v1951
        %v2104 = vpack.c.b16 %v1960, %v1952
        %v2105 = vpack.c.b16 %v1961, %v1953
        %v2106 = vpack.c.b16 %v1962, %v1954
        %v2107 = vpack.c.b16 %v1963, %v1955
        %v2108 = vpack.c.b16 %v1964, %v1956
        %v2109 = vpack.c.b16 %v1973, %v1965
        %v2110 = vpack.c.b16 %v1974, %v1966
        %v2111 = vpack.c.b16 %v1975, %v1967
        %v2112 = vpack.c.b16 %v1976, %v1968
        %v2113 = vpack.c.b16 %v1977, %v1969
        %v2114 = vpack.c.b16 %v1978, %v1970
        %v2115 = vpack.c.b16 %v1979, %v1971
        %v2116 = vpack.c.b16 %v1980, %v1972
        %v2117 = vpack.c.b16 %v1989, %v1981
        %v2118 = vpack.c.b16 %v1990, %v1982
        %v2119 = vpack.c.b16 %v1991, %v1983
        %v2120 = vpack.c.b16 %v1992, %v1984
        %v2121 = vpack.c.b16 %v1993, %v1985
        %v2122 = vpack.c.b16 %v1994, %v1986
        %v2123 = vpack.c.b16 %v1995, %v1987
        %v2124 = vpack.c.b16 %v1996, %v1988
        %2253 = vmatprep.subr.bf16.mxu0 %v1998
        %2254 = vmatpush1.bf16.msra.mxu0 %v1997
        %2255 = vmatprep.subr.bf16.mxu0 %v2006
        %2256 = vmatpush1.bf16.msra.mxu0 %v2005
        %2257 = vmatprep.subr.bf16.mxu0 %v2014
        %2258 = vmatpush1.bf16.msra.mxu0 %v2013
        %2259 = vmatprep.subr.bf16.mxu0 %v2022
        %2260 = vmatpush1.bf16.msra.mxu0 %v2021
        %2261 = vmatprep.subr.bf16.mxu0 %v2030
        %2262 = vmatpush1.bf16.msra.mxu0 %v2029
        %2263 = vmatprep.subr.bf16.mxu0 %v2038
        %2264 = vmatpush1.bf16.msra.mxu0 %v2037
        %2265 = vmatprep.subr.bf16.mxu0 %v2046
        %2266 = vmatpush1.bf16.msra.mxu0 %v2045
        %2267 = vmatprep.subr.bf16.mxu0 %v2054
        %2268 = vmatpush1.bf16.msra.mxu0 %v2053
        %2269 = vmatprep.subr.bf16.mxu0 %v2062
        %2270 = vmatpush1.bf16.msra.mxu0 %v2061
        %2271 = vmatprep.subr.bf16.mxu0 %v2070
        %2272 = vmatpush1.bf16.msra.mxu0 %v2069
        %2273 = vmatprep.subr.bf16.mxu0 %v2078
        %2274 = vmatpush1.bf16.msra.mxu0 %v2077
        %2275 = vmatprep.subr.bf16.mxu0 %v2086
        %2276 = vmatpush1.bf16.msra.mxu0 %v2085
        %2277 = vmatprep.subr.bf16.mxu0 %v2094
        %2278 = vmatpush1.bf16.msra.mxu0 %v2093
        %2279 = vmatprep.subr.bf16.mxu0 %v2102
        %2280 = vmatpush1.bf16.msra.mxu0 %v2101
        %2281 = vmatprep.subr.bf16.mxu0 %v2110
        %2282 = vmatpush1.bf16.msra.mxu0 %v2109
        %2283 = vmatprep.subr.bf16.mxu0 %v2118
        %2284 = vmatpush1.bf16.msra.mxu0 %v2117
        %2285 = vmatprep.mubr.bf16.mxu0 %v538
        %2286 = vmatmul.mubr.bf16.gmra.mrb[0].mxu0 %v537
        %v2287 = vpop.f32.mrb[0].mxu0
        %v2288 = vadd.f32 %v1484, %v2287
        %v2289 = vpop.f32.mrb[0].mxu0
        %v2290 = vadd.f32 %v1486, %v2289
        %v2291 = vpop.f32.mrb[0].mxu0
        %v2292 = vpop.f32.mrb[0].mxu0
        %2293 = vdwg.mxu0
        %2294 = vmatprep.subr.bf16.mxu0 %v2000
        %2295 = vmatpush1.bf16.msra.mxu0 %v1999
        %2296 = vmatprep.subr.bf16.mxu0 %v2008
        %2297 = vmatpush1.bf16.msra.mxu0 %v2007
        %2298 = vmatprep.subr.bf16.mxu0 %v2016
        %2299 = vmatpush1.bf16.msra.mxu0 %v2015
        %2300 = vmatprep.subr.bf16.mxu0 %v2024
        %2301 = vmatpush1.bf16.msra.mxu0 %v2023
        %2302 = vmatprep.subr.bf16.mxu0 %v2032
        %2303 = vmatpush1.bf16.msra.mxu0 %v2031
        %2304 = vmatprep.subr.bf16.mxu0 %v2040
        %2305 = vmatpush1.bf16.msra.mxu0 %v2039
        %2306 = vmatprep.subr.bf16.mxu0 %v2048
        %2307 = vmatpush1.bf16.msra.mxu0 %v2047
        %2308 = vmatprep.subr.bf16.mxu0 %v2056
        %2309 = vmatpush1.bf16.msra.mxu0 %v2055
        %2310 = vmatprep.subr.bf16.mxu0 %v2064
        %2311 = vmatpush1.bf16.msra.mxu0 %v2063
        %2312 = vmatprep.subr.bf16.mxu0 %v2072
        %2313 = vmatpush1.bf16.msra.mxu0 %v2071
        %2314 = vmatprep.subr.bf16.mxu0 %v2080
        %2315 = vmatpush1.bf16.msra.mxu0 %v2079
        %2316 = vmatprep.subr.bf16.mxu0 %v2088
        %2317 = vmatpush1.bf16.msra.mxu0 %v2087
        %2318 = vmatprep.subr.bf16.mxu0 %v2096
        %2319 = vmatpush1.bf16.msra.mxu0 %v2095
        %2320 = vmatprep.subr.bf16.mxu0 %v2104
        %2321 = vmatpush1.bf16.msra.mxu0 %v2103
        %2322 = vmatprep.subr.bf16.mxu0 %v2112
        %2323 = vmatpush1.bf16.msra.mxu0 %v2111
        %2324 = vmatprep.subr.bf16.mxu0 %v2120
        %2325 = vmatpush1.bf16.msra.mxu0 %v2119
        %2326 = vmatprep.mubr.bf16.mxu0 %v538
        %2327 = vmatmul.mubr.bf16.gmra.mrb[0].mxu0 %v537
        %v2328 = vpop.f32.mrb[0].mxu0
        %v2329 = vadd.f32 %v1525, %v2328
        %v2330 = vpop.f32.mrb[0].mxu0
        %v2331 = vadd.f32 %v1527, %v2330
        %v2332 = vpop.f32.mrb[0].mxu0
        %v2333 = vpop.f32.mrb[0].mxu0
        %2334 = vdwg.mxu0
        %2335 = vmatprep.subr.bf16.mxu0 %v2002
        %2336 = vmatpush1.bf16.msra.mxu0 %v2001
        %2337 = vmatprep.subr.bf16.mxu0 %v2010
        %2338 = vmatpush1.bf16.msra.mxu0 %v2009
        %2339 = vmatprep.subr.bf16.mxu0 %v2018
        %2340 = vmatpush1.bf16.msra.mxu0 %v2017
        %2341 = vmatprep.subr.bf16.mxu0 %v2026
        %2342 = vmatpush1.bf16.msra.mxu0 %v2025
        %2343 = vmatprep.subr.bf16.mxu0 %v2034
        %2344 = vmatpush1.bf16.msra.mxu0 %v2033
        %2345 = vmatprep.subr.bf16.mxu0 %v2042
        %2346 = vmatpush1.bf16.msra.mxu0 %v2041
        %2347 = vmatprep.subr.bf16.mxu0 %v2050
        %2348 = vmatpush1.bf16.msra.mxu0 %v2049
        %2349 = vmatprep.subr.bf16.mxu0 %v2058
        %2350 = vmatpush1.bf16.msra.mxu0 %v2057
        %2351 = vmatprep.subr.bf16.mxu0 %v2066
        %2352 = vmatpush1.bf16.msra.mxu0 %v2065
        %2353 = vmatprep.subr.bf16.mxu0 %v2074
        %2354 = vmatpush1.bf16.msra.mxu0 %v2073
        %2355 = vmatprep.subr.bf16.mxu0 %v2082
        %2356 = vmatpush1.bf16.msra.mxu0 %v2081
        %2357 = vmatprep.subr.bf16.mxu0 %v2090
        %2358 = vmatpush1.bf16.msra.mxu0 %v2089
        %2359 = vmatprep.subr.bf16.mxu0 %v2098
        %2360 = vmatpush1.bf16.msra.mxu0 %v2097
        %2361 = vmatprep.subr.bf16.mxu0 %v2106
        %2362 = vmatpush1.bf16.msra.mxu0 %v2105
        %2363 = vmatprep.subr.bf16.mxu0 %v2114
        %2364 = vmatpush1.bf16.msra.mxu0 %v2113
        %2365 = vmatprep.subr.bf16.mxu0 %v2122
        %2366 = vmatpush1.bf16.msra.mxu0 %v2121
        %2367 = vmatprep.mubr.bf16.mxu0 %v538
        %2368 = vmatmul.mubr.bf16.gmra.mrb[0].mxu0 %v537
        %v2369 = vpop.f32.mrb[0].mxu0
        %v2370 = vadd.f32 %v1566, %v2369
        %v2371 = vpop.f32.mrb[0].mxu0
        %v2372 = vadd.f32 %v1568, %v2371
        %v2373 = vpop.f32.mrb[0].mxu0
        %v2374 = vpop.f32.mrb[0].mxu0
        %2375 = vdwg.mxu0
        %2376 = vmatprep.subr.bf16.mxu0 %v2004
        %2377 = vmatpush1.bf16.msra.mxu0 %v2003
        %2378 = vmatprep.subr.bf16.mxu0 %v2012
        %2379 = vmatpush1.bf16.msra.mxu0 %v2011
        %2380 = vmatprep.subr.bf16.mxu0 %v2020
        %2381 = vmatpush1.bf16.msra.mxu0 %v2019
        %2382 = vmatprep.subr.bf16.mxu0 %v2028
        %2383 = vmatpush1.bf16.msra.mxu0 %v2027
        %2384 = vmatprep.subr.bf16.mxu0 %v2036
        %2385 = vmatpush1.bf16.msra.mxu0 %v2035
        %2386 = vmatprep.subr.bf16.mxu0 %v2044
        %2387 = vmatpush1.bf16.msra.mxu0 %v2043
        %2388 = vmatprep.subr.bf16.mxu0 %v2052
        %2389 = vmatpush1.bf16.msra.mxu0 %v2051
        %2390 = vmatprep.subr.bf16.mxu0 %v2060
        %2391 = vmatpush1.bf16.msra.mxu0 %v2059
        %2392 = vmatprep.subr.bf16.mxu0 %v2068
        %2393 = vmatpush1.bf16.msra.mxu0 %v2067
        %2394 = vmatprep.subr.bf16.mxu0 %v2076
        %2395 = vmatpush1.bf16.msra.mxu0 %v2075
        %2396 = vmatprep.subr.bf16.mxu0 %v2084
        %2397 = vmatpush1.bf16.msra.mxu0 %v2083
        %2398 = vmatprep.subr.bf16.mxu0 %v2092
        %2399 = vmatpush1.bf16.msra.mxu0 %v2091
        %2400 = vmatprep.subr.bf16.mxu0 %v2100
        %2401 = vmatpush1.bf16.msra.mxu0 %v2099
        %2402 = vmatprep.subr.bf16.mxu0 %v2108
        %2403 = vmatpush1.bf16.msra.mxu0 %v2107
        %2404 = vmatprep.subr.bf16.mxu0 %v2116
        %2405 = vmatpush1.bf16.msra.mxu0 %v2115
        %2406 = vmatprep.subr.bf16.mxu0 %v2124
        %2407 = vmatpush1.bf16.msra.mxu0 %v2123
        %2408 = vmatprep.mubr.bf16.mxu0 %v538
        %2409 = vmatmul.mubr.bf16.gmra.mrb[0].mxu0 %v537
        %v2410 = vpop.f32.mrb[0].mxu0
        %v2411 = vadd.f32 %v1607, %v2410
        %v2412 = vpop.f32.mrb[0].mxu0
        %v2413 = vadd.f32 %v1609, %v2412
        %v2414 = vpop.f32.mrb[0].mxu0
        %v2415 = vpop.f32.mrb[0].mxu0
        %2416 = vdwg.mxu0
        %v2417 = vld [vmem:[%s4] ss:$4 sm:$0xff]
        %v2419 = vlaneseq
        %v2420 = vshrl.u32 %v2419, 7
        %v2421 = vsub.s32 0, %v2420
        %v2422 = vrot.slane %v2417, %v2421
        %v2423 = vlaneseq
        %v2424 = vshrl.u32 %v2423, 7
        %v2425 = vsub.s32 1, %v2424
        %v2426 = vrot.slane %v2417, %v2425
        %v2427 = vlaneseq
        %v2428 = vshrl.u32 %v2427, 7
        %v2429 = vsub.s32 2, %v2428
        %v2430 = vrot.slane %v2417, %v2429
        %v2431 = vlaneseq
        %v2432 = vshrl.u32 %v2431, 7
        %v2433 = vsub.s32 3, %v2432
        %v2434 = vrot.slane %v2417, %v2433
        %v2435 = vlaneseq
        %v2436 = vshrl.u32 %v2435, 7
        %v2437 = vsub.s32 4, %v2436
        %v2438 = vrot.slane %v2417, %v2437
        %v2439 = vlaneseq
        %v2440 = vshrl.u32 %v2439, 7
        %v2441 = vsub.s32 5, %v2440
        %v2442 = vrot.slane %v2417, %v2441
        %v2443 = vlaneseq
        %v2444 = vshrl.u32 %v2443, 7
        %v2445 = vsub.s32 6, %v2444
        %v2446 = vrot.slane %v2417, %v2445
        %v2447 = vlaneseq
        %v2448 = vshrl.u32 %v2447, 7
        %v2449 = vsub.s32 7, %v2448
        %v2450 = vrot.slane %v2417, %v2449
        %v2459 = vadd.f32 %v2288, %v2422
        %v2460 = vadd.f32 %v2290, %v2426
        %v2461 = vadd.f32 %v2329, %v2430
        %v2462 = vadd.f32 %v2331, %v2434
        %v2463 = vadd.f32 %v2370, %v2438
        %v2464 = vadd.f32 %v2372, %v2442
        %v2465 = vadd.f32 %v2411, %v2446
        %v2466 = vadd.f32 %v2413, %v2450
        %vm2467 = vcmp.ge.f32.partialorder %v2459, 0.0
        %vm2468 = vcmp.ge.f32.partialorder %v2460, 0.0
        %vm2469 = vcmp.ge.f32.partialorder %v2461, 0.0
        %vm2470 = vcmp.ge.f32.partialorder %v2462, 0.0
        %vm2471 = vcmp.ge.f32.partialorder %v2463, 0.0
        %vm2472 = vcmp.ge.f32.partialorder %v2464, 0.0
        %vm2473 = vcmp.ge.f32.partialorder %v2465, 0.0
        %vm2474 = vcmp.ge.f32.partialorder %v2466, 0.0
        %v2475 = vmul.f32 %v2459, 0.2
        %v2476 = vmul.f32 %v2460, 0.2
        %v2477 = vmul.f32 %v2461, 0.2
        %v2478 = vmul.f32 %v2462, 0.2
        %v2479 = vmul.f32 %v2463, 0.2
        %v2480 = vmul.f32 %v2464, 0.2
        %v2481 = vmul.f32 %v2465, 0.2
        %v2482 = vmul.f32 %v2466, 0.2
        %v2483 = vsel %vm2467, %v2459, %v2475
        %v2484 = vsel %vm2468, %v2460, %v2476
        %v2485 = vsel %vm2469, %v2461, %v2477
        %v2486 = vsel %vm2470, %v2462, %v2478
        %v2487 = vsel %vm2471, %v2463, %v2479
        %v2488 = vsel %vm2472, %v2464, %v2480
        %v2489 = vsel %vm2473, %v2465, %v2481
        %v2490 = vsel %vm2474, %v2466, %v2482
        %s2491 = scalar_lea.vmem %s4, 1
        %v2492 = vld [vmem:[%s2491] ss:$4 sm:$0xff]
        %v2494 = vlaneseq
        %v2495 = vshrl.u32 %v2494, 7
        %v2496 = vsub.s32 0, %v2495
        %v2497 = vrot.slane %v2492, %v2496
        %v2498 = vlaneseq
        %v2499 = vshrl.u32 %v2498, 7
        %v2500 = vsub.s32 1, %v2499
        %v2501 = vrot.slane %v2492, %v2500
        %v2502 = vlaneseq
        %v2503 = vshrl.u32 %v2502, 7
        %v2504 = vsub.s32 2, %v2503
        %v2505 = vrot.slane %v2492, %v2504
        %v2506 = vlaneseq
        %v2507 = vshrl.u32 %v2506, 7
        %v2508 = vsub.s32 3, %v2507
        %v2509 = vrot.slane %v2492, %v2508
        %v2510 = vlaneseq
        %v2511 = vshrl.u32 %v2510, 7
        %v2512 = vsub.s32 4, %v2511
        %v2513 = vrot.slane %v2492, %v2512
        %v2514 = vlaneseq
        %v2515 = vshrl.u32 %v2514, 7
        %v2516 = vsub.s32 5, %v2515
        %v2517 = vrot.slane %v2492, %v2516
        %v2518 = vlaneseq
        %v2519 = vshrl.u32 %v2518, 7
        %v2520 = vsub.s32 6, %v2519
        %v2521 = vrot.slane %v2492, %v2520
        %v2522 = vlaneseq
        %v2523 = vshrl.u32 %v2522, 7
        %v2524 = vsub.s32 7, %v2523
        %v2525 = vrot.slane %v2492, %v2524
        %v2534 = vmul.f32 %v2483, %v2497
        %v2535 = vmul.f32 %v2484, %v2501
        %v2536 = vmul.f32 %v2485, %v2505
        %v2537 = vmul.f32 %v2486, %v2509
        %v2538 = vmul.f32 %v2487, %v2513
        %v2539 = vmul.f32 %v2488, %v2517
        %v2540 = vmul.f32 %v2489, %v2521
        %v2541 = vmul.f32 %v2490, %v2525
        %s2542 = scalar_lea.vmem %s4, 2
        %v2543 = vld [vmem:[%s2542] ss:$4 sm:$0xff]
        %v2545 = vlaneseq
        %v2546 = vshrl.u32 %v2545, 7
        %v2547 = vsub.s32 0, %v2546
        %v2548 = vrot.slane %v2543, %v2547
        %v2549 = vlaneseq
        %v2550 = vshrl.u32 %v2549, 7
        %v2551 = vsub.s32 1, %v2550
        %v2552 = vrot.slane %v2543, %v2551
        %v2553 = vlaneseq
        %v2554 = vshrl.u32 %v2553, 7
        %v2555 = vsub.s32 2, %v2554
        %v2556 = vrot.slane %v2543, %v2555
        %v2557 = vlaneseq
        %v2558 = vshrl.u32 %v2557, 7
        %v2559 = vsub.s32 3, %v2558
        %v2560 = vrot.slane %v2543, %v2559
        %v2561 = vlaneseq
        %v2562 = vshrl.u32 %v2561, 7
        %v2563 = vsub.s32 4, %v2562
        %v2564 = vrot.slane %v2543, %v2563
        %v2565 = vlaneseq
        %v2566 = vshrl.u32 %v2565, 7
        %v2567 = vsub.s32 5, %v2566
        %v2568 = vrot.slane %v2543, %v2567
        %v2569 = vlaneseq
        %v2570 = vshrl.u32 %v2569, 7
        %v2571 = vsub.s32 6, %v2570
        %v2572 = vrot.slane %v2543, %v2571
        %v2573 = vlaneseq
        %v2574 = vshrl.u32 %v2573, 7
        %v2575 = vsub.s32 7, %v2574
        %v2576 = vrot.slane %v2543, %v2575
        %v2585 = vadd.f32 %v2534, %v2548
        %v2586 = vadd.f32 %v2535, %v2552
        %v2587 = vadd.f32 %v2536, %v2556
        %v2588 = vadd.f32 %v2537, %v2560
        %v2589 = vadd.f32 %v2538, %v2564
        %v2590 = vadd.f32 %v2539, %v2568
        %v2591 = vadd.f32 %v2540, %v2572
        %v2592 = vadd.f32 %v2541, %v2576
        %v2593 = vpack.c.bf16 %v2585, %v2585
        %v2594 = vpack.c.bf16 %v2586, %v2586
        %v2595 = vpack.c.bf16 %v2587, %v2587
        %v2596 = vpack.c.bf16 %v2588, %v2588
        %v2597 = vpack.c.bf16 %v2589, %v2589
        %v2598 = vpack.c.bf16 %v2590, %v2590
        %v2599 = vpack.c.bf16 %v2591, %v2591
        %v2600 = vpack.c.bf16 %v2592, %v2592
        %v2601 = vld [vmem:[#allocation7] sm:$0xff]
        %v2602 = vld [vmem:[#allocation7 + $0x8] sm:$0xff]
        %v2603 = vld [vmem:[#allocation7 + $0x10] sm:$0xff]
        %v2604 = vld [vmem:[#allocation7 + $0x18] sm:$0xff]
        %v2605 = vld [vmem:[#allocation7 + $0x20] sm:$0xff]
        %v2606 = vld [vmem:[#allocation7 + $0x28] sm:$0xff]
        %v2607 = vld [vmem:[#allocation7 + $0x30] sm:$0xff]
        %v2608 = vld [vmem:[#allocation7 + $0x38] sm:$0xff]
        %v2609 = vld [vmem:[#allocation7 + $0x40] sm:$0xff]
        %v2610 = vld [vmem:[#allocation7 + $0x48] sm:$0xff]
        %v2611 = vld [vmem:[#allocation7 + $0x50] sm:$0xff]
        %v2612 = vld [vmem:[#allocation7 + $0x58] sm:$0xff]
        %v2613 = vld [vmem:[#allocation7 + $0x60] sm:$0xff]
        %v2614 = vld [vmem:[#allocation7 + $0x68] sm:$0xff]
        %v2615 = vld [vmem:[#allocation7 + $0x70] sm:$0xff]
        %v2616 = vld [vmem:[#allocation7 + $0x78] sm:$0xff]
        %v2617 = vld [vmem:[#allocation7 + $0x80] sm:$0xff]
        %v2618 = vld [vmem:[#allocation7 + $0x88] sm:$0xff]
        %v2619 = vld [vmem:[#allocation7 + $0x90] sm:$0xff]
        %v2620 = vld [vmem:[#allocation7 + $0x98] sm:$0xff]
        %v2621 = vld [vmem:[#allocation7 + $0xa0] sm:$0xff]
        %v2622 = vld [vmem:[#allocation7 + $0xa8] sm:$0xff]
        %v2623 = vld [vmem:[#allocation7 + $0xb0] sm:$0xff]
        %v2624 = vld [vmem:[#allocation7 + $0xb8] sm:$0xff]
        %v2625 = vld [vmem:[#allocation7 + $0xc0] sm:$0xff]
        %v2626 = vld [vmem:[#allocation7 + $0xc8] sm:$0xff]
        %v2627 = vld [vmem:[#allocation7 + $0xd0] sm:$0xff]
        %v2628 = vld [vmem:[#allocation7 + $0xd8] sm:$0xff]
        %v2629 = vld [vmem:[#allocation7 + $0xe0] sm:$0xff]
        %v2630 = vld [vmem:[#allocation7 + $0xe8] sm:$0xff]
        %v2631 = vld [vmem:[#allocation7 + $0xf0] sm:$0xff]
        %v2632 = vld [vmem:[#allocation7 + $0xf8] sm:$0xff]
        %v2633 = vld [vmem:[#allocation7 + $0x100] sm:$0xff]
        %v2634 = vld [vmem:[#allocation7 + $0x108] sm:$0xff]
        %v2635 = vld [vmem:[#allocation7 + $0x110] sm:$0xff]
        %v2636 = vld [vmem:[#allocation7 + $0x118] sm:$0xff]
        %v2637 = vld [vmem:[#allocation7 + $0x120] sm:$0xff]
        %v2638 = vld [vmem:[#allocation7 + $0x128] sm:$0xff]
        %v2639 = vld [vmem:[#allocation7 + $0x130] sm:$0xff]
        %v2640 = vld [vmem:[#allocation7 + $0x138] sm:$0xff]
        %v2641 = vld [vmem:[#allocation7 + $0x140] sm:$0xff]
        %v2642 = vld [vmem:[#allocation7 + $0x148] sm:$0xff]
        %v2643 = vld [vmem:[#allocation7 + $0x150] sm:$0xff]
        %v2644 = vld [vmem:[#allocation7 + $0x158] sm:$0xff]
        %v2645 = vld [vmem:[#allocation7 + $0x160] sm:$0xff]
        %v2646 = vld [vmem:[#allocation7 + $0x168] sm:$0xff]
        %v2647 = vld [vmem:[#allocation7 + $0x170] sm:$0xff]
        %v2648 = vld [vmem:[#allocation7 + $0x178] sm:$0xff]
        %v2649 = vld [vmem:[#allocation7 + $0x180] sm:$0xff]
        %v2650 = vld [vmem:[#allocation7 + $0x188] sm:$0xff]
        %v2651 = vld [vmem:[#allocation7 + $0x190] sm:$0xff]
        %v2652 = vld [vmem:[#allocation7 + $0x198] sm:$0xff]
        %v2653 = vld [vmem:[#allocation7 + $0x1a0] sm:$0xff]
        %v2654 = vld [vmem:[#allocation7 + $0x1a8] sm:$0xff]
        %v2655 = vld [vmem:[#allocation7 + $0x1b0] sm:$0xff]
        %v2656 = vld [vmem:[#allocation7 + $0x1b8] sm:$0xff]
        %v2657 = vld [vmem:[#allocation7 + $0x1c0] sm:$0xff]
        %v2658 = vld [vmem:[#allocation7 + $0x1c8] sm:$0xff]
        %v2659 = vld [vmem:[#allocation7 + $0x1d0] sm:$0xff]
        %v2660 = vld [vmem:[#allocation7 + $0x1d8] sm:$0xff]
        %v2661 = vld [vmem:[#allocation7 + $0x1e0] sm:$0xff]
        %v2662 = vld [vmem:[#allocation7 + $0x1e8] sm:$0xff]
        %v2663 = vld [vmem:[#allocation7 + $0x1f0] sm:$0xff]
        %v2664 = vld [vmem:[#allocation7 + $0x1f8] sm:$0xff]
        %v2665 = vld [vmem:[#allocation7 + $0x200] sm:$0xff]
        %v2666 = vld [vmem:[#allocation7 + $0x208] sm:$0xff]
        %v2667 = vld [vmem:[#allocation7 + $0x210] sm:$0xff]
        %v2668 = vld [vmem:[#allocation7 + $0x218] sm:$0xff]
        %v2669 = vld [vmem:[#allocation7 + $0x220] sm:$0xff]
        %v2670 = vld [vmem:[#allocation7 + $0x228] sm:$0xff]
        %v2671 = vld [vmem:[#allocation7 + $0x230] sm:$0xff]
        %v2672 = vld [vmem:[#allocation7 + $0x238] sm:$0xff]
        %v2673 = vld [vmem:[#allocation7 + $0x240] sm:$0xff]
        %v2674 = vld [vmem:[#allocation7 + $0x248] sm:$0xff]
        %v2675 = vld [vmem:[#allocation7 + $0x250] sm:$0xff]
        %v2676 = vld [vmem:[#allocation7 + $0x258] sm:$0xff]
        %v2677 = vld [vmem:[#allocation7 + $0x260] sm:$0xff]
        %v2678 = vld [vmem:[#allocation7 + $0x268] sm:$0xff]
        %v2679 = vld [vmem:[#allocation7 + $0x270] sm:$0xff]
        %v2680 = vld [vmem:[#allocation7 + $0x278] sm:$0xff]
        %v2681 = vld [vmem:[#allocation7 + $0x280] sm:$0xff]
        %v2682 = vld [vmem:[#allocation7 + $0x288] sm:$0xff]
        %v2683 = vld [vmem:[#allocation7 + $0x290] sm:$0xff]
        %v2684 = vld [vmem:[#allocation7 + $0x298] sm:$0xff]
        %v2685 = vld [vmem:[#allocation7 + $0x2a0] sm:$0xff]
        %v2686 = vld [vmem:[#allocation7 + $0x2a8] sm:$0xff]
        %v2687 = vld [vmem:[#allocation7 + $0x2b0] sm:$0xff]
        %v2688 = vld [vmem:[#allocation7 + $0x2b8] sm:$0xff]
        %v2689 = vld [vmem:[#allocation7 + $0x2c0] sm:$0xff]
        %v2690 = vld [vmem:[#allocation7 + $0x2c8] sm:$0xff]
        %v2691 = vld [vmem:[#allocation7 + $0x2d0] sm:$0xff]
        %v2692 = vld [vmem:[#allocation7 + $0x2d8] sm:$0xff]
        %v2693 = vld [vmem:[#allocation7 + $0x2e0] sm:$0xff]
        %v2694 = vld [vmem:[#allocation7 + $0x2e8] sm:$0xff]
        %v2695 = vld [vmem:[#allocation7 + $0x2f0] sm:$0xff]
        %v2696 = vld [vmem:[#allocation7 + $0x2f8] sm:$0xff]
        %v2697 = vld [vmem:[#allocation7 + $0x300] sm:$0xff]
        %v2698 = vld [vmem:[#allocation7 + $0x308] sm:$0xff]
        %v2699 = vld [vmem:[#allocation7 + $0x310] sm:$0xff]
        %v2700 = vld [vmem:[#allocation7 + $0x318] sm:$0xff]
        %v2701 = vld [vmem:[#allocation7 + $0x320] sm:$0xff]
        %v2702 = vld [vmem:[#allocation7 + $0x328] sm:$0xff]
        %v2703 = vld [vmem:[#allocation7 + $0x330] sm:$0xff]
        %v2704 = vld [vmem:[#allocation7 + $0x338] sm:$0xff]
        %v2705 = vld [vmem:[#allocation7 + $0x340] sm:$0xff]
        %v2706 = vld [vmem:[#allocation7 + $0x348] sm:$0xff]
        %v2707 = vld [vmem:[#allocation7 + $0x350] sm:$0xff]
        %v2708 = vld [vmem:[#allocation7 + $0x358] sm:$0xff]
        %v2709 = vld [vmem:[#allocation7 + $0x360] sm:$0xff]
        %v2710 = vld [vmem:[#allocation7 + $0x368] sm:$0xff]
        %v2711 = vld [vmem:[#allocation7 + $0x370] sm:$0xff]
        %v2712 = vld [vmem:[#allocation7 + $0x378] sm:$0xff]
        %v2713 = vld [vmem:[#allocation7 + $0x380] sm:$0xff]
        %v2714 = vld [vmem:[#allocation7 + $0x388] sm:$0xff]
        %v2715 = vld [vmem:[#allocation7 + $0x390] sm:$0xff]
        %v2716 = vld [vmem:[#allocation7 + $0x398] sm:$0xff]
        %v2717 = vld [vmem:[#allocation7 + $0x3a0] sm:$0xff]
        %v2718 = vld [vmem:[#allocation7 + $0x3a8] sm:$0xff]
        %v2719 = vld [vmem:[#allocation7 + $0x3b0] sm:$0xff]
        %v2720 = vld [vmem:[#allocation7 + $0x3b8] sm:$0xff]
        %v2721 = vld [vmem:[#allocation7 + $0x3c0] sm:$0xff]
        %v2722 = vld [vmem:[#allocation7 + $0x3c8] sm:$0xff]
        %v2723 = vld [vmem:[#allocation7 + $0x3d0] sm:$0xff]
        %v2724 = vld [vmem:[#allocation7 + $0x3d8] sm:$0xff]
        %v2725 = vld [vmem:[#allocation7 + $0x3e0] sm:$0xff]
        %v2726 = vld [vmem:[#allocation7 + $0x3e8] sm:$0xff]
        %v2727 = vld [vmem:[#allocation7 + $0x3f0] sm:$0xff]
        %v2728 = vld [vmem:[#allocation7 + $0x3f8] sm:$0xff]
        %v2729 = vld [vmem:[#allocation7 + $0x400] sm:$0xff]
        %v2730 = vld [vmem:[#allocation7 + $0x408] sm:$0xff]
        %v2731 = vld [vmem:[#allocation7 + $0x410] sm:$0xff]
        %v2732 = vld [vmem:[#allocation7 + $0x418] sm:$0xff]
        %v2733 = vld [vmem:[#allocation7 + $0x420] sm:$0xff]
        %v2734 = vld [vmem:[#allocation7 + $0x428] sm:$0xff]
        %v2735 = vld [vmem:[#allocation7 + $0x430] sm:$0xff]
        %v2736 = vld [vmem:[#allocation7 + $0x438] sm:$0xff]
        %v2737 = vld [vmem:[#allocation7 + $0x440] sm:$0xff]
        %v2738 = vld [vmem:[#allocation7 + $0x448] sm:$0xff]
        %v2739 = vld [vmem:[#allocation7 + $0x450] sm:$0xff]
        %v2740 = vld [vmem:[#allocation7 + $0x458] sm:$0xff]
        %v2741 = vld [vmem:[#allocation7 + $0x460] sm:$0xff]
        %v2742 = vld [vmem:[#allocation7 + $0x468] sm:$0xff]
        %v2743 = vld [vmem:[#allocation7 + $0x470] sm:$0xff]
        %v2744 = vld [vmem:[#allocation7 + $0x478] sm:$0xff]
        %v2745 = vld [vmem:[#allocation7 + $0x480] sm:$0xff]
        %v2746 = vld [vmem:[#allocation7 + $0x488] sm:$0xff]
        %v2747 = vld [vmem:[#allocation7 + $0x490] sm:$0xff]
        %v2748 = vld [vmem:[#allocation7 + $0x498] sm:$0xff]
        %v2749 = vld [vmem:[#allocation7 + $0x4a0] sm:$0xff]
        %v2750 = vld [vmem:[#allocation7 + $0x4a8] sm:$0xff]
        %v2751 = vld [vmem:[#allocation7 + $0x4b0] sm:$0xff]
        %v2752 = vld [vmem:[#allocation7 + $0x4b8] sm:$0xff]
        %v2753 = vld [vmem:[#allocation7 + $0x4c0] sm:$0xff]
        %v2754 = vld [vmem:[#allocation7 + $0x4c8] sm:$0xff]
        %v2755 = vld [vmem:[#allocation7 + $0x4d0] sm:$0xff]
        %v2756 = vld [vmem:[#allocation7 + $0x4d8] sm:$0xff]
        %v2757 = vld [vmem:[#allocation7 + $0x4e0] sm:$0xff]
        %v2758 = vld [vmem:[#allocation7 + $0x4e8] sm:$0xff]
        %v2759 = vld [vmem:[#allocation7 + $0x4f0] sm:$0xff]
        %v2760 = vld [vmem:[#allocation7 + $0x4f8] sm:$0xff]
        %v2761 = vld [vmem:[#allocation7 + $0x500] sm:$0xff]
        %v2762 = vld [vmem:[#allocation7 + $0x508] sm:$0xff]
        %v2763 = vld [vmem:[#allocation7 + $0x510] sm:$0xff]
        %v2764 = vld [vmem:[#allocation7 + $0x518] sm:$0xff]
        %v2765 = vld [vmem:[#allocation7 + $0x520] sm:$0xff]
        %v2766 = vld [vmem:[#allocation7 + $0x528] sm:$0xff]
        %v2767 = vld [vmem:[#allocation7 + $0x530] sm:$0xff]
        %v2768 = vld [vmem:[#allocation7 + $0x538] sm:$0xff]
        %v2769 = vld [vmem:[#allocation7 + $0x540] sm:$0xff]
        %v2770 = vld [vmem:[#allocation7 + $0x548] sm:$0xff]
        %v2771 = vld [vmem:[#allocation7 + $0x550] sm:$0xff]
        %v2772 = vld [vmem:[#allocation7 + $0x558] sm:$0xff]
        %v2773 = vld [vmem:[#allocation7 + $0x560] sm:$0xff]
        %v2774 = vld [vmem:[#allocation7 + $0x568] sm:$0xff]
        %v2775 = vld [vmem:[#allocation7 + $0x570] sm:$0xff]
        %v2776 = vld [vmem:[#allocation7 + $0x578] sm:$0xff]
        %v2777 = vld [vmem:[#allocation7 + $0x580] sm:$0xff]
        %v2778 = vld [vmem:[#allocation7 + $0x588] sm:$0xff]
        %v2779 = vld [vmem:[#allocation7 + $0x590] sm:$0xff]
        %v2780 = vld [vmem:[#allocation7 + $0x598] sm:$0xff]
        %v2781 = vld [vmem:[#allocation7 + $0x5a0] sm:$0xff]
        %v2782 = vld [vmem:[#allocation7 + $0x5a8] sm:$0xff]
        %v2783 = vld [vmem:[#allocation7 + $0x5b0] sm:$0xff]
        %v2784 = vld [vmem:[#allocation7 + $0x5b8] sm:$0xff]
        %v2785 = vld [vmem:[#allocation7 + $0x5c0] sm:$0xff]
        %v2786 = vld [vmem:[#allocation7 + $0x5c8] sm:$0xff]
        %v2787 = vld [vmem:[#allocation7 + $0x5d0] sm:$0xff]
        %v2788 = vld [vmem:[#allocation7 + $0x5d8] sm:$0xff]
        %v2789 = vld [vmem:[#allocation7 + $0x5e0] sm:$0xff]
        %v2790 = vld [vmem:[#allocation7 + $0x5e8] sm:$0xff]
        %v2791 = vld [vmem:[#allocation7 + $0x5f0] sm:$0xff]
        %v2792 = vld [vmem:[#allocation7 + $0x5f8] sm:$0xff]
        %v2793 = vld [vmem:[#allocation7 + $0x600] sm:$0xff]
        %v2794 = vld [vmem:[#allocation7 + $0x608] sm:$0xff]
        %v2795 = vld [vmem:[#allocation7 + $0x610] sm:$0xff]
        %v2796 = vld [vmem:[#allocation7 + $0x618] sm:$0xff]
        %v2797 = vld [vmem:[#allocation7 + $0x620] sm:$0xff]
        %v2798 = vld [vmem:[#allocation7 + $0x628] sm:$0xff]
        %v2799 = vld [vmem:[#allocation7 + $0x630] sm:$0xff]
        %v2800 = vld [vmem:[#allocation7 + $0x638] sm:$0xff]
        %v2801 = vld [vmem:[#allocation7 + $0x640] sm:$0xff]
        %v2802 = vld [vmem:[#allocation7 + $0x648] sm:$0xff]
        %v2803 = vld [vmem:[#allocation7 + $0x650] sm:$0xff]
        %v2804 = vld [vmem:[#allocation7 + $0x658] sm:$0xff]
        %v2805 = vld [vmem:[#allocation7 + $0x660] sm:$0xff]
        %v2806 = vld [vmem:[#allocation7 + $0x668] sm:$0xff]
        %v2807 = vld [vmem:[#allocation7 + $0x670] sm:$0xff]
        %v2808 = vld [vmem:[#allocation7 + $0x678] sm:$0xff]
        %v2809 = vld [vmem:[#allocation7 + $0x680] sm:$0xff]
        %v2810 = vld [vmem:[#allocation7 + $0x688] sm:$0xff]
        %v2811 = vld [vmem:[#allocation7 + $0x690] sm:$0xff]
        %v2812 = vld [vmem:[#allocation7 + $0x698] sm:$0xff]
        %v2813 = vld [vmem:[#allocation7 + $0x6a0] sm:$0xff]
        %v2814 = vld [vmem:[#allocation7 + $0x6a8] sm:$0xff]
        %v2815 = vld [vmem:[#allocation7 + $0x6b0] sm:$0xff]
        %v2816 = vld [vmem:[#allocation7 + $0x6b8] sm:$0xff]
        %v2817 = vld [vmem:[#allocation7 + $0x6c0] sm:$0xff]
        %v2818 = vld [vmem:[#allocation7 + $0x6c8] sm:$0xff]
        %v2819 = vld [vmem:[#allocation7 + $0x6d0] sm:$0xff]
        %v2820 = vld [vmem:[#allocation7 + $0x6d8] sm:$0xff]
        %v2821 = vld [vmem:[#allocation7 + $0x6e0] sm:$0xff]
        %v2822 = vld [vmem:[#allocation7 + $0x6e8] sm:$0xff]
        %v2823 = vld [vmem:[#allocation7 + $0x6f0] sm:$0xff]
        %v2824 = vld [vmem:[#allocation7 + $0x6f8] sm:$0xff]
        %v2825 = vld [vmem:[#allocation7 + $0x700] sm:$0xff]
        %v2826 = vld [vmem:[#allocation7 + $0x708] sm:$0xff]
        %v2827 = vld [vmem:[#allocation7 + $0x710] sm:$0xff]
        %v2828 = vld [vmem:[#allocation7 + $0x718] sm:$0xff]
        %v2829 = vld [vmem:[#allocation7 + $0x720] sm:$0xff]
        %v2830 = vld [vmem:[#allocation7 + $0x728] sm:$0xff]
        %v2831 = vld [vmem:[#allocation7 + $0x730] sm:$0xff]
        %v2832 = vld [vmem:[#allocation7 + $0x738] sm:$0xff]
        %v2833 = vld [vmem:[#allocation7 + $0x740] sm:$0xff]
        %v2834 = vld [vmem:[#allocation7 + $0x748] sm:$0xff]
        %v2835 = vld [vmem:[#allocation7 + $0x750] sm:$0xff]
        %v2836 = vld [vmem:[#allocation7 + $0x758] sm:$0xff]
        %v2837 = vld [vmem:[#allocation7 + $0x760] sm:$0xff]
        %v2838 = vld [vmem:[#allocation7 + $0x768] sm:$0xff]
        %v2839 = vld [vmem:[#allocation7 + $0x770] sm:$0xff]
        %v2840 = vld [vmem:[#allocation7 + $0x778] sm:$0xff]
        %v2841 = vld [vmem:[#allocation7 + $0x780] sm:$0xff]
        %v2842 = vld [vmem:[#allocation7 + $0x788] sm:$0xff]
        %v2843 = vld [vmem:[#allocation7 + $0x790] sm:$0xff]
        %v2844 = vld [vmem:[#allocation7 + $0x798] sm:$0xff]
        %v2845 = vld [vmem:[#allocation7 + $0x7a0] sm:$0xff]
        %v2846 = vld [vmem:[#allocation7 + $0x7a8] sm:$0xff]
        %v2847 = vld [vmem:[#allocation7 + $0x7b0] sm:$0xff]
        %v2848 = vld [vmem:[#allocation7 + $0x7b8] sm:$0xff]
        %v2849 = vld [vmem:[#allocation7 + $0x7c0] sm:$0xff]
        %v2850 = vld [vmem:[#allocation7 + $0x7c8] sm:$0xff]
        %v2851 = vld [vmem:[#allocation7 + $0x7d0] sm:$0xff]
        %v2852 = vld [vmem:[#allocation7 + $0x7d8] sm:$0xff]
        %v2853 = vld [vmem:[#allocation7 + $0x7e0] sm:$0xff]
        %v2854 = vld [vmem:[#allocation7 + $0x7e8] sm:$0xff]
        %v2855 = vld [vmem:[#allocation7 + $0x7f0] sm:$0xff]
        %v2856 = vld [vmem:[#allocation7 + $0x7f8] sm:$0xff]
        %v2857 = vld [vmem:[#allocation8] ss:$4 sm:$0xf]
        %v3114 = vunpack.c.l.b16 %v2601
        %v3115 = vunpack.c.h.b16 %v2601
        %v3116 = vunpack.c.l.b16 %v2602
        %v3117 = vunpack.c.h.b16 %v2602
        %v3118 = vunpack.c.l.b16 %v2603
        %v3119 = vunpack.c.h.b16 %v2603
        %v3120 = vunpack.c.l.b16 %v2604
        %v3121 = vunpack.c.h.b16 %v2604
        %v3122 = vunpack.c.l.b16 %v2605
        %v3123 = vunpack.c.h.b16 %v2605
        %v3124 = vunpack.c.l.b16 %v2606
        %v3125 = vunpack.c.h.b16 %v2606
        %v3126 = vunpack.c.l.b16 %v2607
        %v3127 = vunpack.c.h.b16 %v2607
        %v3128 = vunpack.c.l.b16 %v2608
        %v3129 = vunpack.c.h.b16 %v2608
        %v3130 = vunpack.c.l.b16 %v2609
        %v3131 = vunpack.c.h.b16 %v2609
        %v3132 = vunpack.c.l.b16 %v2610
        %v3133 = vunpack.c.h.b16 %v2610
        %v3134 = vunpack.c.l.b16 %v2611
        %v3135 = vunpack.c.h.b16 %v2611
        %v3136 = vunpack.c.l.b16 %v2612
        %v3137 = vunpack.c.h.b16 %v2612
        %v3138 = vunpack.c.l.b16 %v2613
        %v3139 = vunpack.c.h.b16 %v2613
        %v3140 = vunpack.c.l.b16 %v2614
        %v3141 = vunpack.c.h.b16 %v2614
        %v3142 = vunpack.c.l.b16 %v2615
        %v3143 = vunpack.c.h.b16 %v2615
        %v3144 = vunpack.c.l.b16 %v2616
        %v3145 = vunpack.c.h.b16 %v2616
        %v3146 = vunpack.c.l.b16 %v2617
        %v3147 = vunpack.c.h.b16 %v2617
        %v3148 = vunpack.c.l.b16 %v2618
        %v3149 = vunpack.c.h.b16 %v2618
        %v3150 = vunpack.c.l.b16 %v2619
        %v3151 = vunpack.c.h.b16 %v2619
        %v3152 = vunpack.c.l.b16 %v2620
        %v3153 = vunpack.c.h.b16 %v2620
        %v3154 = vunpack.c.l.b16 %v2621
        %v3155 = vunpack.c.h.b16 %v2621
        %v3156 = vunpack.c.l.b16 %v2622
        %v3157 = vunpack.c.h.b16 %v2622
        %v3158 = vunpack.c.l.b16 %v2623
        %v3159 = vunpack.c.h.b16 %v2623
        %v3160 = vunpack.c.l.b16 %v2624
        %v3161 = vunpack.c.h.b16 %v2624
        %v3162 = vunpack.c.l.b16 %v2625
        %v3163 = vunpack.c.h.b16 %v2625
        %v3164 = vunpack.c.l.b16 %v2626
        %v3165 = vunpack.c.h.b16 %v2626
        %v3166 = vunpack.c.l.b16 %v2627
        %v3167 = vunpack.c.h.b16 %v2627
        %v3168 = vunpack.c.l.b16 %v2628
        %v3169 = vunpack.c.h.b16 %v2628
        %v3170 = vunpack.c.l.b16 %v2629
        %v3171 = vunpack.c.h.b16 %v2629
        %v3172 = vunpack.c.l.b16 %v2630
        %v3173 = vunpack.c.h.b16 %v2630
        %v3174 = vunpack.c.l.b16 %v2631
        %v3175 = vunpack.c.h.b16 %v2631
        %v3176 = vunpack.c.l.b16 %v2632
        %v3177 = vunpack.c.h.b16 %v2632
        %v3178 = vunpack.c.l.b16 %v2633
        %v3179 = vunpack.c.h.b16 %v2633
        %v3180 = vunpack.c.l.b16 %v2634
        %v3181 = vunpack.c.h.b16 %v2634
        %v3182 = vunpack.c.l.b16 %v2635
        %v3183 = vunpack.c.h.b16 %v2635
        %v3184 = vunpack.c.l.b16 %v2636
        %v3185 = vunpack.c.h.b16 %v2636
        %v3186 = vunpack.c.l.b16 %v2637
        %v3187 = vunpack.c.h.b16 %v2637
        %v3188 = vunpack.c.l.b16 %v2638
        %v3189 = vunpack.c.h.b16 %v2638
        %v3190 = vunpack.c.l.b16 %v2639
        %v3191 = vunpack.c.h.b16 %v2639
        %v3192 = vunpack.c.l.b16 %v2640
        %v3193 = vunpack.c.h.b16 %v2640
        %v3194 = vunpack.c.l.b16 %v2641
        %v3195 = vunpack.c.h.b16 %v2641
        %v3196 = vunpack.c.l.b16 %v2642
        %v3197 = vunpack.c.h.b16 %v2642
        %v3198 = vunpack.c.l.b16 %v2643
        %v3199 = vunpack.c.h.b16 %v2643
        %v3200 = vunpack.c.l.b16 %v2644
        %v3201 = vunpack.c.h.b16 %v2644
        %v3202 = vunpack.c.l.b16 %v2645
        %v3203 = vunpack.c.h.b16 %v2645
        %v3204 = vunpack.c.l.b16 %v2646
        %v3205 = vunpack.c.h.b16 %v2646
        %v3206 = vunpack.c.l.b16 %v2647
        %v3207 = vunpack.c.h.b16 %v2647
        %v3208 = vunpack.c.l.b16 %v2648
        %v3209 = vunpack.c.h.b16 %v2648
        %v3210 = vunpack.c.l.b16 %v2649
        %v3211 = vunpack.c.h.b16 %v2649
        %v3212 = vunpack.c.l.b16 %v2650
        %v3213 = vunpack.c.h.b16 %v2650
        %v3214 = vunpack.c.l.b16 %v2651
        %v3215 = vunpack.c.h.b16 %v2651
        %v3216 = vunpack.c.l.b16 %v2652
        %v3217 = vunpack.c.h.b16 %v2652
        %v3218 = vunpack.c.l.b16 %v2653
        %v3219 = vunpack.c.h.b16 %v2653
        %v3220 = vunpack.c.l.b16 %v2654
        %v3221 = vunpack.c.h.b16 %v2654
        %v3222 = vunpack.c.l.b16 %v2655
        %v3223 = vunpack.c.h.b16 %v2655
        %v3224 = vunpack.c.l.b16 %v2656
        %v3225 = vunpack.c.h.b16 %v2656
        %v3226 = vunpack.c.l.b16 %v2657
        %v3227 = vunpack.c.h.b16 %v2657
        %v3228 = vunpack.c.l.b16 %v2658
        %v3229 = vunpack.c.h.b16 %v2658
        %v3230 = vunpack.c.l.b16 %v2659
        %v3231 = vunpack.c.h.b16 %v2659
        %v3232 = vunpack.c.l.b16 %v2660
        %v3233 = vunpack.c.h.b16 %v2660
        %v3234 = vunpack.c.l.b16 %v2661
        %v3235 = vunpack.c.h.b16 %v2661
        %v3236 = vunpack.c.l.b16 %v2662
        %v3237 = vunpack.c.h.b16 %v2662
        %v3238 = vunpack.c.l.b16 %v2663
        %v3239 = vunpack.c.h.b16 %v2663
        %v3240 = vunpack.c.l.b16 %v2664
        %v3241 = vunpack.c.h.b16 %v2664
        %v3242 = vunpack.c.l.b16 %v2665
        %v3243 = vunpack.c.h.b16 %v2665
        %v3244 = vunpack.c.l.b16 %v2666
        %v3245 = vunpack.c.h.b16 %v2666
        %v3246 = vunpack.c.l.b16 %v2667
        %v3247 = vunpack.c.h.b16 %v2667
        %v3248 = vunpack.c.l.b16 %v2668
        %v3249 = vunpack.c.h.b16 %v2668
        %v3250 = vunpack.c.l.b16 %v2669
        %v3251 = vunpack.c.h.b16 %v2669
        %v3252 = vunpack.c.l.b16 %v2670
        %v3253 = vunpack.c.h.b16 %v2670
        %v3254 = vunpack.c.l.b16 %v2671
        %v3255 = vunpack.c.h.b16 %v2671
        %v3256 = vunpack.c.l.b16 %v2672
        %v3257 = vunpack.c.h.b16 %v2672
        %v3258 = vunpack.c.l.b16 %v2673
        %v3259 = vunpack.c.h.b16 %v2673
        %v3260 = vunpack.c.l.b16 %v2674
        %v3261 = vunpack.c.h.b16 %v2674
        %v3262 = vunpack.c.l.b16 %v2675
        %v3263 = vunpack.c.h.b16 %v2675
        %v3264 = vunpack.c.l.b16 %v2676
        %v3265 = vunpack.c.h.b16 %v2676
        %v3266 = vunpack.c.l.b16 %v2677
        %v3267 = vunpack.c.h.b16 %v2677
        %v3268 = vunpack.c.l.b16 %v2678
        %v3269 = vunpack.c.h.b16 %v2678
        %v3270 = vunpack.c.l.b16 %v2679
        %v3271 = vunpack.c.h.b16 %v2679
        %v3272 = vunpack.c.l.b16 %v2680
        %v3273 = vunpack.c.h.b16 %v2680
        %v3274 = vunpack.c.l.b16 %v2681
        %v3275 = vunpack.c.h.b16 %v2681
        %v3276 = vunpack.c.l.b16 %v2682
        %v3277 = vunpack.c.h.b16 %v2682
        %v3278 = vunpack.c.l.b16 %v2683
        %v3279 = vunpack.c.h.b16 %v2683
        %v3280 = vunpack.c.l.b16 %v2684
        %v3281 = vunpack.c.h.b16 %v2684
        %v3282 = vunpack.c.l.b16 %v2685
        %v3283 = vunpack.c.h.b16 %v2685
        %v3284 = vunpack.c.l.b16 %v2686
        %v3285 = vunpack.c.h.b16 %v2686
        %v3286 = vunpack.c.l.b16 %v2687
        %v3287 = vunpack.c.h.b16 %v2687
        %v3288 = vunpack.c.l.b16 %v2688
        %v3289 = vunpack.c.h.b16 %v2688
        %v3290 = vunpack.c.l.b16 %v2689
        %v3291 = vunpack.c.h.b16 %v2689
        %v3292 = vunpack.c.l.b16 %v2690
        %v3293 = vunpack.c.h.b16 %v2690
        %v3294 = vunpack.c.l.b16 %v2691
        %v3295 = vunpack.c.h.b16 %v2691
        %v3296 = vunpack.c.l.b16 %v2692
        %v3297 = vunpack.c.h.b16 %v2692
        %v3298 = vunpack.c.l.b16 %v2693
        %v3299 = vunpack.c.h.b16 %v2693
        %v3300 = vunpack.c.l.b16 %v2694
        %v3301 = vunpack.c.h.b16 %v2694
        %v3302 = vunpack.c.l.b16 %v2695
        %v3303 = vunpack.c.h.b16 %v2695
        %v3304 = vunpack.c.l.b16 %v2696
        %v3305 = vunpack.c.h.b16 %v2696
        %v3306 = vunpack.c.l.b16 %v2697
        %v3307 = vunpack.c.h.b16 %v2697
        %v3308 = vunpack.c.l.b16 %v2698
        %v3309 = vunpack.c.h.b16 %v2698
        %v3310 = vunpack.c.l.b16 %v2699
        %v3311 = vunpack.c.h.b16 %v2699
        %v3312 = vunpack.c.l.b16 %v2700
        %v3313 = vunpack.c.h.b16 %v2700
        %v3314 = vunpack.c.l.b16 %v2701
        %v3315 = vunpack.c.h.b16 %v2701
        %v3316 = vunpack.c.l.b16 %v2702
        %v3317 = vunpack.c.h.b16 %v2702
        %v3318 = vunpack.c.l.b16 %v2703
        %v3319 = vunpack.c.h.b16 %v2703
        %v3320 = vunpack.c.l.b16 %v2704
        %v3321 = vunpack.c.h.b16 %v2704
        %v3322 = vunpack.c.l.b16 %v2705
        %v3323 = vunpack.c.h.b16 %v2705
        %v3324 = vunpack.c.l.b16 %v2706
        %v3325 = vunpack.c.h.b16 %v2706
        %v3326 = vunpack.c.l.b16 %v2707
        %v3327 = vunpack.c.h.b16 %v2707
        %v3328 = vunpack.c.l.b16 %v2708
        %v3329 = vunpack.c.h.b16 %v2708
        %v3330 = vunpack.c.l.b16 %v2709
        %v3331 = vunpack.c.h.b16 %v2709
        %v3332 = vunpack.c.l.b16 %v2710
        %v3333 = vunpack.c.h.b16 %v2710
        %v3334 = vunpack.c.l.b16 %v2711
        %v3335 = vunpack.c.h.b16 %v2711
        %v3336 = vunpack.c.l.b16 %v2712
        %v3337 = vunpack.c.h.b16 %v2712
        %v3338 = vunpack.c.l.b16 %v2713
        %v3339 = vunpack.c.h.b16 %v2713
        %v3340 = vunpack.c.l.b16 %v2714
        %v3341 = vunpack.c.h.b16 %v2714
        %v3342 = vunpack.c.l.b16 %v2715
        %v3343 = vunpack.c.h.b16 %v2715
        %v3344 = vunpack.c.l.b16 %v2716
        %v3345 = vunpack.c.h.b16 %v2716
        %v3346 = vunpack.c.l.b16 %v2717
        %v3347 = vunpack.c.h.b16 %v2717
        %v3348 = vunpack.c.l.b16 %v2718
        %v3349 = vunpack.c.h.b16 %v2718
        %v3350 = vunpack.c.l.b16 %v2719
        %v3351 = vunpack.c.h.b16 %v2719
        %v3352 = vunpack.c.l.b16 %v2720
        %v3353 = vunpack.c.h.b16 %v2720
        %v3354 = vunpack.c.l.b16 %v2721
        %v3355 = vunpack.c.h.b16 %v2721
        %v3356 = vunpack.c.l.b16 %v2722
        %v3357 = vunpack.c.h.b16 %v2722
        %v3358 = vunpack.c.l.b16 %v2723
        %v3359 = vunpack.c.h.b16 %v2723
        %v3360 = vunpack.c.l.b16 %v2724
        %v3361 = vunpack.c.h.b16 %v2724
        %v3362 = vunpack.c.l.b16 %v2725
        %v3363 = vunpack.c.h.b16 %v2725
        %v3364 = vunpack.c.l.b16 %v2726
        %v3365 = vunpack.c.h.b16 %v2726
        %v3366 = vunpack.c.l.b16 %v2727
        %v3367 = vunpack.c.h.b16 %v2727
        %v3368 = vunpack.c.l.b16 %v2728
        %v3369 = vunpack.c.h.b16 %v2728
        %v3370 = vunpack.c.l.b16 %v2729
        %v3371 = vunpack.c.h.b16 %v2729
        %v3372 = vunpack.c.l.b16 %v2730
        %v3373 = vunpack.c.h.b16 %v2730
        %v3374 = vunpack.c.l.b16 %v2731
        %v3375 = vunpack.c.h.b16 %v2731
        %v3376 = vunpack.c.l.b16 %v2732
        %v3377 = vunpack.c.h.b16 %v2732
        %v3378 = vunpack.c.l.b16 %v2733
        %v3379 = vunpack.c.h.b16 %v2733
        %v3380 = vunpack.c.l.b16 %v2734
        %v3381 = vunpack.c.h.b16 %v2734
        %v3382 = vunpack.c.l.b16 %v2735
        %v3383 = vunpack.c.h.b16 %v2735
        %v3384 = vunpack.c.l.b16 %v2736
        %v3385 = vunpack.c.h.b16 %v2736
        %v3386 = vunpack.c.l.b16 %v2737
        %v3387 = vunpack.c.h.b16 %v2737
        %v3388 = vunpack.c.l.b16 %v2738
        %v3389 = vunpack.c.h.b16 %v2738
        %v3390 = vunpack.c.l.b16 %v2739
        %v3391 = vunpack.c.h.b16 %v2739
        %v3392 = vunpack.c.l.b16 %v2740
        %v3393 = vunpack.c.h.b16 %v2740
        %v3394 = vunpack.c.l.b16 %v2741
        %v3395 = vunpack.c.h.b16 %v2741
        %v3396 = vunpack.c.l.b16 %v2742
        %v3397 = vunpack.c.h.b16 %v2742
        %v3398 = vunpack.c.l.b16 %v2743
        %v3399 = vunpack.c.h.b16 %v2743
        %v3400 = vunpack.c.l.b16 %v2744
        %v3401 = vunpack.c.h.b16 %v2744
        %v3402 = vunpack.c.l.b16 %v2745
        %v3403 = vunpack.c.h.b16 %v2745
        %v3404 = vunpack.c.l.b16 %v2746
        %v3405 = vunpack.c.h.b16 %v2746
        %v3406 = vunpack.c.l.b16 %v2747
        %v3407 = vunpack.c.h.b16 %v2747
        %v3408 = vunpack.c.l.b16 %v2748
        %v3409 = vunpack.c.h.b16 %v2748
        %v3410 = vunpack.c.l.b16 %v2749
        %v3411 = vunpack.c.h.b16 %v2749
        %v3412 = vunpack.c.l.b16 %v2750
        %v3413 = vunpack.c.h.b16 %v2750
        %v3414 = vunpack.c.l.b16 %v2751
        %v3415 = vunpack.c.h.b16 %v2751
        %v3416 = vunpack.c.l.b16 %v2752
        %v3417 = vunpack.c.h.b16 %v2752
        %v3418 = vunpack.c.l.b16 %v2753
        %v3419 = vunpack.c.h.b16 %v2753
        %v3420 = vunpack.c.l.b16 %v2754
        %v3421 = vunpack.c.h.b16 %v2754
        %v3422 = vunpack.c.l.b16 %v2755
        %v3423 = vunpack.c.h.b16 %v2755
        %v3424 = vunpack.c.l.b16 %v2756
        %v3425 = vunpack.c.h.b16 %v2756
        %v3426 = vunpack.c.l.b16 %v2757
        %v3427 = vunpack.c.h.b16 %v2757
        %v3428 = vunpack.c.l.b16 %v2758
        %v3429 = vunpack.c.h.b16 %v2758
        %v3430 = vunpack.c.l.b16 %v2759
        %v3431 = vunpack.c.h.b16 %v2759
        %v3432 = vunpack.c.l.b16 %v2760
        %v3433 = vunpack.c.h.b16 %v2760
        %v3434 = vunpack.c.l.b16 %v2761
        %v3435 = vunpack.c.h.b16 %v2761
        %v3436 = vunpack.c.l.b16 %v2762
        %v3437 = vunpack.c.h.b16 %v2762
        %v3438 = vunpack.c.l.b16 %v2763
        %v3439 = vunpack.c.h.b16 %v2763
        %v3440 = vunpack.c.l.b16 %v2764
        %v3441 = vunpack.c.h.b16 %v2764
        %v3442 = vunpack.c.l.b16 %v2765
        %v3443 = vunpack.c.h.b16 %v2765
        %v3444 = vunpack.c.l.b16 %v2766
        %v3445 = vunpack.c.h.b16 %v2766
        %v3446 = vunpack.c.l.b16 %v2767
        %v3447 = vunpack.c.h.b16 %v2767
        %v3448 = vunpack.c.l.b16 %v2768
        %v3449 = vunpack.c.h.b16 %v2768
        %v3450 = vunpack.c.l.b16 %v2769
        %v3451 = vunpack.c.h.b16 %v2769
        %v3452 = vunpack.c.l.b16 %v2770
        %v3453 = vunpack.c.h.b16 %v2770
        %v3454 = vunpack.c.l.b16 %v2771
        %v3455 = vunpack.c.h.b16 %v2771
        %v3456 = vunpack.c.l.b16 %v2772
        %v3457 = vunpack.c.h.b16 %v2772
        %v3458 = vunpack.c.l.b16 %v2773
        %v3459 = vunpack.c.h.b16 %v2773
        %v3460 = vunpack.c.l.b16 %v2774
        %v3461 = vunpack.c.h.b16 %v2774
        %v3462 = vunpack.c.l.b16 %v2775
        %v3463 = vunpack.c.h.b16 %v2775
        %v3464 = vunpack.c.l.b16 %v2776
        %v3465 = vunpack.c.h.b16 %v2776
        %v3466 = vunpack.c.l.b16 %v2777
        %v3467 = vunpack.c.h.b16 %v2777
        %v3468 = vunpack.c.l.b16 %v2778
        %v3469 = vunpack.c.h.b16 %v2778
        %v3470 = vunpack.c.l.b16 %v2779
        %v3471 = vunpack.c.h.b16 %v2779
        %v3472 = vunpack.c.l.b16 %v2780
        %v3473 = vunpack.c.h.b16 %v2780
        %v3474 = vunpack.c.l.b16 %v2781
        %v3475 = vunpack.c.h.b16 %v2781
        %v3476 = vunpack.c.l.b16 %v2782
        %v3477 = vunpack.c.h.b16 %v2782
        %v3478 = vunpack.c.l.b16 %v2783
        %v3479 = vunpack.c.h.b16 %v2783
        %v3480 = vunpack.c.l.b16 %v2784
        %v3481 = vunpack.c.h.b16 %v2784
        %v3482 = vunpack.c.l.b16 %v2785
        %v3483 = vunpack.c.h.b16 %v2785
        %v3484 = vunpack.c.l.b16 %v2786
        %v3485 = vunpack.c.h.b16 %v2786
        %v3486 = vunpack.c.l.b16 %v2787
        %v3487 = vunpack.c.h.b16 %v2787
        %v3488 = vunpack.c.l.b16 %v2788
        %v3489 = vunpack.c.h.b16 %v2788
        %v3490 = vunpack.c.l.b16 %v2789
        %v3491 = vunpack.c.h.b16 %v2789
        %v3492 = vunpack.c.l.b16 %v2790
        %v3493 = vunpack.c.h.b16 %v2790
        %v3494 = vunpack.c.l.b16 %v2791
        %v3495 = vunpack.c.h.b16 %v2791
        %v3496 = vunpack.c.l.b16 %v2792
        %v3497 = vunpack.c.h.b16 %v2792
        %v3498 = vunpack.c.l.b16 %v2793
        %v3499 = vunpack.c.h.b16 %v2793
        %v3500 = vunpack.c.l.b16 %v2794
        %v3501 = vunpack.c.h.b16 %v2794
        %v3502 = vunpack.c.l.b16 %v2795
        %v3503 = vunpack.c.h.b16 %v2795
        %v3504 = vunpack.c.l.b16 %v2796
        %v3505 = vunpack.c.h.b16 %v2796
        %v3506 = vunpack.c.l.b16 %v2797
        %v3507 = vunpack.c.h.b16 %v2797
        %v3508 = vunpack.c.l.b16 %v2798
        %v3509 = vunpack.c.h.b16 %v2798
        %v3510 = vunpack.c.l.b16 %v2799
        %v3511 = vunpack.c.h.b16 %v2799
        %v3512 = vunpack.c.l.b16 %v2800
        %v3513 = vunpack.c.h.b16 %v2800
        %v3514 = vunpack.c.l.b16 %v2801
        %v3515 = vunpack.c.h.b16 %v2801
        %v3516 = vunpack.c.l.b16 %v2802
        %v3517 = vunpack.c.h.b16 %v2802
        %v3518 = vunpack.c.l.b16 %v2803
        %v3519 = vunpack.c.h.b16 %v2803
        %v3520 = vunpack.c.l.b16 %v2804
        %v3521 = vunpack.c.h.b16 %v2804
        %v3522 = vunpack.c.l.b16 %v2805
        %v3523 = vunpack.c.h.b16 %v2805
        %v3524 = vunpack.c.l.b16 %v2806
        %v3525 = vunpack.c.h.b16 %v2806
        %v3526 = vunpack.c.l.b16 %v2807
        %v3527 = vunpack.c.h.b16 %v2807
        %v3528 = vunpack.c.l.b16 %v2808
        %v3529 = vunpack.c.h.b16 %v2808
        %v3530 = vunpack.c.l.b16 %v2809
        %v3531 = vunpack.c.h.b16 %v2809
        %v3532 = vunpack.c.l.b16 %v2810
        %v3533 = vunpack.c.h.b16 %v2810
        %v3534 = vunpack.c.l.b16 %v2811
        %v3535 = vunpack.c.h.b16 %v2811
        %v3536 = vunpack.c.l.b16 %v2812
        %v3537 = vunpack.c.h.b16 %v2812
        %v3538 = vunpack.c.l.b16 %v2813
        %v3539 = vunpack.c.h.b16 %v2813
        %v3540 = vunpack.c.l.b16 %v2814
        %v3541 = vunpack.c.h.b16 %v2814
        %v3542 = vunpack.c.l.b16 %v2815
        %v3543 = vunpack.c.h.b16 %v2815
        %v3544 = vunpack.c.l.b16 %v2816
        %v3545 = vunpack.c.h.b16 %v2816
        %v3546 = vunpack.c.l.b16 %v2817
        %v3547 = vunpack.c.h.b16 %v2817
        %v3548 = vunpack.c.l.b16 %v2818
        %v3549 = vunpack.c.h.b16 %v2818
        %v3550 = vunpack.c.l.b16 %v2819
        %v3551 = vunpack.c.h.b16 %v2819
        %v3552 = vunpack.c.l.b16 %v2820
        %v3553 = vunpack.c.h.b16 %v2820
        %v3554 = vunpack.c.l.b16 %v2821
        %v3555 = vunpack.c.h.b16 %v2821
        %v3556 = vunpack.c.l.b16 %v2822
        %v3557 = vunpack.c.h.b16 %v2822
        %v3558 = vunpack.c.l.b16 %v2823
        %v3559 = vunpack.c.h.b16 %v2823
        %v3560 = vunpack.c.l.b16 %v2824
        %v3561 = vunpack.c.h.b16 %v2824
        %v3562 = vunpack.c.l.b16 %v2825
        %v3563 = vunpack.c.h.b16 %v2825
        %v3564 = vunpack.c.l.b16 %v2826
        %v3565 = vunpack.c.h.b16 %v2826
        %v3566 = vunpack.c.l.b16 %v2827
        %v3567 = vunpack.c.h.b16 %v2827
        %v3568 = vunpack.c.l.b16 %v2828
        %v3569 = vunpack.c.h.b16 %v2828
        %v3570 = vunpack.c.l.b16 %v2829
        %v3571 = vunpack.c.h.b16 %v2829
        %v3572 = vunpack.c.l.b16 %v2830
        %v3573 = vunpack.c.h.b16 %v2830
        %v3574 = vunpack.c.l.b16 %v2831
        %v3575 = vunpack.c.h.b16 %v2831
        %v3576 = vunpack.c.l.b16 %v2832
        %v3577 = vunpack.c.h.b16 %v2832
        %v3578 = vunpack.c.l.b16 %v2833
        %v3579 = vunpack.c.h.b16 %v2833
        %v3580 = vunpack.c.l.b16 %v2834
        %v3581 = vunpack.c.h.b16 %v2834
        %v3582 = vunpack.c.l.b16 %v2835
        %v3583 = vunpack.c.h.b16 %v2835
        %v3584 = vunpack.c.l.b16 %v2836
        %v3585 = vunpack.c.h.b16 %v2836
        %v3586 = vunpack.c.l.b16 %v2837
        %v3587 = vunpack.c.h.b16 %v2837
        %v3588 = vunpack.c.l.b16 %v2838
        %v3589 = vunpack.c.h.b16 %v2838
        %v3590 = vunpack.c.l.b16 %v2839
        %v3591 = vunpack.c.h.b16 %v2839
        %v3592 = vunpack.c.l.b16 %v2840
        %v3593 = vunpack.c.h.b16 %v2840
        %v3594 = vunpack.c.l.b16 %v2841
        %v3595 = vunpack.c.h.b16 %v2841
        %v3596 = vunpack.c.l.b16 %v2842
        %v3597 = vunpack.c.h.b16 %v2842
        %v3598 = vunpack.c.l.b16 %v2843
        %v3599 = vunpack.c.h.b16 %v2843
        %v3600 = vunpack.c.l.b16 %v2844
        %v3601 = vunpack.c.h.b16 %v2844
        %v3602 = vunpack.c.l.b16 %v2845
        %v3603 = vunpack.c.h.b16 %v2845
        %v3604 = vunpack.c.l.b16 %v2846
        %v3605 = vunpack.c.h.b16 %v2846
        %v3606 = vunpack.c.l.b16 %v2847
        %v3607 = vunpack.c.h.b16 %v2847
        %v3608 = vunpack.c.l.b16 %v2848
        %v3609 = vunpack.c.h.b16 %v2848
        %v3610 = vunpack.c.l.b16 %v2849
        %v3611 = vunpack.c.h.b16 %v2849
        %v3612 = vunpack.c.l.b16 %v2850
        %v3613 = vunpack.c.h.b16 %v2850
        %v3614 = vunpack.c.l.b16 %v2851
        %v3615 = vunpack.c.h.b16 %v2851
        %v3616 = vunpack.c.l.b16 %v2852
        %v3617 = vunpack.c.h.b16 %v2852
        %v3618 = vunpack.c.l.b16 %v2853
        %v3619 = vunpack.c.h.b16 %v2853
        %v3620 = vunpack.c.l.b16 %v2854
        %v3621 = vunpack.c.h.b16 %v2854
        %v3622 = vunpack.c.l.b16 %v2855
        %v3623 = vunpack.c.h.b16 %v2855
        %v3624 = vunpack.c.l.b16 %v2856
        %v3625 = vunpack.c.h.b16 %v2856
        %v3626 = vpack.c.b16 %v3118, %v3114
        %v3627 = vpack.c.b16 %v3119, %v3115
        %v3628 = vpack.c.b16 %v3120, %v3116
        %v3629 = vpack.c.b16 %v3121, %v3117
        %v3630 = vpack.c.b16 %v3126, %v3122
        %v3631 = vpack.c.b16 %v3127, %v3123
        %v3632 = vpack.c.b16 %v3128, %v3124
        %v3633 = vpack.c.b16 %v3129, %v3125
        %v3634 = vpack.c.b16 %v3134, %v3130
        %v3635 = vpack.c.b16 %v3135, %v3131
        %v3636 = vpack.c.b16 %v3136, %v3132
        %v3637 = vpack.c.b16 %v3137, %v3133
        %v3638 = vpack.c.b16 %v3142, %v3138
        %v3639 = vpack.c.b16 %v3143, %v3139
        %v3640 = vpack.c.b16 %v3144, %v3140
        %v3641 = vpack.c.b16 %v3145, %v3141
        %v3642 = vpack.c.b16 %v3150, %v3146
        %v3643 = vpack.c.b16 %v3151, %v3147
        %v3644 = vpack.c.b16 %v3152, %v3148
        %v3645 = vpack.c.b16 %v3153, %v3149
        %v3646 = vpack.c.b16 %v3158, %v3154
        %v3647 = vpack.c.b16 %v3159, %v3155
        %v3648 = vpack.c.b16 %v3160, %v3156
        %v3649 = vpack.c.b16 %v3161, %v3157
        %v3650 = vpack.c.b16 %v3166, %v3162
        %v3651 = vpack.c.b16 %v3167, %v3163
        %v3652 = vpack.c.b16 %v3168, %v3164
        %v3653 = vpack.c.b16 %v3169, %v3165
        %v3654 = vpack.c.b16 %v3174, %v3170
        %v3655 = vpack.c.b16 %v3175, %v3171
        %v3656 = vpack.c.b16 %v3176, %v3172
        %v3657 = vpack.c.b16 %v3177, %v3173
        %v3658 = vpack.c.b16 %v3182, %v3178
        %v3659 = vpack.c.b16 %v3183, %v3179
        %v3660 = vpack.c.b16 %v3184, %v3180
        %v3661 = vpack.c.b16 %v3185, %v3181
        %v3662 = vpack.c.b16 %v3190, %v3186
        %v3663 = vpack.c.b16 %v3191, %v3187
        %v3664 = vpack.c.b16 %v3192, %v3188
        %v3665 = vpack.c.b16 %v3193, %v3189
        %v3666 = vpack.c.b16 %v3198, %v3194
        %v3667 = vpack.c.b16 %v3199, %v3195
        %v3668 = vpack.c.b16 %v3200, %v3196
        %v3669 = vpack.c.b16 %v3201, %v3197
        %v3670 = vpack.c.b16 %v3206, %v3202
        %v3671 = vpack.c.b16 %v3207, %v3203
        %v3672 = vpack.c.b16 %v3208, %v3204
        %v3673 = vpack.c.b16 %v3209, %v3205
        %v3674 = vpack.c.b16 %v3214, %v3210
        %v3675 = vpack.c.b16 %v3215, %v3211
        %v3676 = vpack.c.b16 %v3216, %v3212
        %v3677 = vpack.c.b16 %v3217, %v3213
        %v3678 = vpack.c.b16 %v3222, %v3218
        %v3679 = vpack.c.b16 %v3223, %v3219
        %v3680 = vpack.c.b16 %v3224, %v3220
        %v3681 = vpack.c.b16 %v3225, %v3221
        %v3682 = vpack.c.b16 %v3230, %v3226
        %v3683 = vpack.c.b16 %v3231, %v3227
        %v3684 = vpack.c.b16 %v3232, %v3228
        %v3685 = vpack.c.b16 %v3233, %v3229
        %v3686 = vpack.c.b16 %v3238, %v3234
        %v3687 = vpack.c.b16 %v3239, %v3235
        %v3688 = vpack.c.b16 %v3240, %v3236
        %v3689 = vpack.c.b16 %v3241, %v3237
        %v3690 = vpack.c.b16 %v3246, %v3242
        %v3691 = vpack.c.b16 %v3247, %v3243
        %v3692 = vpack.c.b16 %v3248, %v3244
        %v3693 = vpack.c.b16 %v3249, %v3245
        %v3694 = vpack.c.b16 %v3254, %v3250
        %v3695 = vpack.c.b16 %v3255, %v3251
        %v3696 = vpack.c.b16 %v3256, %v3252
        %v3697 = vpack.c.b16 %v3257, %v3253
        %v3698 = vpack.c.b16 %v3262, %v3258
        %v3699 = vpack.c.b16 %v3263, %v3259
        %v3700 = vpack.c.b16 %v3264, %v3260
        %v3701 = vpack.c.b16 %v3265, %v3261
        %v3702 = vpack.c.b16 %v3270, %v3266
        %v3703 = vpack.c.b16 %v3271, %v3267
        %v3704 = vpack.c.b16 %v3272, %v3268
        %v3705 = vpack.c.b16 %v3273, %v3269
        %v3706 = vpack.c.b16 %v3278, %v3274
        %v3707 = vpack.c.b16 %v3279, %v3275
        %v3708 = vpack.c.b16 %v3280, %v3276
        %v3709 = vpack.c.b16 %v3281, %v3277
        %v3710 = vpack.c.b16 %v3286, %v3282
        %v3711 = vpack.c.b16 %v3287, %v3283
        %v3712 = vpack.c.b16 %v3288, %v3284
        %v3713 = vpack.c.b16 %v3289, %v3285
        %v3714 = vpack.c.b16 %v3294, %v3290
        %v3715 = vpack.c.b16 %v3295, %v3291
        %v3716 = vpack.c.b16 %v3296, %v3292
        %v3717 = vpack.c.b16 %v3297, %v3293
        %v3718 = vpack.c.b16 %v3302, %v3298
        %v3719 = vpack.c.b16 %v3303, %v3299
        %v3720 = vpack.c.b16 %v3304, %v3300
        %v3721 = vpack.c.b16 %v3305, %v3301
        %v3722 = vpack.c.b16 %v3310, %v3306
        %v3723 = vpack.c.b16 %v3311, %v3307
        %v3724 = vpack.c.b16 %v3312, %v3308
        %v3725 = vpack.c.b16 %v3313, %v3309
        %v3726 = vpack.c.b16 %v3318, %v3314
        %v3727 = vpack.c.b16 %v3319, %v3315
        %v3728 = vpack.c.b16 %v3320, %v3316
        %v3729 = vpack.c.b16 %v3321, %v3317
        %v3730 = vpack.c.b16 %v3326, %v3322
        %v3731 = vpack.c.b16 %v3327, %v3323
        %v3732 = vpack.c.b16 %v3328, %v3324
        %v3733 = vpack.c.b16 %v3329, %v3325
        %v3734 = vpack.c.b16 %v3334, %v3330
        %v3735 = vpack.c.b16 %v3335, %v3331
        %v3736 = vpack.c.b16 %v3336, %v3332
        %v3737 = vpack.c.b16 %v3337, %v3333
        %v3738 = vpack.c.b16 %v3342, %v3338
        %v3739 = vpack.c.b16 %v3343, %v3339
        %v3740 = vpack.c.b16 %v3344, %v3340
        %v3741 = vpack.c.b16 %v3345, %v3341
        %v3742 = vpack.c.b16 %v3350, %v3346
        %v3743 = vpack.c.b16 %v3351, %v3347
        %v3744 = vpack.c.b16 %v3352, %v3348
        %v3745 = vpack.c.b16 %v3353, %v3349
        %v3746 = vpack.c.b16 %v3358, %v3354
        %v3747 = vpack.c.b16 %v3359, %v3355
        %v3748 = vpack.c.b16 %v3360, %v3356
        %v3749 = vpack.c.b16 %v3361, %v3357
        %v3750 = vpack.c.b16 %v3366, %v3362
        %v3751 = vpack.c.b16 %v3367, %v3363
        %v3752 = vpack.c.b16 %v3368, %v3364
        %v3753 = vpack.c.b16 %v3369, %v3365
        %v3754 = vpack.c.b16 %v3374, %v3370
        %v3755 = vpack.c.b16 %v3375, %v3371
        %v3756 = vpack.c.b16 %v3376, %v3372
        %v3757 = vpack.c.b16 %v3377, %v3373
        %v3758 = vpack.c.b16 %v3382, %v3378
        %v3759 = vpack.c.b16 %v3383, %v3379
        %v3760 = vpack.c.b16 %v3384, %v3380
        %v3761 = vpack.c.b16 %v3385, %v3381
        %v3762 = vpack.c.b16 %v3390, %v3386
        %v3763 = vpack.c.b16 %v3391, %v3387
        %v3764 = vpack.c.b16 %v3392, %v3388
        %v3765 = vpack.c.b16 %v3393, %v3389
        %v3766 = vpack.c.b16 %v3398, %v3394
        %v3767 = vpack.c.b16 %v3399, %v3395
        %v3768 = vpack.c.b16 %v3400, %v3396
        %v3769 = vpack.c.b16 %v3401, %v3397
        %v3770 = vpack.c.b16 %v3406, %v3402
        %v3771 = vpack.c.b16 %v3407, %v3403
        %v3772 = vpack.c.b16 %v3408, %v3404
        %v3773 = vpack.c.b16 %v3409, %v3405
        %v3774 = vpack.c.b16 %v3414, %v3410
        %v3775 = vpack.c.b16 %v3415, %v3411
        %v3776 = vpack.c.b16 %v3416, %v3412
        %v3777 = vpack.c.b16 %v3417, %v3413
        %v3778 = vpack.c.b16 %v3422, %v3418
        %v3779 = vpack.c.b16 %v3423, %v3419
        %v3780 = vpack.c.b16 %v3424, %v3420
        %v3781 = vpack.c.b16 %v3425, %v3421
        %v3782 = vpack.c.b16 %v3430, %v3426
        %v3783 = vpack.c.b16 %v3431, %v3427
        %v3784 = vpack.c.b16 %v3432, %v3428
        %v3785 = vpack.c.b16 %v3433, %v3429
        %v3786 = vpack.c.b16 %v3438, %v3434
        %v3787 = vpack.c.b16 %v3439, %v3435
        %v3788 = vpack.c.b16 %v3440, %v3436
        %v3789 = vpack.c.b16 %v3441, %v3437
        %v3790 = vpack.c.b16 %v3446, %v3442
        %v3791 = vpack.c.b16 %v3447, %v3443
        %v3792 = vpack.c.b16 %v3448, %v3444
        %v3793 = vpack.c.b16 %v3449, %v3445
        %v3794 = vpack.c.b16 %v3454, %v3450
        %v3795 = vpack.c.b16 %v3455, %v3451
        %v3796 = vpack.c.b16 %v3456, %v3452
        %v3797 = vpack.c.b16 %v3457, %v3453
        %v3798 = vpack.c.b16 %v3462, %v3458
        %v3799 = vpack.c.b16 %v3463, %v3459
        %v3800 = vpack.c.b16 %v3464, %v3460
        %v3801 = vpack.c.b16 %v3465, %v3461
        %v3802 = vpack.c.b16 %v3470, %v3466
        %v3803 = vpack.c.b16 %v3471, %v3467
        %v3804 = vpack.c.b16 %v3472, %v3468
        %v3805 = vpack.c.b16 %v3473, %v3469
        %v3806 = vpack.c.b16 %v3478, %v3474
        %v3807 = vpack.c.b16 %v3479, %v3475
        %v3808 = vpack.c.b16 %v3480, %v3476
        %v3809 = vpack.c.b16 %v3481, %v3477
        %v3810 = vpack.c.b16 %v3486, %v3482
        %v3811 = vpack.c.b16 %v3487, %v3483
        %v3812 = vpack.c.b16 %v3488, %v3484
        %v3813 = vpack.c.b16 %v3489, %v3485
        %v3814 = vpack.c.b16 %v3494, %v3490
        %v3815 = vpack.c.b16 %v3495, %v3491
        %v3816 = vpack.c.b16 %v3496, %v3492
        %v3817 = vpack.c.b16 %v3497, %v3493
        %v3818 = vpack.c.b16 %v3502, %v3498
        %v3819 = vpack.c.b16 %v3503, %v3499
        %v3820 = vpack.c.b16 %v3504, %v3500
        %v3821 = vpack.c.b16 %v3505, %v3501
        %v3822 = vpack.c.b16 %v3510, %v3506
        %v3823 = vpack.c.b16 %v3511, %v3507
        %v3824 = vpack.c.b16 %v3512, %v3508
        %v3825 = vpack.c.b16 %v3513, %v3509
        %v3826 = vpack.c.b16 %v3518, %v3514
        %v3827 = vpack.c.b16 %v3519, %v3515
        %v3828 = vpack.c.b16 %v3520, %v3516
        %v3829 = vpack.c.b16 %v3521, %v3517
        %v3830 = vpack.c.b16 %v3526, %v3522
        %v3831 = vpack.c.b16 %v3527, %v3523
        %v3832 = vpack.c.b16 %v3528, %v3524
        %v3833 = vpack.c.b16 %v3529, %v3525
        %v3834 = vpack.c.b16 %v3534, %v3530
        %v3835 = vpack.c.b16 %v3535, %v3531
        %v3836 = vpack.c.b16 %v3536, %v3532
        %v3837 = vpack.c.b16 %v3537, %v3533
        %v3838 = vpack.c.b16 %v3542, %v3538
        %v3839 = vpack.c.b16 %v3543, %v3539
        %v3840 = vpack.c.b16 %v3544, %v3540
        %v3841 = vpack.c.b16 %v3545, %v3541
        %v3842 = vpack.c.b16 %v3550, %v3546
        %v3843 = vpack.c.b16 %v3551, %v3547
        %v3844 = vpack.c.b16 %v3552, %v3548
        %v3845 = vpack.c.b16 %v3553, %v3549
        %v3846 = vpack.c.b16 %v3558, %v3554
        %v3847 = vpack.c.b16 %v3559, %v3555
        %v3848 = vpack.c.b16 %v3560, %v3556
        %v3849 = vpack.c.b16 %v3561, %v3557
        %v3850 = vpack.c.b16 %v3566, %v3562
        %v3851 = vpack.c.b16 %v3567, %v3563
        %v3852 = vpack.c.b16 %v3568, %v3564
        %v3853 = vpack.c.b16 %v3569, %v3565
        %v3854 = vpack.c.b16 %v3574, %v3570
        %v3855 = vpack.c.b16 %v3575, %v3571
        %v3856 = vpack.c.b16 %v3576, %v3572
        %v3857 = vpack.c.b16 %v3577, %v3573
        %v3858 = vpack.c.b16 %v3582, %v3578
        %v3859 = vpack.c.b16 %v3583, %v3579
        %v3860 = vpack.c.b16 %v3584, %v3580
        %v3861 = vpack.c.b16 %v3585, %v3581
        %v3862 = vpack.c.b16 %v3590, %v3586
        %v3863 = vpack.c.b16 %v3591, %v3587
        %v3864 = vpack.c.b16 %v3592, %v3588
        %v3865 = vpack.c.b16 %v3593, %v3589
        %v3866 = vpack.c.b16 %v3598, %v3594
        %v3867 = vpack.c.b16 %v3599, %v3595
        %v3868 = vpack.c.b16 %v3600, %v3596
        %v3869 = vpack.c.b16 %v3601, %v3597
        %v3870 = vpack.c.b16 %v3606, %v3602
        %v3871 = vpack.c.b16 %v3607, %v3603
        %v3872 = vpack.c.b16 %v3608, %v3604
        %v3873 = vpack.c.b16 %v3609, %v3605
        %v3874 = vpack.c.b16 %v3614, %v3610
        %v3875 = vpack.c.b16 %v3615, %v3611
        %v3876 = vpack.c.b16 %v3616, %v3612
        %v3877 = vpack.c.b16 %v3617, %v3613
        %v3878 = vpack.c.b16 %v3622, %v3618
        %v3879 = vpack.c.b16 %v3623, %v3619
        %v3880 = vpack.c.b16 %v3624, %v3620
        %v3881 = vpack.c.b16 %v3625, %v3621
        %v4139 = vlaneseq
        %v4140 = vshrl.u32 %v4139, 7
        %v4141 = vsub.s32 0, %v4140
        %v4142 = vrot.slane %v2857, %v4141
        %v4143 = vlaneseq
        %v4144 = vshrl.u32 %v4143, 7
        %v4145 = vsub.s32 1, %v4144
        %v4146 = vrot.slane %v2857, %v4145
        %v4147 = vlaneseq
        %v4148 = vshrl.u32 %v4147, 7
        %v4149 = vsub.s32 2, %v4148
        %v4150 = vrot.slane %v2857, %v4149
        %v4151 = vlaneseq
        %v4152 = vshrl.u32 %v4151, 7
        %v4153 = vsub.s32 3, %v4152
        %v4154 = vrot.slane %v2857, %v4153
        %4159 = vmatprep.subr.bf16.mxu0 %v3627
        %4160 = vmatpush1.bf16.msra.mxu0 %v3626
        %4161 = vmatprep.subr.bf16.mxu0 %v3631
        %4162 = vmatpush1.bf16.msra.mxu0 %v3630
        %4163 = vmatprep.subr.bf16.mxu0 %v3635
        %4164 = vmatpush1.bf16.msra.mxu0 %v3634
        %4165 = vmatprep.subr.bf16.mxu0 %v3639
        %4166 = vmatpush1.bf16.msra.mxu0 %v3638
        %4167 = vmatprep.subr.bf16.mxu0 %v3643
        %4168 = vmatpush1.bf16.msra.mxu0 %v3642
        %4169 = vmatprep.subr.bf16.mxu0 %v3647
        %4170 = vmatpush1.bf16.msra.mxu0 %v3646
        %4171 = vmatprep.subr.bf16.mxu0 %v3651
        %4172 = vmatpush1.bf16.msra.mxu0 %v3650
        %4173 = vmatprep.subr.bf16.mxu0 %v3655
        %4174 = vmatpush1.bf16.msra.mxu0 %v3654
        %4175 = vmatprep.subr.bf16.mxu0 %v3659
        %4176 = vmatpush1.bf16.msra.mxu0 %v3658
        %4177 = vmatprep.subr.bf16.mxu0 %v3663
        %4178 = vmatpush1.bf16.msra.mxu0 %v3662
        %4179 = vmatprep.subr.bf16.mxu0 %v3667
        %4180 = vmatpush1.bf16.msra.mxu0 %v3666
        %4181 = vmatprep.subr.bf16.mxu0 %v3671
        %4182 = vmatpush1.bf16.msra.mxu0 %v3670
        %4183 = vmatprep.subr.bf16.mxu0 %v3675
        %4184 = vmatpush1.bf16.msra.mxu0 %v3674
        %4185 = vmatprep.subr.bf16.mxu0 %v3679
        %4186 = vmatpush1.bf16.msra.mxu0 %v3678
        %4187 = vmatprep.subr.bf16.mxu0 %v3683
        %4188 = vmatpush1.bf16.msra.mxu0 %v3682
        %4189 = vmatprep.subr.bf16.mxu0 %v3687
        %4190 = vmatpush1.bf16.msra.mxu0 %v3686
        %4191 = vmatprep.mubr.bf16.mxu0 %v2594
        %4192 = vmatmul.mubr.bf16.gmra.mrb[0].mxu0 %v2593
        %v4193 = vpop.f32.mrb[0].mxu0
        %v4194 = vadd.f32 %v4142, %v4193
        %v4195 = vpop.f32.mrb[0].mxu0
        %v4196 = vadd.f32 %v4146, %v4195
        %v4197 = vpop.f32.mrb[0].mxu0
        %v4198 = vpop.f32.mrb[0].mxu0
        %4199 = vdwg.mxu0
        %4200 = vmatprep.subr.bf16.mxu0 %v3691
        %4201 = vmatpush1.bf16.msra.mxu0 %v3690
        %4202 = vmatprep.subr.bf16.mxu0 %v3695
        %4203 = vmatpush1.bf16.msra.mxu0 %v3694
        %4204 = vmatprep.subr.bf16.mxu0 %v3699
        %4205 = vmatpush1.bf16.msra.mxu0 %v3698
        %4206 = vmatprep.subr.bf16.mxu0 %v3703
        %4207 = vmatpush1.bf16.msra.mxu0 %v3702
        %4208 = vmatprep.subr.bf16.mxu0 %v3707
        %4209 = vmatpush1.bf16.msra.mxu0 %v3706
        %4210 = vmatprep.subr.bf16.mxu0 %v3711
        %4211 = vmatpush1.bf16.msra.mxu0 %v3710
        %4212 = vmatprep.subr.bf16.mxu0 %v3715
        %4213 = vmatpush1.bf16.msra.mxu0 %v3714
        %4214 = vmatprep.subr.bf16.mxu0 %v3719
        %4215 = vmatpush1.bf16.msra.mxu0 %v3718
        %4216 = vmatprep.subr.bf16.mxu0 %v3723
        %4217 = vmatpush1.bf16.msra.mxu0 %v3722
        %4218 = vmatprep.subr.bf16.mxu0 %v3727
        %4219 = vmatpush1.bf16.msra.mxu0 %v3726
        %4220 = vmatprep.subr.bf16.mxu0 %v3731
        %4221 = vmatpush1.bf16.msra.mxu0 %v3730
        %4222 = vmatprep.subr.bf16.mxu0 %v3735
        %4223 = vmatpush1.bf16.msra.mxu0 %v3734
        %4224 = vmatprep.subr.bf16.mxu0 %v3739
        %4225 = vmatpush1.bf16.msra.mxu0 %v3738
        %4226 = vmatprep.subr.bf16.mxu0 %v3743
        %4227 = vmatpush1.bf16.msra.mxu0 %v3742
        %4228 = vmatprep.subr.bf16.mxu0 %v3747
        %4229 = vmatpush1.bf16.msra.mxu0 %v3746
        %4230 = vmatprep.subr.bf16.mxu0 %v3751
        %4231 = vmatpush1.bf16.msra.mxu0 %v3750
        %4232 = vmatprep.mubr.bf16.mxu0 %v2596
        %4233 = vmatmul.mubr.bf16.gmra.mrb[0].mxu0 %v2595
        %v4234 = vpop.f32.mrb[0].mxu0
        %v4235 = vadd.f32 %v4194, %v4234
        %v4236 = vpop.f32.mrb[0].mxu0
        %v4237 = vadd.f32 %v4196, %v4236
        %v4238 = vpop.f32.mrb[0].mxu0
        %v4239 = vpop.f32.mrb[0].mxu0
        %4240 = vdwg.mxu0
        %4241 = vmatprep.subr.bf16.mxu0 %v3755
        %4242 = vmatpush1.bf16.msra.mxu0 %v3754
        %4243 = vmatprep.subr.bf16.mxu0 %v3759
        %4244 = vmatpush1.bf16.msra.mxu0 %v3758
        %4245 = vmatprep.subr.bf16.mxu0 %v3763
        %4246 = vmatpush1.bf16.msra.mxu0 %v3762
        %4247 = vmatprep.subr.bf16.mxu0 %v3767
        %4248 = vmatpush1.bf16.msra.mxu0 %v3766
        %4249 = vmatprep.subr.bf16.mxu0 %v3771
        %4250 = vmatpush1.bf16.msra.mxu0 %v3770
        %4251 = vmatprep.subr.bf16.mxu0 %v3775
        %4252 = vmatpush1.bf16.msra.mxu0 %v3774
        %4253 = vmatprep.subr.bf16.mxu0 %v3779
        %4254 = vmatpush1.bf16.msra.mxu0 %v3778
        %4255 = vmatprep.subr.bf16.mxu0 %v3783
        %4256 = vmatpush1.bf16.msra.mxu0 %v3782
        %4257 = vmatprep.subr.bf16.mxu0 %v3787
        %4258 = vmatpush1.bf16.msra.mxu0 %v3786
        %4259 = vmatprep.subr.bf16.mxu0 %v3791
        %4260 = vmatpush1.bf16.msra.mxu0 %v3790
        %4261 = vmatprep.subr.bf16.mxu0 %v3795
        %4262 = vmatpush1.bf16.msra.mxu0 %v3794
        %4263 = vmatprep.subr.bf16.mxu0 %v3799
        %4264 = vmatpush1.bf16.msra.mxu0 %v3798
        %4265 = vmatprep.subr.bf16.mxu0 %v3803
        %4266 = vmatpush1.bf16.msra.mxu0 %v3802
        %4267 = vmatprep.subr.bf16.mxu0 %v3807
        %4268 = vmatpush1.bf16.msra.mxu0 %v3806
        %4269 = vmatprep.subr.bf16.mxu0 %v3811
        %4270 = vmatpush1.bf16.msra.mxu0 %v3810
        %4271 = vmatprep.subr.bf16.mxu0 %v3815
        %4272 = vmatpush1.bf16.msra.mxu0 %v3814
        %4273 = vmatprep.mubr.bf16.mxu0 %v2598
        %4274 = vmatmul.mubr.bf16.gmra.mrb[0].mxu0 %v2597
        %v4275 = vpop.f32.mrb[0].mxu0
        %v4276 = vadd.f32 %v4235, %v4275
        %v4277 = vpop.f32.mrb[0].mxu0
        %v4278 = vadd.f32 %v4237, %v4277
        %v4279 = vpop.f32.mrb[0].mxu0
        %v4280 = vpop.f32.mrb[0].mxu0
        %4281 = vdwg.mxu0
        %4282 = vmatprep.subr.bf16.mxu0 %v3819
        %4283 = vmatpush1.bf16.msra.mxu0 %v3818
        %4284 = vmatprep.subr.bf16.mxu0 %v3823
        %4285 = vmatpush1.bf16.msra.mxu0 %v3822
        %4286 = vmatprep.subr.bf16.mxu0 %v3827
        %4287 = vmatpush1.bf16.msra.mxu0 %v3826
        %4288 = vmatprep.subr.bf16.mxu0 %v3831
        %4289 = vmatpush1.bf16.msra.mxu0 %v3830
        %4290 = vmatprep.subr.bf16.mxu0 %v3835
        %4291 = vmatpush1.bf16.msra.mxu0 %v3834
        %4292 = vmatprep.subr.bf16.mxu0 %v3839
        %4293 = vmatpush1.bf16.msra.mxu0 %v3838
        %4294 = vmatprep.subr.bf16.mxu0 %v3843
        %4295 = vmatpush1.bf16.msra.mxu0 %v3842
        %4296 = vmatprep.subr.bf16.mxu0 %v3847
        %4297 = vmatpush1.bf16.msra.mxu0 %v3846
        %4298 = vmatprep.subr.bf16.mxu0 %v3851
        %4299 = vmatpush1.bf16.msra.mxu0 %v3850
        %4300 = vmatprep.subr.bf16.mxu0 %v3855
        %4301 = vmatpush1.bf16.msra.mxu0 %v3854
        %4302 = vmatprep.subr.bf16.mxu0 %v3859
        %4303 = vmatpush1.bf16.msra.mxu0 %v3858
        %4304 = vmatprep.subr.bf16.mxu0 %v3863
        %4305 = vmatpush1.bf16.msra.mxu0 %v3862
        %4306 = vmatprep.subr.bf16.mxu0 %v3867
        %4307 = vmatpush1.bf16.msra.mxu0 %v3866
        %4308 = vmatprep.subr.bf16.mxu0 %v3871
        %4309 = vmatpush1.bf16.msra.mxu0 %v3870
        %4310 = vmatprep.subr.bf16.mxu0 %v3875
        %4311 = vmatpush1.bf16.msra.mxu0 %v3874
        %4312 = vmatprep.subr.bf16.mxu0 %v3879
        %4313 = vmatpush1.bf16.msra.mxu0 %v3878
        %4314 = vmatprep.mubr.bf16.mxu0 %v2600
        %4315 = vmatmul.mubr.bf16.gmra.mrb[0].mxu0 %v2599
        %v4316 = vpop.f32.mrb[0].mxu0
        %v4317 = vadd.f32 %v4276, %v4316
        %v4318 = vpop.f32.mrb[0].mxu0
        %v4319 = vadd.f32 %v4278, %v4318
        %v4320 = vpop.f32.mrb[0].mxu0
        %v4321 = vpop.f32.mrb[0].mxu0
        %4322 = vdwg.mxu0
        %4323 = vmatprep.subr.bf16.mxu0 %v3629
        %4324 = vmatpush1.bf16.msra.mxu0 %v3628
        %4325 = vmatprep.subr.bf16.mxu0 %v3633
        %4326 = vmatpush1.bf16.msra.mxu0 %v3632
        %4327 = vmatprep.subr.bf16.mxu0 %v3637
        %4328 = vmatpush1.bf16.msra.mxu0 %v3636
        %4329 = vmatprep.subr.bf16.mxu0 %v3641
        %4330 = vmatpush1.bf16.msra.mxu0 %v3640
        %4331 = vmatprep.subr.bf16.mxu0 %v3645
        %4332 = vmatpush1.bf16.msra.mxu0 %v3644
        %4333 = vmatprep.subr.bf16.mxu0 %v3649
        %4334 = vmatpush1.bf16.msra.mxu0 %v3648
        %4335 = vmatprep.subr.bf16.mxu0 %v3653
        %4336 = vmatpush1.bf16.msra.mxu0 %v3652
        %4337 = vmatprep.subr.bf16.mxu0 %v3657
        %4338 = vmatpush1.bf16.msra.mxu0 %v3656
        %4339 = vmatprep.subr.bf16.mxu0 %v3661
        %4340 = vmatpush1.bf16.msra.mxu0 %v3660
        %4341 = vmatprep.subr.bf16.mxu0 %v3665
        %4342 = vmatpush1.bf16.msra.mxu0 %v3664
        %4343 = vmatprep.subr.bf16.mxu0 %v3669
        %4344 = vmatpush1.bf16.msra.mxu0 %v3668
        %4345 = vmatprep.subr.bf16.mxu0 %v3673
        %4346 = vmatpush1.bf16.msra.mxu0 %v3672
        %4347 = vmatprep.subr.bf16.mxu0 %v3677
        %4348 = vmatpush1.bf16.msra.mxu0 %v3676
        %4349 = vmatprep.subr.bf16.mxu0 %v3681
        %4350 = vmatpush1.bf16.msra.mxu0 %v3680
        %4351 = vmatprep.subr.bf16.mxu0 %v3685
        %4352 = vmatpush1.bf16.msra.mxu0 %v3684
        %4353 = vmatprep.subr.bf16.mxu0 %v3689
        %4354 = vmatpush1.bf16.msra.mxu0 %v3688
        %4355 = vmatprep.mubr.bf16.mxu0 %v2594
        %4356 = vmatmul.mubr.bf16.gmra.mrb[0].mxu0 %v2593
        %v4357 = vpop.f32.mrb[0].mxu0
        %v4358 = vadd.f32 %v4150, %v4357
        %v4359 = vpop.f32.mrb[0].mxu0
        %v4360 = vadd.f32 %v4154, %v4359
        %v4361 = vpop.f32.mrb[0].mxu0
        %v4362 = vpop.f32.mrb[0].mxu0
        %4363 = vdwg.mxu0
        %4364 = vmatprep.subr.bf16.mxu0 %v3693
        %4365 = vmatpush1.bf16.msra.mxu0 %v3692
        %4366 = vmatprep.subr.bf16.mxu0 %v3697
        %4367 = vmatpush1.bf16.msra.mxu0 %v3696
        %4368 = vmatprep.subr.bf16.mxu0 %v3701
        %4369 = vmatpush1.bf16.msra.mxu0 %v3700
        %4370 = vmatprep.subr.bf16.mxu0 %v3705
        %4371 = vmatpush1.bf16.msra.mxu0 %v3704
        %4372 = vmatprep.subr.bf16.mxu0 %v3709
        %4373 = vmatpush1.bf16.msra.mxu0 %v3708
        %4374 = vmatprep.subr.bf16.mxu0 %v3713
        %4375 = vmatpush1.bf16.msra.mxu0 %v3712
        %4376 = vmatprep.subr.bf16.mxu0 %v3717
        %4377 = vmatpush1.bf16.msra.mxu0 %v3716
        %4378 = vmatprep.subr.bf16.mxu0 %v3721
        %4379 = vmatpush1.bf16.msra.mxu0 %v3720
        %4380 = vmatprep.subr.bf16.mxu0 %v3725
        %4381 = vmatpush1.bf16.msra.mxu0 %v3724
        %4382 = vmatprep.subr.bf16.mxu0 %v3729
        %4383 = vmatpush1.bf16.msra.mxu0 %v3728
        %4384 = vmatprep.subr.bf16.mxu0 %v3733
        %4385 = vmatpush1.bf16.msra.mxu0 %v3732
        %4386 = vmatprep.subr.bf16.mxu0 %v3737
        %4387 = vmatpush1.bf16.msra.mxu0 %v3736
        %4388 = vmatprep.subr.bf16.mxu0 %v3741
        %4389 = vmatpush1.bf16.msra.mxu0 %v3740
        %4390 = vmatprep.subr.bf16.mxu0 %v3745
        %4391 = vmatpush1.bf16.msra.mxu0 %v3744
        %4392 = vmatprep.subr.bf16.mxu0 %v3749
        %4393 = vmatpush1.bf16.msra.mxu0 %v3748
        %4394 = vmatprep.subr.bf16.mxu0 %v3753
        %4395 = vmatpush1.bf16.msra.mxu0 %v3752
        %4396 = vmatprep.mubr.bf16.mxu0 %v2596
        %4397 = vmatmul.mubr.bf16.gmra.mrb[0].mxu0 %v2595
        %v4398 = vpop.f32.mrb[0].mxu0
        %v4399 = vadd.f32 %v4358, %v4398
        %v4400 = vpop.f32.mrb[0].mxu0
        %v4401 = vadd.f32 %v4360, %v4400
        %v4402 = vpop.f32.mrb[0].mxu0
        %v4403 = vpop.f32.mrb[0].mxu0
        %4404 = vdwg.mxu0
        %4405 = vmatprep.subr.bf16.mxu0 %v3757
        %4406 = vmatpush1.bf16.msra.mxu0 %v3756
        %4407 = vmatprep.subr.bf16.mxu0 %v3761
        %4408 = vmatpush1.bf16.msra.mxu0 %v3760
        %4409 = vmatprep.subr.bf16.mxu0 %v3765
        %4410 = vmatpush1.bf16.msra.mxu0 %v3764
        %4411 = vmatprep.subr.bf16.mxu0 %v3769
        %4412 = vmatpush1.bf16.msra.mxu0 %v3768
        %4413 = vmatprep.subr.bf16.mxu0 %v3773
        %4414 = vmatpush1.bf16.msra.mxu0 %v3772
        %4415 = vmatprep.subr.bf16.mxu0 %v3777
        %4416 = vmatpush1.bf16.msra.mxu0 %v3776
        %4417 = vmatprep.subr.bf16.mxu0 %v3781
        %4418 = vmatpush1.bf16.msra.mxu0 %v3780
        %4419 = vmatprep.subr.bf16.mxu0 %v3785
        %4420 = vmatpush1.bf16.msra.mxu0 %v3784
        %4421 = vmatprep.subr.bf16.mxu0 %v3789
        %4422 = vmatpush1.bf16.msra.mxu0 %v3788
        %4423 = vmatprep.subr.bf16.mxu0 %v3793
        %4424 = vmatpush1.bf16.msra.mxu0 %v3792
        %4425 = vmatprep.subr.bf16.mxu0 %v3797
        %4426 = vmatpush1.bf16.msra.mxu0 %v3796
        %4427 = vmatprep.subr.bf16.mxu0 %v3801
        %4428 = vmatpush1.bf16.msra.mxu0 %v3800
        %4429 = vmatprep.subr.bf16.mxu0 %v3805
        %4430 = vmatpush1.bf16.msra.mxu0 %v3804
        %4431 = vmatprep.subr.bf16.mxu0 %v3809
        %4432 = vmatpush1.bf16.msra.mxu0 %v3808
        %4433 = vmatprep.subr.bf16.mxu0 %v3813
        %4434 = vmatpush1.bf16.msra.mxu0 %v3812
        %4435 = vmatprep.subr.bf16.mxu0 %v3817
        %4436 = vmatpush1.bf16.msra.mxu0 %v3816
        %4437 = vmatprep.mubr.bf16.mxu0 %v2598
        %4438 = vmatmul.mubr.bf16.gmra.mrb[0].mxu0 %v2597
        %v4439 = vpop.f32.mrb[0].mxu0
        %v4440 = vadd.f32 %v4399, %v4439
        %v4441 = vpop.f32.mrb[0].mxu0
        %v4442 = vadd.f32 %v4401, %v4441
        %v4443 = vpop.f32.mrb[0].mxu0
        %v4444 = vpop.f32.mrb[0].mxu0
        %4445 = vdwg.mxu0
        %4446 = vmatprep.subr.bf16.mxu0 %v3821
        %4447 = vmatpush1.bf16.msra.mxu0 %v3820
        %4448 = vmatprep.subr.bf16.mxu0 %v3825
        %4449 = vmatpush1.bf16.msra.mxu0 %v3824
        %4450 = vmatprep.subr.bf16.mxu0 %v3829
        %4451 = vmatpush1.bf16.msra.mxu0 %v3828
        %4452 = vmatprep.subr.bf16.mxu0 %v3833
        %4453 = vmatpush1.bf16.msra.mxu0 %v3832
        %4454 = vmatprep.subr.bf16.mxu0 %v3837
        %4455 = vmatpush1.bf16.msra.mxu0 %v3836
        %4456 = vmatprep.subr.bf16.mxu0 %v3841
        %4457 = vmatpush1.bf16.msra.mxu0 %v3840
        %4458 = vmatprep.subr.bf16.mxu0 %v3845
        %4459 = vmatpush1.bf16.msra.mxu0 %v3844
        %4460 = vmatprep.subr.bf16.mxu0 %v3849
        %4461 = vmatpush1.bf16.msra.mxu0 %v3848
        %4462 = vmatprep.subr.bf16.mxu0 %v3853
        %4463 = vmatpush1.bf16.msra.mxu0 %v3852
        %4464 = vmatprep.subr.bf16.mxu0 %v3857
        %4465 = vmatpush1.bf16.msra.mxu0 %v3856
        %4466 = vmatprep.subr.bf16.mxu0 %v3861
        %4467 = vmatpush1.bf16.msra.mxu0 %v3860
        %4468 = vmatprep.subr.bf16.mxu0 %v3865
        %4469 = vmatpush1.bf16.msra.mxu0 %v3864
        %4470 = vmatprep.subr.bf16.mxu0 %v3869
        %4471 = vmatpush1.bf16.msra.mxu0 %v3868
        %4472 = vmatprep.subr.bf16.mxu0 %v3873
        %4473 = vmatpush1.bf16.msra.mxu0 %v3872
        %4474 = vmatprep.subr.bf16.mxu0 %v3877
        %4475 = vmatpush1.bf16.msra.mxu0 %v3876
        %4476 = vmatprep.subr.bf16.mxu0 %v3881
        %4477 = vmatpush1.bf16.msra.mxu0 %v3880
        %4478 = vmatprep.mubr.bf16.mxu0 %v2600
        %4479 = vmatmul.mubr.bf16.gmra.mrb[0].mxu0 %v2599
        %v4480 = vpop.f32.mrb[0].mxu0
        %v4481 = vadd.f32 %v4440, %v4480
        %v4482 = vpop.f32.mrb[0].mxu0
        %v4483 = vadd.f32 %v4442, %v4482
        %v4484 = vpop.f32.mrb[0].mxu0
        %v4485 = vpop.f32.mrb[0].mxu0
        %4486 = vdwg.mxu0
        %vm4487 = vcmp.ge.f32.partialorder %v4317, 0.0
        %vm4488 = vcmp.ge.f32.partialorder %v4319, 0.0
        %vm4489 = vcmp.ge.f32.partialorder %v4481, 0.0
        %vm4490 = vcmp.ge.f32.partialorder %v4483, 0.0
        %v4491 = vmul.f32 %v4317, 0.2
        %v4492 = vmul.f32 %v4319, 0.2
        %v4493 = vmul.f32 %v4481, 0.2
        %v4494 = vmul.f32 %v4483, 0.2
        %v4495 = vsel %vm4487, %v4317, %v4491
        %v4496 = vsel %vm4488, %v4319, %v4492
        %v4497 = vsel %vm4489, %v4481, %v4493
        %v4498 = vsel %vm4490, %v4483, %v4494
        %s4499 = scalar_lea.vmem [#allocation8], 1
        %v4500 = vld [vmem:[%s4499] ss:$4 sm:$0xf]
        %v4502 = vlaneseq
        %v4503 = vshrl.u32 %v4502, 7
        %v4504 = vsub.s32 0, %v4503
        %v4505 = vrot.slane %v4500, %v4504
        %v4506 = vlaneseq
        %v4507 = vshrl.u32 %v4506, 7
        %v4508 = vsub.s32 1, %v4507
        %v4509 = vrot.slane %v4500, %v4508
        %v4510 = vlaneseq
        %v4511 = vshrl.u32 %v4510, 7
        %v4512 = vsub.s32 2, %v4511
        %v4513 = vrot.slane %v4500, %v4512
        %v4514 = vlaneseq
        %v4515 = vshrl.u32 %v4514, 7
        %v4516 = vsub.s32 3, %v4515
        %v4517 = vrot.slane %v4500, %v4516
        %v4522 = vmul.f32 %v4495, %v4505
        %v4523 = vmul.f32 %v4496, %v4509
        %v4524 = vmul.f32 %v4497, %v4513
        %v4525 = vmul.f32 %v4498, %v4517
        %s4526 = scalar_lea.vmem [#allocation8], 2
        %v4527 = vld [vmem:[%s4526] ss:$4 sm:$0xf]
        %v4529 = vlaneseq
        %v4530 = vshrl.u32 %v4529, 7
        %v4531 = vsub.s32 0, %v4530
        %v4532 = vrot.slane %v4527, %v4531
        %v4533 = vlaneseq
        %v4534 = vshrl.u32 %v4533, 7
        %v4535 = vsub.s32 1, %v4534
        %v4536 = vrot.slane %v4527, %v4535
        %v4537 = vlaneseq
        %v4538 = vshrl.u32 %v4537, 7
        %v4539 = vsub.s32 2, %v4538
        %v4540 = vrot.slane %v4527, %v4539
        %v4541 = vlaneseq
        %v4542 = vshrl.u32 %v4541, 7
        %v4543 = vsub.s32 3, %v4542
        %v4544 = vrot.slane %v4527, %v4543
        %v4549 = vadd.f32 %v4522, %v4532
        %v4550 = vadd.f32 %v4523, %v4536
        %v4551 = vadd.f32 %v4524, %v4540
        %v4552 = vadd.f32 %v4525, %v4544
        %v4553 = vpack.c.bf16 %v4549, %v4549
        %v4554 = vpack.c.bf16 %v4550, %v4550
        %v4555 = vpack.c.bf16 %v4551, %v4551
        %v4556 = vpack.c.bf16 %v4552, %v4552
        %v4557 = vld [vmem:[#allocation10] sm:$0xff]
        %v4558 = vld [vmem:[#allocation10 + $0x8] sm:$0xff]
        %v4559 = vld [vmem:[#allocation10 + $0x10] sm:$0xff]
        %v4560 = vld [vmem:[#allocation10 + $0x18] sm:$0xff]
        %v4561 = vld [vmem:[#allocation10 + $0x20] sm:$0xff]
        %v4562 = vld [vmem:[#allocation10 + $0x28] sm:$0xff]
        %v4563 = vld [vmem:[#allocation10 + $0x30] sm:$0xff]
        %v4564 = vld [vmem:[#allocation10 + $0x38] sm:$0xff]
        %v4565 = vld [vmem:[#allocation10 + $0x40] sm:$0xff]
        %v4566 = vld [vmem:[#allocation10 + $0x48] sm:$0xff]
        %v4567 = vld [vmem:[#allocation10 + $0x50] sm:$0xff]
        %v4568 = vld [vmem:[#allocation10 + $0x58] sm:$0xff]
        %v4569 = vld [vmem:[#allocation10 + $0x60] sm:$0xff]
        %v4570 = vld [vmem:[#allocation10 + $0x68] sm:$0xff]
        %v4571 = vld [vmem:[#allocation10 + $0x70] sm:$0xff]
        %v4572 = vld [vmem:[#allocation10 + $0x78] sm:$0xff]
        %v4573 = vld [vmem:[#allocation10 + $0x80] sm:$0xff]
        %v4574 = vld [vmem:[#allocation10 + $0x88] sm:$0xff]
        %v4575 = vld [vmem:[#allocation10 + $0x90] sm:$0xff]
        %v4576 = vld [vmem:[#allocation10 + $0x98] sm:$0xff]
        %v4577 = vld [vmem:[#allocation10 + $0xa0] sm:$0xff]
        %v4578 = vld [vmem:[#allocation10 + $0xa8] sm:$0xff]
        %v4579 = vld [vmem:[#allocation10 + $0xb0] sm:$0xff]
        %v4580 = vld [vmem:[#allocation10 + $0xb8] sm:$0xff]
        %v4581 = vld [vmem:[#allocation10 + $0xc0] sm:$0xff]
        %v4582 = vld [vmem:[#allocation10 + $0xc8] sm:$0xff]
        %v4583 = vld [vmem:[#allocation10 + $0xd0] sm:$0xff]
        %v4584 = vld [vmem:[#allocation10 + $0xd8] sm:$0xff]
        %v4585 = vld [vmem:[#allocation10 + $0xe0] sm:$0xff]
        %v4586 = vld [vmem:[#allocation10 + $0xe8] sm:$0xff]
        %v4587 = vld [vmem:[#allocation10 + $0xf0] sm:$0xff]
        %v4588 = vld [vmem:[#allocation10 + $0xf8] sm:$0xff]
        %v4589 = vld [vmem:[#allocation10 + $0x100] sm:$0xff]
        %v4590 = vld [vmem:[#allocation10 + $0x108] sm:$0xff]
        %v4591 = vld [vmem:[#allocation10 + $0x110] sm:$0xff]
        %v4592 = vld [vmem:[#allocation10 + $0x118] sm:$0xff]
        %v4593 = vld [vmem:[#allocation10 + $0x120] sm:$0xff]
        %v4594 = vld [vmem:[#allocation10 + $0x128] sm:$0xff]
        %v4595 = vld [vmem:[#allocation10 + $0x130] sm:$0xff]
        %v4596 = vld [vmem:[#allocation10 + $0x138] sm:$0xff]
        %v4597 = vld [vmem:[#allocation10 + $0x140] sm:$0xff]
        %v4598 = vld [vmem:[#allocation10 + $0x148] sm:$0xff]
        %v4599 = vld [vmem:[#allocation10 + $0x150] sm:$0xff]
        %v4600 = vld [vmem:[#allocation10 + $0x158] sm:$0xff]
        %v4601 = vld [vmem:[#allocation10 + $0x160] sm:$0xff]
        %v4602 = vld [vmem:[#allocation10 + $0x168] sm:$0xff]
        %v4603 = vld [vmem:[#allocation10 + $0x170] sm:$0xff]
        %v4604 = vld [vmem:[#allocation10 + $0x178] sm:$0xff]
        %v4605 = vld [vmem:[#allocation10 + $0x180] sm:$0xff]
        %v4606 = vld [vmem:[#allocation10 + $0x188] sm:$0xff]
        %v4607 = vld [vmem:[#allocation10 + $0x190] sm:$0xff]
        %v4608 = vld [vmem:[#allocation10 + $0x198] sm:$0xff]
        %v4609 = vld [vmem:[#allocation10 + $0x1a0] sm:$0xff]
        %v4610 = vld [vmem:[#allocation10 + $0x1a8] sm:$0xff]
        %v4611 = vld [vmem:[#allocation10 + $0x1b0] sm:$0xff]
        %v4612 = vld [vmem:[#allocation10 + $0x1b8] sm:$0xff]
        %v4613 = vld [vmem:[#allocation10 + $0x1c0] sm:$0xff]
        %v4614 = vld [vmem:[#allocation10 + $0x1c8] sm:$0xff]
        %v4615 = vld [vmem:[#allocation10 + $0x1d0] sm:$0xff]
        %v4616 = vld [vmem:[#allocation10 + $0x1d8] sm:$0xff]
        %v4617 = vld [vmem:[#allocation10 + $0x1e0] sm:$0xff]
        %v4618 = vld [vmem:[#allocation10 + $0x1e8] sm:$0xff]
        %v4619 = vld [vmem:[#allocation10 + $0x1f0] sm:$0xff]
        %v4620 = vld [vmem:[#allocation10 + $0x1f8] sm:$0xff]
        %v4621 = vld [vmem:[%s8] ss:$4 sm:$0x3]
        %v4686 = vunpack.c.l.b16 %v4557
        %v4687 = vunpack.c.h.b16 %v4557
        %v4688 = vunpack.c.l.b16 %v4558
        %v4689 = vunpack.c.h.b16 %v4558
        %v4690 = vunpack.c.l.b16 %v4559
        %v4691 = vunpack.c.h.b16 %v4559
        %v4692 = vunpack.c.l.b16 %v4560
        %v4693 = vunpack.c.h.b16 %v4560
        %v4694 = vunpack.c.l.b16 %v4561
        %v4695 = vunpack.c.h.b16 %v4561
        %v4696 = vunpack.c.l.b16 %v4562
        %v4697 = vunpack.c.h.b16 %v4562
        %v4698 = vunpack.c.l.b16 %v4563
        %v4699 = vunpack.c.h.b16 %v4563
        %v4700 = vunpack.c.l.b16 %v4564
        %v4701 = vunpack.c.h.b16 %v4564
        %v4702 = vunpack.c.l.b16 %v4565
        %v4703 = vunpack.c.h.b16 %v4565
        %v4704 = vunpack.c.l.b16 %v4566
        %v4705 = vunpack.c.h.b16 %v4566
        %v4706 = vunpack.c.l.b16 %v4567
        %v4707 = vunpack.c.h.b16 %v4567
        %v4708 = vunpack.c.l.b16 %v4568
        %v4709 = vunpack.c.h.b16 %v4568
        %v4710 = vunpack.c.l.b16 %v4569
        %v4711 = vunpack.c.h.b16 %v4569
        %v4712 = vunpack.c.l.b16 %v4570
        %v4713 = vunpack.c.h.b16 %v4570
        %v4714 = vunpack.c.l.b16 %v4571
        %v4715 = vunpack.c.h.b16 %v4571
        %v4716 = vunpack.c.l.b16 %v4572
        %v4717 = vunpack.c.h.b16 %v4572
        %v4718 = vunpack.c.l.b16 %v4573
        %v4719 = vunpack.c.h.b16 %v4573
        %v4720 = vunpack.c.l.b16 %v4574
        %v4721 = vunpack.c.h.b16 %v4574
        %v4722 = vunpack.c.l.b16 %v4575
        %v4723 = vunpack.c.h.b16 %v4575
        %v4724 = vunpack.c.l.b16 %v4576
        %v4725 = vunpack.c.h.b16 %v4576
        %v4726 = vunpack.c.l.b16 %v4577
        %v4727 = vunpack.c.h.b16 %v4577
        %v4728 = vunpack.c.l.b16 %v4578
        %v4729 = vunpack.c.h.b16 %v4578
        %v4730 = vunpack.c.l.b16 %v4579
        %v4731 = vunpack.c.h.b16 %v4579
        %v4732 = vunpack.c.l.b16 %v4580
        %v4733 = vunpack.c.h.b16 %v4580
        %v4734 = vunpack.c.l.b16 %v4581
        %v4735 = vunpack.c.h.b16 %v4581
        %v4736 = vunpack.c.l.b16 %v4582
        %v4737 = vunpack.c.h.b16 %v4582
        %v4738 = vunpack.c.l.b16 %v4583
        %v4739 = vunpack.c.h.b16 %v4583
        %v4740 = vunpack.c.l.b16 %v4584
        %v4741 = vunpack.c.h.b16 %v4584
        %v4742 = vunpack.c.l.b16 %v4585
        %v4743 = vunpack.c.h.b16 %v4585
        %v4744 = vunpack.c.l.b16 %v4586
        %v4745 = vunpack.c.h.b16 %v4586
        %v4746 = vunpack.c.l.b16 %v4587
        %v4747 = vunpack.c.h.b16 %v4587
        %v4748 = vunpack.c.l.b16 %v4588
        %v4749 = vunpack.c.h.b16 %v4588
        %v4750 = vunpack.c.l.b16 %v4589
        %v4751 = vunpack.c.h.b16 %v4589
        %v4752 = vunpack.c.l.b16 %v4590
        %v4753 = vunpack.c.h.b16 %v4590
        %v4754 = vunpack.c.l.b16 %v4591
        %v4755 = vunpack.c.h.b16 %v4591
        %v4756 = vunpack.c.l.b16 %v4592
        %v4757 = vunpack.c.h.b16 %v4592
        %v4758 = vunpack.c.l.b16 %v4593
        %v4759 = vunpack.c.h.b16 %v4593
        %v4760 = vunpack.c.l.b16 %v4594
        %v4761 = vunpack.c.h.b16 %v4594
        %v4762 = vunpack.c.l.b16 %v4595
        %v4763 = vunpack.c.h.b16 %v4595
        %v4764 = vunpack.c.l.b16 %v4596
        %v4765 = vunpack.c.h.b16 %v4596
        %v4766 = vunpack.c.l.b16 %v4597
        %v4767 = vunpack.c.h.b16 %v4597
        %v4768 = vunpack.c.l.b16 %v4598
        %v4769 = vunpack.c.h.b16 %v4598
        %v4770 = vunpack.c.l.b16 %v4599
        %v4771 = vunpack.c.h.b16 %v4599
        %v4772 = vunpack.c.l.b16 %v4600
        %v4773 = vunpack.c.h.b16 %v4600
        %v4774 = vunpack.c.l.b16 %v4601
        %v4775 = vunpack.c.h.b16 %v4601
        %v4776 = vunpack.c.l.b16 %v4602
        %v4777 = vunpack.c.h.b16 %v4602
        %v4778 = vunpack.c.l.b16 %v4603
        %v4779 = vunpack.c.h.b16 %v4603
        %v4780 = vunpack.c.l.b16 %v4604
        %v4781 = vunpack.c.h.b16 %v4604
        %v4782 = vunpack.c.l.b16 %v4605
        %v4783 = vunpack.c.h.b16 %v4605
        %v4784 = vunpack.c.l.b16 %v4606
        %v4785 = vunpack.c.h.b16 %v4606
        %v4786 = vunpack.c.l.b16 %v4607
        %v4787 = vunpack.c.h.b16 %v4607
        %v4788 = vunpack.c.l.b16 %v4608
        %v4789 = vunpack.c.h.b16 %v4608
        %v4790 = vunpack.c.l.b16 %v4609
        %v4791 = vunpack.c.h.b16 %v4609
        %v4792 = vunpack.c.l.b16 %v4610
        %v4793 = vunpack.c.h.b16 %v4610
        %v4794 = vunpack.c.l.b16 %v4611
        %v4795 = vunpack.c.h.b16 %v4611
        %v4796 = vunpack.c.l.b16 %v4612
        %v4797 = vunpack.c.h.b16 %v4612
        %v4798 = vunpack.c.l.b16 %v4613
        %v4799 = vunpack.c.h.b16 %v4613
        %v4800 = vunpack.c.l.b16 %v4614
        %v4801 = vunpack.c.h.b16 %v4614
        %v4802 = vunpack.c.l.b16 %v4615
        %v4803 = vunpack.c.h.b16 %v4615
        %v4804 = vunpack.c.l.b16 %v4616
        %v4805 = vunpack.c.h.b16 %v4616
        %v4806 = vunpack.c.l.b16 %v4617
        %v4807 = vunpack.c.h.b16 %v4617
        %v4808 = vunpack.c.l.b16 %v4618
        %v4809 = vunpack.c.h.b16 %v4618
        %v4810 = vunpack.c.l.b16 %v4619
        %v4811 = vunpack.c.h.b16 %v4619
        %v4812 = vunpack.c.l.b16 %v4620
        %v4813 = vunpack.c.h.b16 %v4620
        %v4814 = vpack.c.b16 %v4688, %v4686
        %v4815 = vpack.c.b16 %v4689, %v4687
        %v4816 = vpack.c.b16 %v4692, %v4690
        %v4817 = vpack.c.b16 %v4693, %v4691
        %v4818 = vpack.c.b16 %v4696, %v4694
        %v4819 = vpack.c.b16 %v4697, %v4695
        %v4820 = vpack.c.b16 %v4700, %v4698
        %v4821 = vpack.c.b16 %v4701, %v4699
        %v4822 = vpack.c.b16 %v4704, %v4702
        %v4823 = vpack.c.b16 %v4705, %v4703
        %v4824 = vpack.c.b16 %v4708, %v4706
        %v4825 = vpack.c.b16 %v4709, %v4707
        %v4826 = vpack.c.b16 %v4712, %v4710
        %v4827 = vpack.c.b16 %v4713, %v4711
        %v4828 = vpack.c.b16 %v4716, %v4714
        %v4829 = vpack.c.b16 %v4717, %v4715
        %v4830 = vpack.c.b16 %v4720, %v4718
        %v4831 = vpack.c.b16 %v4721, %v4719
        %v4832 = vpack.c.b16 %v4724, %v4722
        %v4833 = vpack.c.b16 %v4725, %v4723
        %v4834 = vpack.c.b16 %v4728, %v4726
        %v4835 = vpack.c.b16 %v4729, %v4727
        %v4836 = vpack.c.b16 %v4732, %v4730
        %v4837 = vpack.c.b16 %v4733, %v4731
        %v4838 = vpack.c.b16 %v4736, %v4734
        %v4839 = vpack.c.b16 %v4737, %v4735
        %v4840 = vpack.c.b16 %v4740, %v4738
        %v4841 = vpack.c.b16 %v4741, %v4739
        %v4842 = vpack.c.b16 %v4744, %v4742
        %v4843 = vpack.c.b16 %v4745, %v4743
        %v4844 = vpack.c.b16 %v4748, %v4746
        %v4845 = vpack.c.b16 %v4749, %v4747
        %v4846 = vpack.c.b16 %v4752, %v4750
        %v4847 = vpack.c.b16 %v4753, %v4751
        %v4848 = vpack.c.b16 %v4756, %v4754
        %v4849 = vpack.c.b16 %v4757, %v4755
        %v4850 = vpack.c.b16 %v4760, %v4758
        %v4851 = vpack.c.b16 %v4761, %v4759
        %v4852 = vpack.c.b16 %v4764, %v4762
        %v4853 = vpack.c.b16 %v4765, %v4763
        %v4854 = vpack.c.b16 %v4768, %v4766
        %v4855 = vpack.c.b16 %v4769, %v4767
        %v4856 = vpack.c.b16 %v4772, %v4770
        %v4857 = vpack.c.b16 %v4773, %v4771
        %v4858 = vpack.c.b16 %v4776, %v4774
        %v4859 = vpack.c.b16 %v4777, %v4775
        %v4860 = vpack.c.b16 %v4780, %v4778
        %v4861 = vpack.c.b16 %v4781, %v4779
        %v4862 = vpack.c.b16 %v4784, %v4782
        %v4863 = vpack.c.b16 %v4785, %v4783
        %v4864 = vpack.c.b16 %v4788, %v4786
        %v4865 = vpack.c.b16 %v4789, %v4787
        %v4866 = vpack.c.b16 %v4792, %v4790
        %v4867 = vpack.c.b16 %v4793, %v4791
        %v4868 = vpack.c.b16 %v4796, %v4794
        %v4869 = vpack.c.b16 %v4797, %v4795
        %v4870 = vpack.c.b16 %v4800, %v4798
        %v4871 = vpack.c.b16 %v4801, %v4799
        %v4872 = vpack.c.b16 %v4804, %v4802
        %v4873 = vpack.c.b16 %v4805, %v4803
        %v4874 = vpack.c.b16 %v4808, %v4806
        %v4875 = vpack.c.b16 %v4809, %v4807
        %v4876 = vpack.c.b16 %v4812, %v4810
        %v4877 = vpack.c.b16 %v4813, %v4811
        %v4943 = vlaneseq
        %v4944 = vshrl.u32 %v4943, 7
        %v4945 = vsub.s32 0, %v4944
        %v4946 = vrot.slane %v4621, %v4945
        %v4947 = vlaneseq
        %v4948 = vshrl.u32 %v4947, 7
        %v4949 = vsub.s32 1, %v4948
        %v4950 = vrot.slane %v4621, %v4949
        %4953 = vmatprep.subr.bf16.mxu0 %v4815
        %4954 = vmatpush1.bf16.msra.mxu0 %v4814
        %4955 = vmatprep.subr.bf16.mxu0 %v4817
        %4956 = vmatpush1.bf16.msra.mxu0 %v4816
        %4957 = vmatprep.subr.bf16.mxu0 %v4819
        %4958 = vmatpush1.bf16.msra.mxu0 %v4818
        %4959 = vmatprep.subr.bf16.mxu0 %v4821
        %4960 = vmatpush1.bf16.msra.mxu0 %v4820
        %4961 = vmatprep.subr.bf16.mxu0 %v4823
        %4962 = vmatpush1.bf16.msra.mxu0 %v4822
        %4963 = vmatprep.subr.bf16.mxu0 %v4825
        %4964 = vmatpush1.bf16.msra.mxu0 %v4824
        %4965 = vmatprep.subr.bf16.mxu0 %v4827
        %4966 = vmatpush1.bf16.msra.mxu0 %v4826
        %4967 = vmatprep.subr.bf16.mxu0 %v4829
        %4968 = vmatpush1.bf16.msra.mxu0 %v4828
        %4969 = vmatprep.subr.bf16.mxu0 %v4831
        %4970 = vmatpush1.bf16.msra.mxu0 %v4830
        %4971 = vmatprep.subr.bf16.mxu0 %v4833
        %4972 = vmatpush1.bf16.msra.mxu0 %v4832
        %4973 = vmatprep.subr.bf16.mxu0 %v4835
        %4974 = vmatpush1.bf16.msra.mxu0 %v4834
        %4975 = vmatprep.subr.bf16.mxu0 %v4837
        %4976 = vmatpush1.bf16.msra.mxu0 %v4836
        %4977 = vmatprep.subr.bf16.mxu0 %v4839
        %4978 = vmatpush1.bf16.msra.mxu0 %v4838
        %4979 = vmatprep.subr.bf16.mxu0 %v4841
        %4980 = vmatpush1.bf16.msra.mxu0 %v4840
        %4981 = vmatprep.subr.bf16.mxu0 %v4843
        %4982 = vmatpush1.bf16.msra.mxu0 %v4842
        %4983 = vmatprep.subr.bf16.mxu0 %v4845
        %4984 = vmatpush1.bf16.msra.mxu0 %v4844
        %4985 = vmatprep.mubr.bf16.mxu0 %v4554
        %4986 = vmatmul.mubr.bf16.gmra.mrb[0].mxu0 %v4553
        %v4987 = vpop.f32.mrb[0].mxu0
        %v4988 = vadd.f32 %v4946, %v4987
        %v4989 = vpop.f32.mrb[0].mxu0
        %v4990 = vadd.f32 %v4950, %v4989
        %v4991 = vpop.f32.mrb[0].mxu0
        %v4992 = vpop.f32.mrb[0].mxu0
        %4993 = vdwg.mxu0
        %4994 = vmatprep.subr.bf16.mxu0 %v4847
        %4995 = vmatpush1.bf16.msra.mxu0 %v4846
        %4996 = vmatprep.subr.bf16.mxu0 %v4849
        %4997 = vmatpush1.bf16.msra.mxu0 %v4848
        %4998 = vmatprep.subr.bf16.mxu0 %v4851
        %4999 = vmatpush1.bf16.msra.mxu0 %v4850
        %5000 = vmatprep.subr.bf16.mxu0 %v4853
        %5001 = vmatpush1.bf16.msra.mxu0 %v4852
        %5002 = vmatprep.subr.bf16.mxu0 %v4855
        %5003 = vmatpush1.bf16.msra.mxu0 %v4854
        %5004 = vmatprep.subr.bf16.mxu0 %v4857
        %5005 = vmatpush1.bf16.msra.mxu0 %v4856
        %5006 = vmatprep.subr.bf16.mxu0 %v4859
        %5007 = vmatpush1.bf16.msra.mxu0 %v4858
        %5008 = vmatprep.subr.bf16.mxu0 %v4861
        %5009 = vmatpush1.bf16.msra.mxu0 %v4860
        %5010 = vmatprep.subr.bf16.mxu0 %v4863
        %5011 = vmatpush1.bf16.msra.mxu0 %v4862
        %5012 = vmatprep.subr.bf16.mxu0 %v4865
        %5013 = vmatpush1.bf16.msra.mxu0 %v4864
        %5014 = vmatprep.subr.bf16.mxu0 %v4867
        %5015 = vmatpush1.bf16.msra.mxu0 %v4866
        %5016 = vmatprep.subr.bf16.mxu0 %v4869
        %5017 = vmatpush1.bf16.msra.mxu0 %v4868
        %5018 = vmatprep.subr.bf16.mxu0 %v4871
        %5019 = vmatpush1.bf16.msra.mxu0 %v4870
        %5020 = vmatprep.subr.bf16.mxu0 %v4873
        %5021 = vmatpush1.bf16.msra.mxu0 %v4872
        %5022 = vmatprep.subr.bf16.mxu0 %v4875
        %5023 = vmatpush1.bf16.msra.mxu0 %v4874
        %5024 = vmatprep.subr.bf16.mxu0 %v4877
        %5025 = vmatpush1.bf16.msra.mxu0 %v4876
        %5026 = vmatprep.mubr.bf16.mxu0 %v4556
        %5027 = vmatmul.mubr.bf16.gmra.mrb[0].mxu0 %v4555
        %v5028 = vpop.f32.mrb[0].mxu0
        %v5029 = vadd.f32 %v4988, %v5028
        %v5030 = vpop.f32.mrb[0].mxu0
        %v5031 = vadd.f32 %v4990, %v5030
        %v5032 = vpop.f32.mrb[0].mxu0
        %v5033 = vpop.f32.mrb[0].mxu0
        %5034 = vdwg.mxu0
        %vm5035 = vcmp.ge.f32.partialorder %v5029, 0.0
        %vm5036 = vcmp.ge.f32.partialorder %v5031, 0.0
        %v5037 = vmul.f32 %v5029, 0.2
        %v5038 = vmul.f32 %v5031, 0.2
        %v5039 = vsel %vm5035, %v5029, %v5037
        %v5040 = vsel %vm5036, %v5031, %v5038
        %s5041 = scalar_lea.vmem %s8, 1
        %v5042 = vld [vmem:[%s5041] ss:$4 sm:$0x3]
        %v5044 = vlaneseq
        %v5045 = vshrl.u32 %v5044, 7
        %v5046 = vsub.s32 0, %v5045
        %v5047 = vrot.slane %v5042, %v5046
        %v5048 = vlaneseq
        %v5049 = vshrl.u32 %v5048, 7
        %v5050 = vsub.s32 1, %v5049
        %v5051 = vrot.slane %v5042, %v5050
        %v5054 = vmul.f32 %v5039, %v5047
        %v5055 = vmul.f32 %v5040, %v5051
        %s5056 = scalar_lea.vmem %s8, 2
        %v5057 = vld [vmem:[%s5056] ss:$4 sm:$0x3]
        %v5059 = vlaneseq
        %v5060 = vshrl.u32 %v5059, 7
        %v5061 = vsub.s32 0, %v5060
        %v5062 = vrot.slane %v5057, %v5061
        %v5063 = vlaneseq
        %v5064 = vshrl.u32 %v5063, 7
        %v5065 = vsub.s32 1, %v5064
        %v5066 = vrot.slane %v5057, %v5065
        %v5069 = vadd.f32 %v5054, %v5062
        %v5070 = vadd.f32 %v5055, %v5066
        %v5071 = vpack.c.bf16 %v5069, %v5069
        %v5072 = vpack.c.bf16 %v5070, %v5070
        %v5073 = vld [vmem:[%s9] sm:$0xf]
        %v5074 = vld [vmem:[%s9 + $0x4] sm:$0xf]
        %v5075 = vld [vmem:[%s9 + $0x8] sm:$0xf]
        %v5076 = vld [vmem:[%s9 + $0xc] sm:$0xf]
        %v5077 = vld [vmem:[%s9 + $0x10] sm:$0xf]
        %v5078 = vld [vmem:[%s9 + $0x14] sm:$0xf]
        %v5079 = vld [vmem:[%s9 + $0x18] sm:$0xf]
        %v5080 = vld [vmem:[%s9 + $0x1c] sm:$0xf]
        %v5081 = vld [vmem:[%s9 + $0x20] sm:$0xf]
        %v5082 = vld [vmem:[%s9 + $0x24] sm:$0xf]
        %v5083 = vld [vmem:[%s9 + $0x28] sm:$0xf]
        %v5084 = vld [vmem:[%s9 + $0x2c] sm:$0xf]
        %v5085 = vld [vmem:[%s9 + $0x30] sm:$0xf]
        %v5086 = vld [vmem:[%s9 + $0x34] sm:$0xf]
        %v5087 = vld [vmem:[%s9 + $0x38] sm:$0xf]
        %v5088 = vld [vmem:[%s9 + $0x3c] sm:$0xf]
        %v5089 = vld [vmem:[%s9 + $0x40] sm:$0xf]
        %v5090 = vld [vmem:[%s9 + $0x44] sm:$0xf]
        %v5091 = vld [vmem:[%s9 + $0x48] sm:$0xf]
        %v5092 = vld [vmem:[%s9 + $0x4c] sm:$0xf]
        %v5093 = vld [vmem:[%s9 + $0x50] sm:$0xf]
        %v5094 = vld [vmem:[%s9 + $0x54] sm:$0xf]
        %v5095 = vld [vmem:[%s9 + $0x58] sm:$0xf]
        %v5096 = vld [vmem:[%s9 + $0x5c] sm:$0xf]
        %v5097 = vld [vmem:[%s9 + $0x60] sm:$0xf]
        %v5098 = vld [vmem:[%s9 + $0x64] sm:$0xf]
        %v5099 = vld [vmem:[%s9 + $0x68] sm:$0xf]
        %v5100 = vld [vmem:[%s9 + $0x6c] sm:$0xf]
        %v5101 = vld [vmem:[%s9 + $0x70] sm:$0xf]
        %v5102 = vld [vmem:[%s9 + $0x74] sm:$0xf]
        %v5103 = vld [vmem:[%s9 + $0x78] sm:$0xf]
        %v5104 = vld [vmem:[%s9 + $0x7c] sm:$0xf]
        %v5105 = vld [vmem:[%s10] sm:$0x1]
        %v5138 = vunpack.c.l.b16 %v5073
        %v5139 = vunpack.c.l.b16 %v5074
        %v5140 = vunpack.c.l.b16 %v5075
        %v5141 = vunpack.c.l.b16 %v5076
        %v5142 = vunpack.c.l.b16 %v5077
        %v5143 = vunpack.c.l.b16 %v5078
        %v5144 = vunpack.c.l.b16 %v5079
        %v5145 = vunpack.c.l.b16 %v5080
        %v5146 = vunpack.c.l.b16 %v5081
        %v5147 = vunpack.c.l.b16 %v5082
        %v5148 = vunpack.c.l.b16 %v5083
        %v5149 = vunpack.c.l.b16 %v5084
        %v5150 = vunpack.c.l.b16 %v5085
        %v5151 = vunpack.c.l.b16 %v5086
        %v5152 = vunpack.c.l.b16 %v5087
        %v5153 = vunpack.c.l.b16 %v5088
        %v5154 = vunpack.c.l.b16 %v5089
        %v5155 = vunpack.c.l.b16 %v5090
        %v5156 = vunpack.c.l.b16 %v5091
        %v5157 = vunpack.c.l.b16 %v5092
        %v5158 = vunpack.c.l.b16 %v5093
        %v5159 = vunpack.c.l.b16 %v5094
        %v5160 = vunpack.c.l.b16 %v5095
        %v5161 = vunpack.c.l.b16 %v5096
        %v5162 = vunpack.c.l.b16 %v5097
        %v5163 = vunpack.c.l.b16 %v5098
        %v5164 = vunpack.c.l.b16 %v5099
        %v5165 = vunpack.c.l.b16 %v5100
        %v5166 = vunpack.c.l.b16 %v5101
        %v5167 = vunpack.c.l.b16 %v5102
        %v5168 = vunpack.c.l.b16 %v5103
        %v5169 = vunpack.c.l.b16 %v5104
        %v5170 = vpack.c.b16 %v5139, %v5138
        %v5171 = vpack.c.b16 %v5141, %v5140
        %v5172 = vpack.c.b16 %v5143, %v5142
        %v5173 = vpack.c.b16 %v5145, %v5144
        %v5174 = vpack.c.b16 %v5147, %v5146
        %v5175 = vpack.c.b16 %v5149, %v5148
        %v5176 = vpack.c.b16 %v5151, %v5150
        %v5177 = vpack.c.b16 %v5153, %v5152
        %v5178 = vpack.c.b16 %v5155, %v5154
        %v5179 = vpack.c.b16 %v5157, %v5156
        %v5180 = vpack.c.b16 %v5159, %v5158
        %v5181 = vpack.c.b16 %v5161, %v5160
        %v5182 = vpack.c.b16 %v5163, %v5162
        %v5183 = vpack.c.b16 %v5165, %v5164
        %v5184 = vpack.c.b16 %v5167, %v5166
        %v5185 = vpack.c.b16 %v5169, %v5168
        %5202 = vmatprep.subr.bf16.mxu0 0
        %5203 = vmatpush1.bf16.msra.mxu0 %v5170
        %5204 = vmatprep.subr.bf16.mxu0 0
        %5205 = vmatpush1.bf16.msra.mxu0 %v5171
        %5206 = vmatprep.subr.bf16.mxu0 0
        %5207 = vmatpush1.bf16.msra.mxu0 %v5172
        %5208 = vmatprep.subr.bf16.mxu0 0
        %5209 = vmatpush1.bf16.msra.mxu0 %v5173
        %5210 = vmatprep.subr.bf16.mxu0 0
        %5211 = vmatpush1.bf16.msra.mxu0 %v5174
        %5212 = vmatprep.subr.bf16.mxu0 0
        %5213 = vmatpush1.bf16.msra.mxu0 %v5175
        %5214 = vmatprep.subr.bf16.mxu0 0
        %5215 = vmatpush1.bf16.msra.mxu0 %v5176
        %5216 = vmatprep.subr.bf16.mxu0 0
        %5217 = vmatpush1.bf16.msra.mxu0 %v5177
        %5218 = vmatprep.subr.bf16.mxu0 0
        %5219 = vmatpush1.bf16.msra.mxu0 %v5178
        %5220 = vmatprep.subr.bf16.mxu0 0
        %5221 = vmatpush1.bf16.msra.mxu0 %v5179
        %5222 = vmatprep.subr.bf16.mxu0 0
        %5223 = vmatpush1.bf16.msra.mxu0 %v5180
        %5224 = vmatprep.subr.bf16.mxu0 0
        %5225 = vmatpush1.bf16.msra.mxu0 %v5181
        %5226 = vmatprep.subr.bf16.mxu0 0
        %5227 = vmatpush1.bf16.msra.mxu0 %v5182
        %5228 = vmatprep.subr.bf16.mxu0 0
        %5229 = vmatpush1.bf16.msra.mxu0 %v5183
        %5230 = vmatprep.subr.bf16.mxu0 0
        %5231 = vmatpush1.bf16.msra.mxu0 %v5184
        %5232 = vmatprep.subr.bf16.mxu0 0
        %5233 = vmatpush1.bf16.msra.mxu0 %v5185
        %5234 = vmatprep.mubr.bf16.mxu0 %v5072
        %5235 = vmatmul.mubr.bf16.gmra.mrb[0].mxu0 %v5071
        %v5236 = vpop.f32.mrb[0].mxu0
        %v5237 = vadd.f32 %v5105, %v5236
        %v5238 = vpop.f32.mrb[0].mxu0
        %v5239 = vpop.f32.mrb[0].mxu0
        %v5240 = vpop.f32.mrb[0].mxu0
        %5241 = vdwg.mxu0
        %vm5242 = vcmp.ge.f32.partialorder %v5237, 0.0
        %v5243 = vmul.f32 %v5237, 0.2
        %v5244 = vsel %vm5242, %v5237, %v5243
        %v5245 = vld [vmem:[%s10 + $0x1] sm:$0x1]
        %v5246 = vmul.f32 %v5244, %v5245
        %v5247 = vld [vmem:[%s10 + $0x2] sm:$0x1]
        %v5248 = vadd.f32 %v5246, %v5247
        %v5249 = vpack.c.bf16 %v5248, %v5248
        %v5250 = vld [vmem:[%s11] sm:$0xf]
        %v5251 = vld [vmem:[%s11 + $0x4] sm:$0xf]
        %v5252 = vld [vmem:[%s11 + $0x8] sm:$0xf]
        %v5253 = vld [vmem:[%s11 + $0xc] sm:$0xf]
        %v5254 = vld [vmem:[%s11 + $0x10] sm:$0xf]
        %v5255 = vld [vmem:[%s11 + $0x14] sm:$0xf]
        %v5256 = vld [vmem:[%s11 + $0x18] sm:$0xf]
        %v5257 = vld [vmem:[%s11 + $0x1c] sm:$0xf]
        %v5258 = vld [vmem:[%s11 + $0x20] sm:$0xf]
        %v5259 = vld [vmem:[%s11 + $0x24] sm:$0xf]
        %v5260 = vld [vmem:[%s11 + $0x28] sm:$0xf]
        %v5261 = vld [vmem:[%s11 + $0x2c] sm:$0xf]
        %v5262 = vld [vmem:[%s11 + $0x30] sm:$0xf]
        %v5263 = vld [vmem:[%s11 + $0x34] sm:$0xf]
        %v5264 = vld [vmem:[%s11 + $0x38] sm:$0xf]
        %v5265 = vld [vmem:[%s11 + $0x3c] sm:$0xf]
        %v5266 = vld [vmem:[#allocation2] sm:$0x1]
        %v5283 = vunpack.c.l.b16 %v5250
        %v5284 = vunpack.c.l.b16 %v5251
        %v5285 = vunpack.c.l.b16 %v5252
        %v5286 = vunpack.c.l.b16 %v5253
        %v5287 = vunpack.c.l.b16 %v5254
        %v5288 = vunpack.c.l.b16 %v5255
        %v5289 = vunpack.c.l.b16 %v5256
        %v5290 = vunpack.c.l.b16 %v5257
        %v5291 = vunpack.c.l.b16 %v5258
        %v5292 = vunpack.c.l.b16 %v5259
        %v5293 = vunpack.c.l.b16 %v5260
        %v5294 = vunpack.c.l.b16 %v5261
        %v5295 = vunpack.c.l.b16 %v5262
        %v5296 = vunpack.c.l.b16 %v5263
        %v5297 = vunpack.c.l.b16 %v5264
        %v5298 = vunpack.c.l.b16 %v5265
        %v5299 = vpack.c.b16 %v5284, %v5283
        %v5300 = vpack.c.b16 %v5286, %v5285
        %v5301 = vpack.c.b16 %v5288, %v5287
        %v5302 = vpack.c.b16 %v5290, %v5289
        %v5303 = vpack.c.b16 %v5292, %v5291
        %v5304 = vpack.c.b16 %v5294, %v5293
        %v5305 = vpack.c.b16 %v5296, %v5295
        %v5306 = vpack.c.b16 %v5298, %v5297
        %5315 = vmatprep.subr.bf16.mxu0 0
        %5316 = vmatpush1.bf16.msra.mxu0 %v5299
        %5317 = vmatprep.subr.bf16.mxu0 0
        %5318 = vmatpush1.bf16.msra.mxu0 %v5300
        %5319 = vmatprep.subr.bf16.mxu0 0
        %5320 = vmatpush1.bf16.msra.mxu0 %v5301
        %5321 = vmatprep.subr.bf16.mxu0 0
        %5322 = vmatpush1.bf16.msra.mxu0 %v5302
        %5323 = vmatprep.subr.bf16.mxu0 0
        %5324 = vmatpush1.bf16.msra.mxu0 %v5303
        %5325 = vmatprep.subr.bf16.mxu0 0
        %5326 = vmatpush1.bf16.msra.mxu0 %v5304
        %5327 = vmatprep.subr.bf16.mxu0 0
        %5328 = vmatpush1.bf16.msra.mxu0 %v5305
        %5329 = vmatprep.subr.bf16.mxu0 0
        %5330 = vmatpush1.bf16.msra.mxu0 %v5306
        %5331 = vmatprep.subr.bf16.mxu0 0
        %5332 = vmatpush1.bf16.msra.mxu0 0
        %5333 = vmatprep.subr.bf16.mxu0 0
        %5334 = vmatpush1.bf16.msra.mxu0 0
        %5335 = vmatprep.subr.bf16.mxu0 0
        %5336 = vmatpush1.bf16.msra.mxu0 0
        %5337 = vmatprep.subr.bf16.mxu0 0
        %5338 = vmatpush1.bf16.msra.mxu0 0
        %5339 = vmatprep.subr.bf16.mxu0 0
        %5340 = vmatpush1.bf16.msra.mxu0 0
        %5341 = vmatprep.subr.bf16.mxu0 0
        %5342 = vmatpush1.bf16.msra.mxu0 0
        %5343 = vmatprep.subr.bf16.mxu0 0
        %5344 = vmatpush1.bf16.msra.mxu0 0
        %5345 = vmatprep.subr.bf16.mxu0 0
        %5346 = vmatpush1.bf16.msra.mxu0 0
        %5347 = vmatprep.mubr.bf16.mxu0 0
        %5348 = vmatmul.mubr.bf16.gmra.mrb[0].mxu0 %v5249
        %v5349 = vpop.f32.mrb[0].mxu0
        %v5350 = vadd.f32 %v5266, %v5349
        %v5351 = vpop.f32.mrb[0].mxu0
        %v5352 = vpop.f32.mrb[0].mxu0
        %v5353 = vpop.f32.mrb[0].mxu0
        %5354 = vdwg.mxu0
        %v5355 = vsub.f32 0.0, %v5350
        %v5356 = vmul.f32 %v5355, 1.442695
        %v5357 = vpow.pop %v5356
        %v5358 = vadd.f32 %v5357, 1.0
        %v5359 = vrcp.pop %v5358
        %v5360 = vmul.f32 1.0, %v5359
        %vm5361 = vcmask 0
        %5362 = vst.msk [vmem:[%s523] sm:$0x1] %vm5361, %v5360
        %p5363 = scmp.lt.s32.totalorder %s29, 1
        %s5364 = scalar_select %p5363, %s29, 1
        %s5365 = scalar_lea.vmem %s13, %s5364
        // Predicated region
        $region93: #{discriminator_forward.1} parent=71 // pred_check
          %p5366 = pneg %p330
        $region94: #{discriminator_forward.1} parent=71 // pred_check_branch
          %5368 = sbr.rel (%p5366) target = $region96
        $region95: #{discriminator_forward.1} parent=71 // pred_region
          _
        $region96: #{discriminator_forward.1} parent=71 // pred_fallthru
          _
      $region72: #{discriminator_forward.1} parent=5 // pred_fallthru
        _
      %p5369 = scmp.le.s32.totalorder 2, %s24
      // Predicated region
      $region97: #{discriminator_forward.1} parent=5 // pred_check
        %p5370 = pneg %p5369
      $region98: #{discriminator_forward.1} parent=5 // pred_check_branch
        %5372 = sbr.rel (%p5370) target = $region100
      $region99: #{discriminator_forward.1} parent=5 // pred_region
        %s5373 = ssub.s32 %s24, 2
        // Predicated region
        $region101: #{discriminator_forward.1} parent=99 // pred_check
          %p5374 = pneg %p336
        $region102: #{discriminator_forward.1} parent=99 // pred_check_branch
          %5376 = sbr.rel (%p5374) target = $region104
        $region103: #{discriminator_forward.1} parent=99 // pred_region
          %p5377 = scmp.lt.s32.totalorder %s30, 1
          %s5378 = scalar_select %p5377, %s30, 1
          %s5379 = scalar_lea.vmem %s13, %s5378
        $region104: #{discriminator_forward.1} parent=99 // pred_fallthru
          _
      $region100: #{discriminator_forward.1} parent=5 // pred_fallthru
        _
    $region6: #{discriminator_forward.1} parent=1 // loop_footer
      %s28 = sadd.s32 1, %s24
    $region7: #{discriminator_forward.1} parent=1 // loop_footer_branch
      %23 = sbr.rel target = $region3
    $region8: #{discriminator_forward.1} parent=1 // loop_exit
      _
    %5380 = vsyncpa [#allocation4], 1
    %s5381 = scalar_lea.sflag [#allocation4], 1
    %5382 = vsyncpa %s5381, 1
    %5383 = vsyncpa [#allocation6], 1
    %5384 = vsyncpa [#allocation9], 1

</llo_original>
